<compile_context>
chip_gen: v7x
topology: tpu7x:2x2x1
jax: 0.10.0
libtpu: 0.0.40
codegen_flags: <defaults>
</compile_context>

<pallas_src>
import math
import functools

import jax
import jax.numpy as jnp
from jax import lax
from jax.experimental import pallas as pl
from jax.experimental.pallas import tpu as pltpu

LN_EPS = 1e-5        # torch.nn.LayerNorm default
NEG_BIG = -1e30      # logit bias for padded action lanes -> softmax prob exactly 0
LANE = 128
HI = lax.Precision.HIGHEST


def _gelu_exact(x):
    # torch.nn.GELU() default = exact erf formulation
    return 0.5 * x * (1.0 + lax.erf(x * (1.0 / math.sqrt(2.0))))


def actor_kernel(x_ref, w1_ref, vec_ref, w2_ref, w3_ref, o_ref, *, inv_h, inv_temp):
    x = x_ref[...].astype(jnp.float32)

    vecs = vec_ref[...]                          # (8, P) packed per-lane vectors
    b1, g1, be1 = vecs[0:1, :], vecs[1:2, :], vecs[2:3, :]
    b2, g2, be2 = vecs[3:4, :], vecs[4:5, :], vecs[5:6, :]
    b3 = vecs[7:8, :]                            # true action lanes, NEG_BIG on padding

    P = vecs.shape[-1]
    ones_col = jnp.ones((P, 1), jnp.float32)     # reduction column for the (idle) MXU

    def row_sum(v):
        # Lane reduction on the MXU instead of the XLU; HIGHEST keeps f32 accuracy.
        return jnp.dot(v, ones_col, precision=HI, preferred_element_type=jnp.float32)

    def ln_gelu(h, gamma, beta):
        # One-pass LayerNorm stats over the TRUE hidden size; padded lanes of h are
        # exactly 0 (zero-padded weights & biases), so raw sums are already correct.
        mean = row_sum(h) * inv_h
        var = jnp.maximum(row_sum(h * h) * inv_h - mean * mean, 0.0)
        # gamma/beta are 0 on padded lanes -> y (and GELU(y)) stay 0 there.
        y = (h - mean) * lax.rsqrt(var + LN_EPS) * gamma + beta
        return _gelu_exact(y)

    # state_to_hidden_proj + hidden_norm1 + GELU
    h = jnp.dot(x, w1_ref[...], precision=HI, preferred_element_type=jnp.float32) + b1
    h = ln_gelu(h, g1, be1)
    # middle_layer + hidden_norm2 + GELU
    h = jnp.dot(h, w2_ref[...], precision=HI, preferred_element_type=jnp.float32) + b2
    h = ln_gelu(h, g2, be2)
    # hidden_to_action_proj + softmax(logits / temperature)
    logits = jnp.dot(h, w3_ref[...], precision=HI, preferred_element_type=jnp.float32) + b3
    if inv_temp is not None:                     # static: skip multiply when temperature == 1
        logits = logits * inv_temp

    m = jnp.max(logits, axis=-1, keepdims=True)  # only remaining XLU reduction
    e = jnp.exp(logits - m)                      # padded lanes -> exp(-huge) = 0
    s = row_sum(e)
    r = pl.reciprocal(s, approx=True)            # EUP slot
    r = r * (2.0 - s * r)                        # one Newton step -> ~f32 accuracy
    o_ref[...] = (e * r).astype(o_ref.dtype)


@functools.partial(jax.jit,
                   static_argnames=("hidden_dim", "action_dim", "temperature"))
def actor_forward(state, packed, *, hidden_dim, action_dim, temperature=1.0):
    B, S = state.shape
    P = packed["w2"].shape[0]

    # Tile selection:
    #   * B <= 256 -> single grid step (block == full array dims).
    #   * B  > 256 -> 256-row tiles; grid >= 2 for B >= 512 so "parallel" semantics
    #     can shard across v7x's two TensorCores; also bounds live ranges on v5e.
    if B <= 256:
        tb, Bp = B, B
    else:
        tb = 256
        Bp = int(pl.cdiv(B, tb)) * tb
    if Bp != B:
        state = jnp.pad(state, ((0, Bp - B), (0, 0)))   # cheap; sliced off below
    grid = (Bp // tb,)

    full = lambda shape: pl.BlockSpec(shape, lambda i: (0, 0))

    cost = pl.CostEstimate(
        flops=int(2 * Bp * (S * P + 2 * P * P + 5 * P) + 20 * Bp * P),
        transcendentals=int(3 * Bp * P),
        bytes_accessed=int(4 * (Bp * S + S * P + 2 * P * P + 8 * P + Bp * P)),
    )

    inv_temp = None if float(temperature) == 1.0 else 1.0 / float(temperature)
    kernel = functools.partial(actor_kernel,
                               inv_h=1.0 / float(hidden_dim),
                               inv_temp=inv_temp)

    out_padded = pl.pallas_call(
        kernel,
        out_shape=jax.ShapeDtypeStruct((Bp, P), state.dtype),
        grid_spec=pltpu.PrefetchScalarGridSpec(
            num_scalar_prefetch=0,
            grid=grid,
            in_specs=[
                pl.BlockSpec((tb, S), lambda i: (i, 0)),   # state tile
                full((S, P)),                              # w1 (padded cols)
                full((8, P)),                              # packed b1,g1,be1,b2,g2,be2,-,b3
                full((P, P)),                              # w2 (padded)
                full((P, P)),                              # w3 (padded)
            ],
            out_specs=pl.BlockSpec((tb, P), lambda i: (i, 0)),   # lane-dense output
        ),
        compiler_params=pltpu.CompilerParams(
            dimension_semantics=("parallel",)),
        cost_estimate=cost,
    )(state, packed["w1"], packed["vecs"], packed["w2"], packed["w3"])

    # Consumers that can handle the lane-padded (B, 128) layout should take
    # out_padded[:B] directly and skip this slice (saves a full-width HBM round trip).
    return out_padded[:B, :action_dim]


def init_params(key, state_dim, action_dim, hidden_dim=64):
    """Deterministic init mirroring the torch module's parameter shapes.
    Linear weights stored as (in, out) (transposed vs. torch's (out, in))."""
    ks = jax.random.split(key, 6)

    def linear(kw, kb, fan_in, fan_out):
        bound = 1.0 / math.sqrt(fan_in)
        w = jax.random.uniform(kw, (fan_in, fan_out), jnp.float32, -bound, bound)
        b = jax.random.uniform(kb, (1, fan_out), jnp.float32, -bound, bound)
        return w, b

    w1, b1 = linear(ks[0], ks[1], state_dim, hidden_dim)
    w2, b2 = linear(ks[2], ks[3], hidden_dim, hidden_dim)
    w3, b3 = linear(ks[4], ks[5], hidden_dim, action_dim)
    ones = jnp.ones((1, hidden_dim), jnp.float32)
    zeros = jnp.zeros((1, hidden_dim), jnp.float32)
    return {
        "w1": w1, "b1": b1, "g1": ones, "be1": zeros,
        "w2": w2, "b2": b2, "g2": ones.copy(), "be2": zeros.copy(),
        "w3": w3, "b3": b3,
    }


def pack_params(p, hidden_dim, action_dim):
    """Zero-pad hidden/action dims to a common 128-lane multiple and consolidate
    all per-lane vectors into a single (8, P) block (one DMA instead of 7)."""
    H, A = hidden_dim, action_dim
    P = LANE * max(1, -(-max(H, A) // LANE))
    S = p["w1"].shape[0]

    w1 = jnp.zeros((S, P), jnp.float32).at[:, :H].set(p["w1"])
    w2 = jnp.zeros((P, P), jnp.float32).at[:H, :H].set(p["w2"])
    w3 = jnp.zeros((P, P), jnp.float32).at[:H, :A].set(p["w3"])

    vecs = jnp.zeros((8, P), jnp.float32)
    vecs = vecs.at[0, :H].set(p["b1"].reshape(-1))
    vecs = vecs.at[1, :H].set(p["g1"].reshape(-1))
    vecs = vecs.at[2, :H].set(p["be1"].reshape(-1))
    vecs = vecs.at[3, :H].set(p["b2"].reshape(-1))
    vecs = vecs.at[4, :H].set(p["g2"].reshape(-1))
    vecs = vecs.at[5, :H].set(p["be2"].reshape(-1))
    # row 6 unused (former lane mask, no longer needed)
    vecs = vecs.at[7, :].set(NEG_BIG)              # b3 row: padded action lanes -> -1e30
    vecs = vecs.at[7, :A].set(p["b3"].reshape(-1))

    return {"w1": w1, "w2": w2, "w3": w3, "vecs": vecs}


def actor_ref(state, p, temperature=1.0):
    """Pure-JAX reference (matches the torch module; f32 matmuls via HIGHEST)."""
    mm = lambda a, b: jnp.dot(a, b, precision=HI)

    def ln(x, g, b):
        m = jnp.mean(x, -1, keepdims=True)
        v = jnp.mean((x - m) ** 2, -1, keepdims=True)
        return (x - m) / jnp.sqrt(v + LN_EPS) * g + b

    gelu = lambda x: 0.5 * x * (1.0 + lax.erf(x / math.sqrt(2.0)))
    h = mm(state, p["w1"]) + p["b1"]
    h = gelu(ln(h, p["g1"], p["be1"]))
    h = mm(h, p["w2"]) + p["b2"]
    h = gelu(ln(h, p["g2"], p["be2"]))
    logits = (mm(h, p["w3"]) + p["b3"]) / temperature
    return jax.nn.softmax(logits, axis=-1)


if __name__ == "__main__":
    key = jax.random.PRNGKey(0)
    k_state, k_params, k_state2 = jax.random.split(key, 3)

    batch, state_dim, hidden_dim, action_dim = 16, 32, 64, 6
    state = jax.random.normal(k_state, (batch, state_dim), jnp.float32)
    params = init_params(k_params, state_dim, action_dim, hidden_dim)
    packed = pack_params(params, hidden_dim, action_dim)

    # Small-batch / single-grid-step path, temperature == 1 (multiply elided).
    out = actor_forward(state, packed,
                        hidden_dim=hidden_dim, action_dim=action_dim, temperature=1.0)
    out = jax.block_until_ready(out)
    ref = actor_ref(state, params, temperature=1.0)
    assert out.shape == (batch, action_dim), out.shape
    assert jnp.allclose(jnp.sum(out, axis=-1), 1.0, atol=1e-5)
    assert jnp.allclose(out, ref, atol=1e-5, rtol=1e-5), float(jnp.max(jnp.abs(out - ref)))

    # Multi-step / padded-batch path (B=300 -> tb=256, grid=2), temperature != 1.
    batch2 = 300
    state2 = jax.random.normal(k_state2, (batch2, state_dim), jnp.float32)
    out2 = actor_forward(state2, packed,
                         hidden_dim=hidden_dim, action_dim=action_dim, temperature=2.0)
    out2 = jax.block_until_ready(out2)
    ref2 = actor_ref(state2, params, temperature=2.0)
    assert out2.shape == (batch2, action_dim), out2.shape
    assert jnp.allclose(jnp.sum(out2, axis=-1), 1.0, atol=1e-5)
    assert jnp.allclose(out2, ref2, atol=1e-5, rtol=1e-5), float(jnp.max(jnp.abs(out2 - ref2)))

    print("KERNEL_OK")
</pallas_src>

<mosaic_0001>
module attributes {stable_mosaic.version = 11 : i64} {
  func.func @actor_kernel(%arg0: i32, %arg1: memref<16x32xf32, #tpu.memory_space<vmem>>, %arg2: memref<32x128xf32, #tpu.memory_space<vmem>>, %arg3: memref<8x128xf32, #tpu.memory_space<vmem>>, %arg4: memref<128x128xf32, #tpu.memory_space<vmem>>, %arg5: memref<128x128xf32, #tpu.memory_space<vmem>>, %arg6: memref<16x128xf32, #tpu.memory_space<vmem>>) attributes {dimension_semantics = [#tpu.dimension_semantics<parallel>], iteration_bounds = array<i64: 1>, scalar_prefetch = 0 : i64, scratch_operands = 0 : i64, tpu.core_type = #tpu.core_type<tc>, window_params = [{transform_indices = @transform_0, window_bounds = array<i64: 16, 32>}, {pipeline_mode = #tpu.pipeline_mode<synchronous>, transform_indices = @transform_1, window_bounds = array<i64: 32, 128>}, {pipeline_mode = #tpu.pipeline_mode<synchronous>, transform_indices = @transform_2, window_bounds = array<i64: 8, 128>}, {pipeline_mode = #tpu.pipeline_mode<synchronous>, transform_indices = @transform_3, window_bounds = array<i64: 128, 128>}, {pipeline_mode = #tpu.pipeline_mode<synchronous>, transform_indices = @transform_4, window_bounds = array<i64: 128, 128>}, {transform_indices = @transform_5, window_bounds = array<i64: 16, 128>}]} {
    %c0 = arith.constant 0 : index
    %c0_0 = arith.constant 0 : index
    %0 = vector.load %arg1[%c0, %c0_0] : memref<16x32xf32, #tpu.memory_space<vmem>>, vector<16x32xf32>
    %c0_1 = arith.constant 0 : index
    %c0_2 = arith.constant 0 : index
    %1 = vector.load %arg3[%c0_1, %c0_2] : memref<8x128xf32, #tpu.memory_space<vmem>>, vector<8x128xf32>
    %2 = vector.extract_strided_slice %1 {offsets = [0, 0], sizes = [1, 128], strides = [1, 1]} : vector<8x128xf32> to vector<1x128xf32>
    %3 = vector.extract_strided_slice %1 {offsets = [1, 0], sizes = [1, 128], strides = [1, 1]} : vector<8x128xf32> to vector<1x128xf32>
    %4 = vector.extract_strided_slice %1 {offsets = [2, 0], sizes = [1, 128], strides = [1, 1]} : vector<8x128xf32> to vector<1x128xf32>
    %5 = vector.extract_strided_slice %1 {offsets = [3, 0], sizes = [1, 128], strides = [1, 1]} : vector<8x128xf32> to vector<1x128xf32>
    %6 = vector.extract_strided_slice %1 {offsets = [4, 0], sizes = [1, 128], strides = [1, 1]} : vector<8x128xf32> to vector<1x128xf32>
    %7 = vector.extract_strided_slice %1 {offsets = [5, 0], sizes = [1, 128], strides = [1, 1]} : vector<8x128xf32> to vector<1x128xf32>
    %8 = vector.extract_strided_slice %1 {offsets = [7, 0], sizes = [1, 128], strides = [1, 1]} : vector<8x128xf32> to vector<1x128xf32>
    %cst = arith.constant 1.000000e+00 : f32
    %9 = vector.broadcast %cst : f32 to vector<128x1xf32>
    %c0_3 = arith.constant 0 : index
    %c0_4 = arith.constant 0 : index
    %10 = vector.load %arg2[%c0_3, %c0_4] : memref<32x128xf32, #tpu.memory_space<vmem>>, vector<32x128xf32>
    %cst_5 = arith.constant dense<0.000000e+00> : vector<16x128xf32>
    %11 = tpu.matmul %0, %10, %cst_5 {dimension_numbers = #tpu.dot_dimension_numbers<[1], [0], [0], [1], [0, 0, 1, 1], [], []>, precision = #tpu.contract_precision<fp32>} : vector<16x32xf32>, vector<32x128xf32>, vector<16x128xf32> -> vector<16x128xf32>
    %12 = vector.broadcast %2 : vector<1x128xf32> to vector<16x128xf32>
    %13 = arith.addf %11, %12 : vector<16x128xf32>
    %cst_6 = arith.constant dense<0.000000e+00> : vector<16x1xf32>
    %14 = tpu.matmul %13, %9, %cst_6 {dimension_numbers = #tpu.dot_dimension_numbers<[1], [0], [0], [1], [0, 0, 1, 1], [], []>, precision = #tpu.contract_precision<fp32>} : vector<16x128xf32>, vector<128x1xf32>, vector<16x1xf32> -> vector<16x1xf32>
    %cst_7 = arith.constant 1.562500e-02 : f32
    %15 = vector.broadcast %cst_7 : f32 to vector<16x1xf32>
    %16 = arith.mulf %14, %15 : vector<16x1xf32>
    %17 = arith.mulf %13, %13 : vector<16x128xf32>
    %cst_8 = arith.constant dense<0.000000e+00> : vector<16x1xf32>
    %18 = tpu.matmul %17, %9, %cst_8 {dimension_numbers = #tpu.dot_dimension_numbers<[1], [0], [0], [1], [0, 0, 1, 1], [], []>, precision = #tpu.contract_precision<fp32>} : vector<16x128xf32>, vector<128x1xf32>, vector<16x1xf32> -> vector<16x1xf32>
    %cst_9 = arith.constant 1.562500e-02 : f32
    %19 = vector.broadcast %cst_9 : f32 to vector<16x1xf32>
    %20 = arith.mulf %18, %19 : vector<16x1xf32>
    %21 = arith.mulf %16, %16 : vector<16x1xf32>
    %22 = arith.subf %20, %21 : vector<16x1xf32>
    %cst_10 = arith.constant 0.000000e+00 : f32
    %23 = vector.broadcast %cst_10 : f32 to vector<16x1xf32>
    %24 = arith.maximumf %22, %23 : vector<16x1xf32>
    %25 = vector.broadcast %16 : vector<16x1xf32> to vector<16x128xf32>
    %26 = arith.subf %13, %25 : vector<16x128xf32>
    %cst_11 = arith.constant 9.99999974E-6 : f32
    %27 = vector.broadcast %cst_11 : f32 to vector<16x1xf32>
    %28 = arith.addf %24, %27 : vector<16x1xf32>
    %29 = math.rsqrt %28 : vector<16x1xf32>
    %30 = vector.broadcast %29 : vector<16x1xf32> to vector<16x128xf32>
    %31 = arith.mulf %26, %30 : vector<16x128xf32>
    %32 = vector.broadcast %3 : vector<1x128xf32> to vector<16x128xf32>
    %33 = arith.mulf %31, %32 : vector<16x128xf32>
    %34 = vector.broadcast %4 : vector<1x128xf32> to vector<16x128xf32>
    %35 = arith.addf %33, %34 : vector<16x128xf32>
    %cst_12 = arith.constant 5.000000e-01 : f32
    %36 = vector.broadcast %cst_12 : f32 to vector<16x128xf32>
    %37 = arith.mulf %36, %35 : vector<16x128xf32>
    %cst_13 = arith.constant 0.707106769 : f32
    %38 = vector.broadcast %cst_13 : f32 to vector<16x128xf32>
    %39 = arith.mulf %35, %38 : vector<16x128xf32>
    %40 = math.erf %39 : vector<16x128xf32>
    %cst_14 = arith.constant 1.000000e+00 : f32
    %41 = vector.broadcast %cst_14 : f32 to vector<16x128xf32>
    %42 = arith.addf %41, %40 : vector<16x128xf32>
    %43 = arith.mulf %37, %42 : vector<16x128xf32>
    %c0_15 = arith.constant 0 : index
    %c0_16 = arith.constant 0 : index
    %44 = vector.load %arg4[%c0_15, %c0_16] : memref<128x128xf32, #tpu.memory_space<vmem>>, vector<128x128xf32>
    %cst_17 = arith.constant dense<0.000000e+00> : vector<16x128xf32>
    %45 = tpu.matmul %43, %44, %cst_17 {dimension_numbers = #tpu.dot_dimension_numbers<[1], [0], [0], [1], [0, 0, 1, 1], [], []>, precision = #tpu.contract_precision<fp32>} : vector<16x128xf32>, vector<128x128xf32>, vector<16x128xf32> -> vector<16x128xf32>
    %46 = vector.broadcast %5 : vector<1x128xf32> to vector<16x128xf32>
    %47 = arith.addf %45, %46 : vector<16x128xf32>
    %cst_18 = arith.constant dense<0.000000e+00> : vector<16x1xf32>
    %48 = tpu.matmul %47, %9, %cst_18 {dimension_numbers = #tpu.dot_dimension_numbers<[1], [0], [0], [1], [0, 0, 1, 1], [], []>, precision = #tpu.contract_precision<fp32>} : vector<16x128xf32>, vector<128x1xf32>, vector<16x1xf32> -> vector<16x1xf32>
    %cst_19 = arith.constant 1.562500e-02 : f32
    %49 = vector.broadcast %cst_19 : f32 to vector<16x1xf32>
    %50 = arith.mulf %48, %49 : vector<16x1xf32>
    %51 = arith.mulf %47, %47 : vector<16x128xf32>
    %cst_20 = arith.constant dense<0.000000e+00> : vector<16x1xf32>
    %52 = tpu.matmul %51, %9, %cst_20 {dimension_numbers = #tpu.dot_dimension_numbers<[1], [0], [0], [1], [0, 0, 1, 1], [], []>, precision = #tpu.contract_precision<fp32>} : vector<16x128xf32>, vector<128x1xf32>, vector<16x1xf32> -> vector<16x1xf32>
    %cst_21 = arith.constant 1.562500e-02 : f32
    %53 = vector.broadcast %cst_21 : f32 to vector<16x1xf32>
    %54 = arith.mulf %52, %53 : vector<16x1xf32>
    %55 = arith.mulf %50, %50 : vector<16x1xf32>
    %56 = arith.subf %54, %55 : vector<16x1xf32>
    %cst_22 = arith.constant 0.000000e+00 : f32
    %57 = vector.broadcast %cst_22 : f32 to vector<16x1xf32>
    %58 = arith.maximumf %56, %57 : vector<16x1xf32>
    %59 = vector.broadcast %50 : vector<16x1xf32> to vector<16x128xf32>
    %60 = arith.subf %47, %59 : vector<16x128xf32>
    %cst_23 = arith.constant 9.99999974E-6 : f32
    %61 = vector.broadcast %cst_23 : f32 to vector<16x1xf32>
    %62 = arith.addf %58, %61 : vector<16x1xf32>
    %63 = math.rsqrt %62 : vector<16x1xf32>
    %64 = vector.broadcast %63 : vector<16x1xf32> to vector<16x128xf32>
    %65 = arith.mulf %60, %64 : vector<16x128xf32>
    %66 = vector.broadcast %6 : vector<1x128xf32> to vector<16x128xf32>
    %67 = arith.mulf %65, %66 : vector<16x128xf32>
    %68 = vector.broadcast %7 : vector<1x128xf32> to vector<16x128xf32>
    %69 = arith.addf %67, %68 : vector<16x128xf32>
    %cst_24 = arith.constant 5.000000e-01 : f32
    %70 = vector.broadcast %cst_24 : f32 to vector<16x128xf32>
    %71 = arith.mulf %70, %69 : vector<16x128xf32>
    %cst_25 = arith.constant 0.707106769 : f32
    %72 = vector.broadcast %cst_25 : f32 to vector<16x128xf32>
    %73 = arith.mulf %69, %72 : vector<16x128xf32>
    %74 = math.erf %73 : vector<16x128xf32>
    %cst_26 = arith.constant 1.000000e+00 : f32
    %75 = vector.broadcast %cst_26 : f32 to vector<16x128xf32>
    %76 = arith.addf %75, %74 : vector<16x128xf32>
    %77 = arith.mulf %71, %76 : vector<16x128xf32>
    %c0_27 = arith.constant 0 : index
    %c0_28 = arith.constant 0 : index
    %78 = vector.load %arg5[%c0_27, %c0_28] : memref<128x128xf32, #tpu.memory_space<vmem>>, vector<128x128xf32>
    %cst_29 = arith.constant dense<0.000000e+00> : vector<16x128xf32>
    %79 = tpu.matmul %77, %78, %cst_29 {dimension_numbers = #tpu.dot_dimension_numbers<[1], [0], [0], [1], [0, 0, 1, 1], [], []>, precision = #tpu.contract_precision<fp32>} : vector<16x128xf32>, vector<128x128xf32>, vector<16x128xf32> -> vector<16x128xf32>
    %80 = vector.broadcast %8 : vector<1x128xf32> to vector<16x128xf32>
    %81 = arith.addf %79, %80 : vector<16x128xf32>
    %cst_30 = arith.constant dense<0xFF800000> : vector<16xf32>
    %82 = vector.multi_reduction <maximumf>, %81, %cst_30 [1] : vector<16x128xf32> to vector<16xf32>
    %83 = vector.shape_cast %82 : vector<16xf32> to vector<16x1xf32>
    %84 = vector.broadcast %83 : vector<16x1xf32> to vector<16x128xf32>
    %85 = arith.subf %81, %84 : vector<16x128xf32>
    %86 = math.exp %85 : vector<16x128xf32>
    %cst_31 = arith.constant dense<0.000000e+00> : vector<16x1xf32>
    %87 = tpu.matmul %86, %9, %cst_31 {dimension_numbers = #tpu.dot_dimension_numbers<[1], [0], [0], [1], [0, 0, 1, 1], [], []>, precision = #tpu.contract_precision<fp32>} : vector<16x128xf32>, vector<128x1xf32>, vector<16x1xf32> -> vector<16x1xf32>
    %88 = tpu.reciprocal %87 {approx = true} : vector<16x1xf32> -> vector<16x1xf32>
    %89 = arith.mulf %87, %88 : vector<16x1xf32>
    %cst_32 = arith.constant 2.000000e+00 : f32
    %90 = vector.broadcast %cst_32 : f32 to vector<16x1xf32>
    %91 = arith.subf %90, %89 : vector<16x1xf32>
    %92 = arith.mulf %88, %91 : vector<16x1xf32>
    %93 = vector.broadcast %92 : vector<16x1xf32> to vector<16x128xf32>
    %94 = arith.mulf %86, %93 : vector<16x128xf32>
    %c0_33 = arith.constant 0 : index
    %c0_34 = arith.constant 0 : index
    %95 = vector.load %arg6[%c0_33, %c0_34] : memref<16x128xf32, #tpu.memory_space<vmem>>, vector<16x128xf32>
    tpu.vector_store %arg6[%c0_33, %c0_34], %94 {strides = array<i32>} : memref<16x128xf32, #tpu.memory_space<vmem>>, vector<16x128xf32>,
    return
  }
  func.func @transform_0(%arg0: i32) -> (i32, i32) {
    %c0_i32 = arith.constant 0 : i32
    %c0_i32_0 = arith.constant 0 : i32
    return %arg0, %c0_i32 : i32, i32
  }
  func.func @transform_1(%arg0: i32) -> (i32, i32) {
    %c0_i32 = arith.constant 0 : i32
    %c0_i32_0 = arith.constant 0 : i32
    %c0_i32_1 = arith.constant 0 : i32
    return %c0_i32, %c0_i32_0 : i32, i32
  }
  func.func @transform_2(%arg0: i32) -> (i32, i32) {
    %c0_i32 = arith.constant 0 : i32
    %c0_i32_0 = arith.constant 0 : i32
    %c0_i32_1 = arith.constant 0 : i32
    return %c0_i32, %c0_i32_0 : i32, i32
  }
  func.func @transform_3(%arg0: i32) -> (i32, i32) {
    %c0_i32 = arith.constant 0 : i32
    %c0_i32_0 = arith.constant 0 : i32
    %c0_i32_1 = arith.constant 0 : i32
    return %c0_i32, %c0_i32_0 : i32, i32
  }
  func.func @transform_4(%arg0: i32) -> (i32, i32) {
    %c0_i32 = arith.constant 0 : i32
    %c0_i32_0 = arith.constant 0 : i32
    %c0_i32_1 = arith.constant 0 : i32
    return %c0_i32, %c0_i32_0 : i32, i32
  }
  func.func @transform_5(%arg0: i32) -> (i32, i32) {
    %c0_i32 = arith.constant 0 : i32
    %c0_i32_0 = arith.constant 0 : i32
    return %arg0, %c0_i32 : i32, i32
  }
}

</mosaic_0001>

<llo_original>
// kernel: actor_forward.1
$region0: #{actor_forward.1}
  #allocation0 [shape = 'u32[]', space=smem, size = 0x4, offset = 0x4, fixed_abs, tag = 'smem constant byte address 0x4 - core index']
  #allocation1 [shape = 'u32[144,128]{1,0:T(1,128)}', space=vmem, size = 0x12000, scoped, tag = 'internal scratch']
  %s0 = inlined_call_operand.hbm [shape: f32[16,32], index: 0, kind: input, shape index: {}]
  %s1 = inlined_call_operand.hbm [shape: f32[32,128], index: 1, kind: input, shape index: {}]
  %s2 = inlined_call_operand.hbm [shape: f32[8,128], index: 2, kind: input, shape index: {}]
  %s3 = inlined_call_operand.hbm [shape: f32[128,128], index: 3, kind: input, shape index: {}]
  %s4 = inlined_call_operand.hbm [shape: f32[128,128], index: 4, kind: input, shape index: {}]
  %s5 = inlined_call_operand.vmem [shape: f32[16,128], index: 5, kind: output, shape index: {}]
  %s6 = sld [smem:[#allocation0]]
  $region50: #{actor_forward.1} parent=0
    _
  %s8 = ssub.s32 1, %s6
  %s9 = scalar_select 0, %s8, %s6
  $region1: #{actor_forward.1} parent=0
    #allocation2 [shape = 'u8[8192]{0}', space=vmem, size = 0x2000, scoped, tag = 'input window, operand 0, single buffered']
    #allocation3 [shape = 's32[1]{0}', space=sflag, size = 0x4, scoped, tag = 'scoped memory for actor_forward.1']
    #allocation4 [shape = 'u8[16384]{0}', space=vmem, size = 0x4000, scoped, tag = 'input window, operand 1, single buffered']
    #allocation5 [shape = 's32[1]{0}', space=sflag, size = 0x4, scoped, tag = 'scoped memory for actor_forward.1']
    #allocation6 [shape = 'u8[4096]{0}', space=vmem, size = 0x1000, scoped, tag = 'input window, operand 2, single buffered']
    #allocation7 [shape = 'u8[65536]{0}', space=vmem, size = 0x10000, scoped, tag = 'input window, operand 3, single buffered']
    #allocation8 [shape = 's32[1]{0}', space=sflag, size = 0x4, scoped, tag = 'scoped memory for actor_forward.1']
    #allocation9 [shape = 'u8[65536]{0}', space=vmem, size = 0x10000, scoped, tag = 'input window, operand 4, single buffered']
    %10 = vsyncpa [#allocation3], 0
    %11 = vsyncpa [#allocation5], 0
    %12 = vsyncpa [#allocation8], 0
    // Predicated region
    $region2: #{actor_forward.1} parent=1 // pred_check
      _
    $region3: #{actor_forward.1} parent=1 // pred_check_branch
      %14 = sbr.rel (0) target = $region5
    $region4: #{actor_forward.1} parent=1 // pred_region
      %s16 = ssub.s32 256, 256
      %17 = vsyncadd [#allocation3], %s16
      %s18 = sshll.u32 [#allocation2], 4
      %s19 = int_to_ptr.vmem [resolvable:$true] %s18
      %24 = dma.hbm_to_vmem [thread:$0]  %s0, 256, %s19, [#allocation3], 128, 128, 8
    $region5: #{actor_forward.1} parent=1 // pred_fallthru
      _
    // Predicated region
    $region6: #{actor_forward.1} parent=1 // pred_check
      _
    $region7: #{actor_forward.1} parent=1 // pred_check_branch
      %26 = sbr.rel (0) target = $region9
    $region8: #{actor_forward.1} parent=1 // pred_region
      %s28 = ssub.s32 512, 512
      %29 = vsyncadd [#allocation5], %s28
      %s30 = sshll.u32 [#allocation4], 4
      %s31 = int_to_ptr.vmem [resolvable:$true] %s30
      %36 = dma.hbm_to_vmem [thread:$0]  %s1, 512, %s31, [#allocation5], 128, 128, 8
    $region9: #{actor_forward.1} parent=1 // pred_fallthru
      _
    // Predicated region
    $region10: #{actor_forward.1} parent=1 // pred_check
      _
    $region11: #{actor_forward.1} parent=1 // pred_check_branch
      %38 = sbr.rel (0) target = $region13
    $region12: #{actor_forward.1} parent=1 // pred_region
      %s40 = ssub.s32 128, 128
      %41 = vsyncadd [#allocation5], %s40
      %s43 = sshll.u32 [#allocation6], 4
      %s44 = int_to_ptr.vmem [resolvable:$true] %s43
      %46 = dma.hbm_to_vmem [thread:$0]  %s2, 128, %s44, [#allocation5]
    $region13: #{actor_forward.1} parent=1 // pred_fallthru
      _
    // Predicated region
    $region14: #{actor_forward.1} parent=1 // pred_check
      _
    $region15: #{actor_forward.1} parent=1 // pred_check_branch
      %48 = sbr.rel (0) target = $region17
    $region16: #{actor_forward.1} parent=1 // pred_region
      %s50 = ssub.s32 2048, 2048
      %51 = vsyncadd [#allocation8], %s50
      %s52 = sshll.u32 [#allocation7], 4
      %s53 = int_to_ptr.vmem [resolvable:$true] %s52
      %58 = dma.hbm_to_vmem [thread:$0]  %s3, 2048, %s53, [#allocation8], 128, 128, 8
    $region17: #{actor_forward.1} parent=1 // pred_fallthru
      _
    // Predicated region
    $region18: #{actor_forward.1} parent=1 // pred_check
      _
    $region19: #{actor_forward.1} parent=1 // pred_check_branch
      %60 = sbr.rel (0) target = $region21
    $region20: #{actor_forward.1} parent=1 // pred_region
      %s62 = ssub.s32 2048, 2048
      %63 = vsyncadd [#allocation8], %s62
      %s64 = sshll.u32 [#allocation9], 4
      %s65 = int_to_ptr.vmem [resolvable:$true] %s64
      %70 = dma.hbm_to_vmem [thread:$0]  %s4, 2048, %s65, [#allocation8], 128, 128, 8
    $region21: #{actor_forward.1} parent=1 // pred_fallthru
      _
    // Predicated region
    $region22: #{actor_forward.1} parent=1 // pred_check
      _
    $region23: #{actor_forward.1} parent=1 // pred_check_branch
      %72 = sbr.rel (0) target = $region25
    $region24: #{actor_forward.1} parent=1 // pred_region
      %73 = dma.done [#allocation3], 256
    $region25: #{actor_forward.1} parent=1 // pred_fallthru
      _
    // Predicated region
    $region26: #{actor_forward.1} parent=1 // pred_check
      _
    $region27: #{actor_forward.1} parent=1 // pred_check_branch
      %75 = sbr.rel (0) target = $region29
    $region28: #{actor_forward.1} parent=1 // pred_region
      %76 = dma.done [#allocation5], 512
    $region29: #{actor_forward.1} parent=1 // pred_fallthru
      _
    // Predicated region
    $region30: #{actor_forward.1} parent=1 // pred_check
      _
    $region31: #{actor_forward.1} parent=1 // pred_check_branch
      %78 = sbr.rel (0) target = $region33
    $region32: #{actor_forward.1} parent=1 // pred_region
      %79 = dma.done [#allocation5], 128
    $region33: #{actor_forward.1} parent=1 // pred_fallthru
      _
    // Predicated region
    $region34: #{actor_forward.1} parent=1 // pred_check
      _
    $region35: #{actor_forward.1} parent=1 // pred_check_branch
      %81 = sbr.rel (0) target = $region37
    $region36: #{actor_forward.1} parent=1 // pred_region
      %82 = dma.done [#allocation8], 2048
    $region37: #{actor_forward.1} parent=1 // pred_fallthru
      _
    // Predicated region
    $region38: #{actor_forward.1} parent=1 // pred_check
      _
    $region39: #{actor_forward.1} parent=1 // pred_check_branch
      %84 = sbr.rel (0) target = $region41
    $region40: #{actor_forward.1} parent=1 // pred_region
      %85 = dma.done [#allocation8], 2048
    $region41: #{actor_forward.1} parent=1 // pred_fallthru
      _
    %v86 = vld [vmem:[#allocation2] sm:$0xff]
    %v87 = vld [vmem:[#allocation2 + $0x8] sm:$0xff]
    %v88 = vld [vmem:[#allocation6] sm:$0xff]
    %v89 = vld [vmem:[#allocation4] sm:$0xff]
    %v90 = vld [vmem:[#allocation4 + $0x8] sm:$0xff]
    %v91 = vld [vmem:[#allocation4 + $0x10] sm:$0xff]
    %v92 = vld [vmem:[#allocation4 + $0x18] sm:$0xff]
    %v93 = vlaneseq
    %v94 = vshrl.u32 %v93, 7
    %v95 = vsub.s32 0, %v94
    %v96 = vrot.slane %v88, %v95
    %vm97 = vcmask 261120
    %v99 = vsel %vm97, %v86, 0
    %v102 = vsel %vm97, %v87, 0
    %104 = vmatprep.subr.mxu0 0.0
    %v105 = vand.u32 %v89, 4294901760
    %106 = vmatpush1.msra.mxu0 %v105
    %107 = vmatprep.subr.mxu0 0.0
    %v108 = vand.u32 %v90, 4294901760
    %109 = vmatpush1.msra.mxu0 %v108
    %110 = vmatprep.subr.mxu0 0.0
    %v111 = vand.u32 %v91, 4294901760
    %112 = vmatpush1.msra.mxu0 %v111
    %113 = vmatprep.subr.mxu0 0.0
    %v114 = vand.u32 %v92, 4294901760
    %115 = vmatpush1.msra.mxu0 %v114
    %116 = vmatprep.subr.mxu0 0.0
    %117 = vmatpush1.msra.mxu0 0.0
    %118 = vmatprep.subr.mxu0 0.0
    %119 = vmatpush1.msra.mxu0 0.0
    %120 = vmatprep.subr.mxu0 0.0
    %121 = vmatpush1.msra.mxu0 0.0
    %122 = vmatprep.subr.mxu0 0.0
    %123 = vmatpush1.msra.mxu0 0.0
    %124 = vmatprep.subr.mxu0 0.0
    %125 = vmatpush1.msra.mxu0 0.0
    %126 = vmatprep.subr.mxu0 0.0
    %127 = vmatpush1.msra.mxu0 0.0
    %128 = vmatprep.subr.mxu0 0.0
    %129 = vmatpush1.msra.mxu0 0.0
    %130 = vmatprep.subr.mxu0 0.0
    %131 = vmatpush1.msra.mxu0 0.0
    %132 = vmatprep.subr.mxu0 0.0
    %133 = vmatpush1.msra.mxu0 0.0
    %134 = vmatprep.subr.mxu0 0.0
    %135 = vmatpush1.msra.mxu0 0.0
    %136 = vmatprep.subr.mxu0 0.0
    %137 = vmatpush1.msra.mxu0 0.0
    %138 = vmatprep.subr.mxu0 0.0
    %139 = vmatpush1.msra.mxu0 0.0
    %140 = vmatprep.subr.mxu0 0.0
    %141 = vmatpush1.msra.mxu0 0.0
    %142 = vmatprep.subr.mxu0 0.0
    %143 = vmatpush1.msra.mxu0 0.0
    %144 = vmatprep.subr.mxu0 0.0
    %145 = vmatpush1.msra.mxu0 0.0
    %146 = vmatprep.subr.mxu0 0.0
    %147 = vmatpush1.msra.mxu0 0.0
    %148 = vmatprep.subr.mxu0 0.0
    %149 = vmatpush1.msra.mxu0 0.0
    %150 = vmatprep.subr.mxu0 0.0
    %151 = vmatpush1.msra.mxu0 0.0
    %152 = vmatprep.subr.mxu0 0.0
    %153 = vmatpush1.msra.mxu0 0.0
    %154 = vmatprep.subr.mxu0 0.0
    %155 = vmatpush1.msra.mxu0 0.0
    %156 = vmatprep.subr.mxu0 0.0
    %157 = vmatpush1.msra.mxu0 0.0
    %158 = vmatprep.subr.mxu0 0.0
    %159 = vmatpush1.msra.mxu0 0.0
    %160 = vmatprep.subr.mxu0 0.0
    %161 = vmatpush1.msra.mxu0 0.0
    %162 = vmatprep.subr.mxu0 0.0
    %163 = vmatpush1.msra.mxu0 0.0
    %164 = vmatprep.subr.mxu0 0.0
    %165 = vmatpush1.msra.mxu0 0.0
    %166 = vmatprep.subr.mxu0 0.0
    %167 = vmatpush1.msra.mxu0 0.0
    %168 = vmatprep.subr.mxu0 0.0
    %169 = vmatpush1.msra.mxu0 0.0
    %170 = vmatprep.subr.mxu0 0.0
    %171 = vmatpush1.msra.mxu0 0.0
    %172 = vmatprep.mubr.f32.mxu0 0.0
    %v173 = vand.u32 %v99, 4294901760
    %v174 = vsub.f32 %v99, %v173
    %v175 = vand.u32 %v174, 4294901760
    %v176 = vsub.f32 %v174, %v175
    %v177 = vand.u32 %v176, 4294901760
    %178 = vmatmul.mubr.f32.gmra.mrb[0].mxu0 %v177
    %v179 = vpop.f32.mrb[0].mxu0
    %v180 = vadd.f32 %v96, %v179
    %v181 = vpop.f32.mrb[0].mxu0
    %182 = vmatprep.mubr.f32.mxu0 0.0
    %v183 = vand.u32 %v102, 4294901760
    %v184 = vsub.f32 %v102, %v183
    %v185 = vand.u32 %v184, 4294901760
    %v186 = vsub.f32 %v184, %v185
    %v187 = vand.u32 %v186, 4294901760
    %188 = vmatmul.mubr.f32.gmra.mrb[0].mxu0 %v187
    %v189 = vpop.f32.mrb[0].mxu0
    %v190 = vadd.f32 %v96, %v189
    %v191 = vpop.f32.mrb[0].mxu0
    %192 = vdwg.mxu0
    %193 = vmatprep.subr.mxu0 0.0
    %v194 = vand.u32 %v89, 4294901760
    %v195 = vsub.f32 %v89, %v194
    %v196 = vand.u32 %v195, 4294901760
    %v197 = vsub.f32 %v195, %v196
    %v198 = vand.u32 %v197, 4294901760
    %199 = vmatpush1.msra.mxu0 %v198
    %200 = vmatprep.subr.mxu0 0.0
    %v201 = vand.u32 %v90, 4294901760
    %v202 = vsub.f32 %v90, %v201
    %v203 = vand.u32 %v202, 4294901760
    %v204 = vsub.f32 %v202, %v203
    %v205 = vand.u32 %v204, 4294901760
    %206 = vmatpush1.msra.mxu0 %v205
    %207 = vmatprep.subr.mxu0 0.0
    %v208 = vand.u32 %v91, 4294901760
    %v209 = vsub.f32 %v91, %v208
    %v210 = vand.u32 %v209, 4294901760
    %v211 = vsub.f32 %v209, %v210
    %v212 = vand.u32 %v211, 4294901760
    %213 = vmatpush1.msra.mxu0 %v212
    %214 = vmatprep.subr.mxu0 0.0
    %v215 = vand.u32 %v92, 4294901760
    %v216 = vsub.f32 %v92, %v215
    %v217 = vand.u32 %v216, 4294901760
    %v218 = vsub.f32 %v216, %v217
    %v219 = vand.u32 %v218, 4294901760
    %220 = vmatpush1.msra.mxu0 %v219
    %221 = vmatprep.subr.mxu0 0.0
    %222 = vmatpush1.msra.mxu0 0.0
    %223 = vmatprep.subr.mxu0 0.0
    %224 = vmatpush1.msra.mxu0 0.0
    %225 = vmatprep.subr.mxu0 0.0
    %226 = vmatpush1.msra.mxu0 0.0
    %227 = vmatprep.subr.mxu0 0.0
    %228 = vmatpush1.msra.mxu0 0.0
    %229 = vmatprep.subr.mxu0 0.0
    %230 = vmatpush1.msra.mxu0 0.0
    %231 = vmatprep.subr.mxu0 0.0
    %232 = vmatpush1.msra.mxu0 0.0
    %233 = vmatprep.subr.mxu0 0.0
    %234 = vmatpush1.msra.mxu0 0.0
    %235 = vmatprep.subr.mxu0 0.0
    %236 = vmatpush1.msra.mxu0 0.0
    %237 = vmatprep.subr.mxu0 0.0
    %238 = vmatpush1.msra.mxu0 0.0
    %239 = vmatprep.subr.mxu0 0.0
    %240 = vmatpush1.msra.mxu0 0.0
    %241 = vmatprep.subr.mxu0 0.0
    %242 = vmatpush1.msra.mxu0 0.0
    %243 = vmatprep.subr.mxu0 0.0
    %244 = vmatpush1.msra.mxu0 0.0
    %245 = vmatprep.subr.mxu0 0.0
    %246 = vmatpush1.msra.mxu0 0.0
    %247 = vmatprep.subr.mxu0 0.0
    %248 = vmatpush1.msra.mxu0 0.0
    %249 = vmatprep.subr.mxu0 0.0
    %250 = vmatpush1.msra.mxu0 0.0
    %251 = vmatprep.subr.mxu0 0.0
    %252 = vmatpush1.msra.mxu0 0.0
    %253 = vmatprep.subr.mxu0 0.0
    %254 = vmatpush1.msra.mxu0 0.0
    %255 = vmatprep.subr.mxu0 0.0
    %256 = vmatpush1.msra.mxu0 0.0
    %257 = vmatprep.subr.mxu0 0.0
    %258 = vmatpush1.msra.mxu0 0.0
    %259 = vmatprep.subr.mxu0 0.0
    %260 = vmatpush1.msra.mxu0 0.0
    %261 = vmatprep.subr.mxu0 0.0
    %262 = vmatpush1.msra.mxu0 0.0
    %263 = vmatprep.subr.mxu0 0.0
    %264 = vmatpush1.msra.mxu0 0.0
    %265 = vmatprep.subr.mxu0 0.0
    %266 = vmatpush1.msra.mxu0 0.0
    %267 = vmatprep.subr.mxu0 0.0
    %268 = vmatpush1.msra.mxu0 0.0
    %269 = vmatprep.subr.mxu0 0.0
    %270 = vmatpush1.msra.mxu0 0.0
    %271 = vmatprep.subr.mxu0 0.0
    %272 = vmatpush1.msra.mxu0 0.0
    %273 = vmatprep.subr.mxu0 0.0
    %274 = vmatpush1.msra.mxu0 0.0
    %275 = vmatprep.subr.mxu0 0.0
    %276 = vmatpush1.msra.mxu0 0.0
    %277 = vmatprep.mubr.f32.mxu0 0.0
    %v278 = vand.u32 %v99, 4294901760
    %279 = vmatmul.mubr.f32.gmra.mrb[0].mxu0 %v278
    %v280 = vpop.f32.mrb[0].mxu0
    %v281 = vadd.f32 %v180, %v280
    %v282 = vpop.f32.mrb[0].mxu0
    %283 = vmatprep.mubr.f32.mxu0 0.0
    %v284 = vand.u32 %v102, 4294901760
    %285 = vmatmul.mubr.f32.gmra.mrb[0].mxu0 %v284
    %v286 = vpop.f32.mrb[0].mxu0
    %v287 = vadd.f32 %v190, %v286
    %v288 = vpop.f32.mrb[0].mxu0
    %289 = vdwg.mxu0
    %290 = vmatprep.subr.mxu0 0.0
    %v291 = vand.u32 %v89, 4294901760
    %v292 = vsub.f32 %v89, %v291
    %293 = vmatpush1.msra.mxu0 %v292
    %294 = vmatprep.subr.mxu0 0.0
    %v295 = vand.u32 %v90, 4294901760
    %v296 = vsub.f32 %v90, %v295
    %297 = vmatpush1.msra.mxu0 %v296
    %298 = vmatprep.subr.mxu0 0.0
    %v299 = vand.u32 %v91, 4294901760
    %v300 = vsub.f32 %v91, %v299
    %301 = vmatpush1.msra.mxu0 %v300
    %302 = vmatprep.subr.mxu0 0.0
    %v303 = vand.u32 %v92, 4294901760
    %v304 = vsub.f32 %v92, %v303
    %305 = vmatpush1.msra.mxu0 %v304
    %306 = vmatprep.subr.mxu0 0.0
    %307 = vmatpush1.msra.mxu0 0.0
    %308 = vmatprep.subr.mxu0 0.0
    %309 = vmatpush1.msra.mxu0 0.0
    %310 = vmatprep.subr.mxu0 0.0
    %311 = vmatpush1.msra.mxu0 0.0
    %312 = vmatprep.subr.mxu0 0.0
    %313 = vmatpush1.msra.mxu0 0.0
    %314 = vmatprep.subr.mxu0 0.0
    %315 = vmatpush1.msra.mxu0 0.0
    %316 = vmatprep.subr.mxu0 0.0
    %317 = vmatpush1.msra.mxu0 0.0
    %318 = vmatprep.subr.mxu0 0.0
    %319 = vmatpush1.msra.mxu0 0.0
    %320 = vmatprep.subr.mxu0 0.0
    %321 = vmatpush1.msra.mxu0 0.0
    %322 = vmatprep.subr.mxu0 0.0
    %323 = vmatpush1.msra.mxu0 0.0
    %324 = vmatprep.subr.mxu0 0.0
    %325 = vmatpush1.msra.mxu0 0.0
    %326 = vmatprep.subr.mxu0 0.0
    %327 = vmatpush1.msra.mxu0 0.0
    %328 = vmatprep.subr.mxu0 0.0
    %329 = vmatpush1.msra.mxu0 0.0
    %330 = vmatprep.subr.mxu0 0.0
    %331 = vmatpush1.msra.mxu0 0.0
    %332 = vmatprep.subr.mxu0 0.0
    %333 = vmatpush1.msra.mxu0 0.0
    %334 = vmatprep.subr.mxu0 0.0
    %335 = vmatpush1.msra.mxu0 0.0
    %336 = vmatprep.subr.mxu0 0.0
    %337 = vmatpush1.msra.mxu0 0.0
    %338 = vmatprep.subr.mxu0 0.0
    %339 = vmatpush1.msra.mxu0 0.0
    %340 = vmatprep.subr.mxu0 0.0
    %341 = vmatpush1.msra.mxu0 0.0
    %342 = vmatprep.subr.mxu0 0.0
    %343 = vmatpush1.msra.mxu0 0.0
    %344 = vmatprep.subr.mxu0 0.0
    %345 = vmatpush1.msra.mxu0 0.0
    %346 = vmatprep.subr.mxu0 0.0
    %347 = vmatpush1.msra.mxu0 0.0
    %348 = vmatprep.subr.mxu0 0.0
    %349 = vmatpush1.msra.mxu0 0.0
    %350 = vmatprep.subr.mxu0 0.0
    %351 = vmatpush1.msra.mxu0 0.0
    %352 = vmatprep.subr.mxu0 0.0
    %353 = vmatpush1.msra.mxu0 0.0
    %354 = vmatprep.subr.mxu0 0.0
    %355 = vmatpush1.msra.mxu0 0.0
    %356 = vmatprep.subr.mxu0 0.0
    %357 = vmatpush1.msra.mxu0 0.0
    %358 = vmatprep.subr.mxu0 0.0
    %359 = vmatpush1.msra.mxu0 0.0
    %360 = vmatprep.subr.mxu0 0.0
    %361 = vmatpush1.msra.mxu0 0.0
    %362 = vmatprep.mubr.f32.mxu0 0.0
    %v363 = vand.u32 %v99, 4294901760
    %v364 = vsub.f32 %v99, %v363
    %365 = vmatmul.mubr.f32.gmra.mrb[0].mxu0 %v364
    %v366 = vpop.f32.mrb[0].mxu0
    %v367 = vadd.f32 %v281, %v366
    %v368 = vpop.f32.mrb[0].mxu0
    %369 = vmatprep.mubr.f32.mxu0 0.0
    %v370 = vand.u32 %v102, 4294901760
    %v371 = vsub.f32 %v102, %v370
    %372 = vmatmul.mubr.f32.gmra.mrb[0].mxu0 %v371
    %v373 = vpop.f32.mrb[0].mxu0
    %v374 = vadd.f32 %v287, %v373
    %v375 = vpop.f32.mrb[0].mxu0
    %376 = vdwg.mxu0
    %377 = vmatprep.subr.mxu0 0.0
    %v378 = vand.u32 %v89, 4294901760
    %379 = vmatpush1.msra.mxu0 %v378
    %380 = vmatprep.subr.mxu0 0.0
    %v381 = vand.u32 %v90, 4294901760
    %382 = vmatpush1.msra.mxu0 %v381
    %383 = vmatprep.subr.mxu0 0.0
    %v384 = vand.u32 %v91, 4294901760
    %385 = vmatpush1.msra.mxu0 %v384
    %386 = vmatprep.subr.mxu0 0.0
    %v387 = vand.u32 %v92, 4294901760
    %388 = vmatpush1.msra.mxu0 %v387
    %389 = vmatprep.subr.mxu0 0.0
    %390 = vmatpush1.msra.mxu0 0.0
    %391 = vmatprep.subr.mxu0 0.0
    %392 = vmatpush1.msra.mxu0 0.0
    %393 = vmatprep.subr.mxu0 0.0
    %394 = vmatpush1.msra.mxu0 0.0
    %395 = vmatprep.subr.mxu0 0.0
    %396 = vmatpush1.msra.mxu0 0.0
    %397 = vmatprep.subr.mxu0 0.0
    %398 = vmatpush1.msra.mxu0 0.0
    %399 = vmatprep.subr.mxu0 0.0
    %400 = vmatpush1.msra.mxu0 0.0
    %401 = vmatprep.subr.mxu0 0.0
    %402 = vmatpush1.msra.mxu0 0.0
    %403 = vmatprep.subr.mxu0 0.0
    %404 = vmatpush1.msra.mxu0 0.0
    %405 = vmatprep.subr.mxu0 0.0
    %406 = vmatpush1.msra.mxu0 0.0
    %407 = vmatprep.subr.mxu0 0.0
    %408 = vmatpush1.msra.mxu0 0.0
    %409 = vmatprep.subr.mxu0 0.0
    %410 = vmatpush1.msra.mxu0 0.0
    %411 = vmatprep.subr.mxu0 0.0
    %412 = vmatpush1.msra.mxu0 0.0
    %413 = vmatprep.subr.mxu0 0.0
    %414 = vmatpush1.msra.mxu0 0.0
    %415 = vmatprep.subr.mxu0 0.0
    %416 = vmatpush1.msra.mxu0 0.0
    %417 = vmatprep.subr.mxu0 0.0
    %418 = vmatpush1.msra.mxu0 0.0
    %419 = vmatprep.subr.mxu0 0.0
    %420 = vmatpush1.msra.mxu0 0.0
    %421 = vmatprep.subr.mxu0 0.0
    %422 = vmatpush1.msra.mxu0 0.0
    %423 = vmatprep.subr.mxu0 0.0
    %424 = vmatpush1.msra.mxu0 0.0
    %425 = vmatprep.subr.mxu0 0.0
    %426 = vmatpush1.msra.mxu0 0.0
    %427 = vmatprep.subr.mxu0 0.0
    %428 = vmatpush1.msra.mxu0 0.0
    %429 = vmatprep.subr.mxu0 0.0
    %430 = vmatpush1.msra.mxu0 0.0
    %431 = vmatprep.subr.mxu0 0.0
    %432 = vmatpush1.msra.mxu0 0.0
    %433 = vmatprep.subr.mxu0 0.0
    %434 = vmatpush1.msra.mxu0 0.0
    %435 = vmatprep.subr.mxu0 0.0
    %436 = vmatpush1.msra.mxu0 0.0
    %437 = vmatprep.subr.mxu0 0.0
    %438 = vmatpush1.msra.mxu0 0.0
    %439 = vmatprep.subr.mxu0 0.0
    %440 = vmatpush1.msra.mxu0 0.0
    %441 = vmatprep.subr.mxu0 0.0
    %442 = vmatpush1.msra.mxu0 0.0
    %443 = vmatprep.subr.mxu0 0.0
    %444 = vmatpush1.msra.mxu0 0.0
    %445 = vmatprep.mubr.f32.mxu0 0.0
    %v446 = vand.u32 %v99, 4294901760
    %v447 = vsub.f32 %v99, %v446
    %v448 = vand.u32 %v447, 4294901760
    %449 = vmatmul.mubr.f32.gmra.mrb[0].mxu0 %v448
    %v450 = vpop.f32.mrb[0].mxu0
    %v451 = vadd.f32 %v367, %v450
    %v452 = vpop.f32.mrb[0].mxu0
    %453 = vmatprep.mubr.f32.mxu0 0.0
    %v454 = vand.u32 %v102, 4294901760
    %v455 = vsub.f32 %v102, %v454
    %v456 = vand.u32 %v455, 4294901760
    %457 = vmatmul.mubr.f32.gmra.mrb[0].mxu0 %v456
    %v458 = vpop.f32.mrb[0].mxu0
    %v459 = vadd.f32 %v374, %v458
    %v460 = vpop.f32.mrb[0].mxu0
    %461 = vdwg.mxu0
    %462 = vmatprep.subr.mxu0 0.0
    %v463 = vand.u32 %v89, 4294901760
    %v464 = vsub.f32 %v89, %v463
    %v465 = vand.u32 %v464, 4294901760
    %466 = vmatpush1.msra.mxu0 %v465
    %467 = vmatprep.subr.mxu0 0.0
    %v468 = vand.u32 %v90, 4294901760
    %v469 = vsub.f32 %v90, %v468
    %v470 = vand.u32 %v469, 4294901760
    %471 = vmatpush1.msra.mxu0 %v470
    %472 = vmatprep.subr.mxu0 0.0
    %v473 = vand.u32 %v91, 4294901760
    %v474 = vsub.f32 %v91, %v473
    %v475 = vand.u32 %v474, 4294901760
    %476 = vmatpush1.msra.mxu0 %v475
    %477 = vmatprep.subr.mxu0 0.0
    %v478 = vand.u32 %v92, 4294901760
    %v479 = vsub.f32 %v92, %v478
    %v480 = vand.u32 %v479, 4294901760
    %481 = vmatpush1.msra.mxu0 %v480
    %482 = vmatprep.subr.mxu0 0.0
    %483 = vmatpush1.msra.mxu0 0.0
    %484 = vmatprep.subr.mxu0 0.0
    %485 = vmatpush1.msra.mxu0 0.0
    %486 = vmatprep.subr.mxu0 0.0
    %487 = vmatpush1.msra.mxu0 0.0
    %488 = vmatprep.subr.mxu0 0.0
    %489 = vmatpush1.msra.mxu0 0.0
    %490 = vmatprep.subr.mxu0 0.0
    %491 = vmatpush1.msra.mxu0 0.0
    %492 = vmatprep.subr.mxu0 0.0
    %493 = vmatpush1.msra.mxu0 0.0
    %494 = vmatprep.subr.mxu0 0.0
    %495 = vmatpush1.msra.mxu0 0.0
    %496 = vmatprep.subr.mxu0 0.0
    %497 = vmatpush1.msra.mxu0 0.0
    %498 = vmatprep.subr.mxu0 0.0
    %499 = vmatpush1.msra.mxu0 0.0
    %500 = vmatprep.subr.mxu0 0.0
    %501 = vmatpush1.msra.mxu0 0.0
    %502 = vmatprep.subr.mxu0 0.0
    %503 = vmatpush1.msra.mxu0 0.0
    %504 = vmatprep.subr.mxu0 0.0
    %505 = vmatpush1.msra.mxu0 0.0
    %506 = vmatprep.subr.mxu0 0.0
    %507 = vmatpush1.msra.mxu0 0.0
    %508 = vmatprep.subr.mxu0 0.0
    %509 = vmatpush1.msra.mxu0 0.0
    %510 = vmatprep.subr.mxu0 0.0
    %511 = vmatpush1.msra.mxu0 0.0
    %512 = vmatprep.subr.mxu0 0.0
    %513 = vmatpush1.msra.mxu0 0.0
    %514 = vmatprep.subr.mxu0 0.0
    %515 = vmatpush1.msra.mxu0 0.0
    %516 = vmatprep.subr.mxu0 0.0
    %517 = vmatpush1.msra.mxu0 0.0
    %518 = vmatprep.subr.mxu0 0.0
    %519 = vmatpush1.msra.mxu0 0.0
    %520 = vmatprep.subr.mxu0 0.0
    %521 = vmatpush1.msra.mxu0 0.0
    %522 = vmatprep.subr.mxu0 0.0
    %523 = vmatpush1.msra.mxu0 0.0
    %524 = vmatprep.subr.mxu0 0.0
    %525 = vmatpush1.msra.mxu0 0.0
    %526 = vmatprep.subr.mxu0 0.0
    %527 = vmatpush1.msra.mxu0 0.0
    %528 = vmatprep.subr.mxu0 0.0
    %529 = vmatpush1.msra.mxu0 0.0
    %530 = vmatprep.subr.mxu0 0.0
    %531 = vmatpush1.msra.mxu0 0.0
    %532 = vmatprep.subr.mxu0 0.0
    %533 = vmatpush1.msra.mxu0 0.0
    %534 = vmatprep.subr.mxu0 0.0
    %535 = vmatpush1.msra.mxu0 0.0
    %536 = vmatprep.subr.mxu0 0.0
    %537 = vmatpush1.msra.mxu0 0.0
    %538 = vmatprep.mubr.f32.mxu0 0.0
    %v539 = vand.u32 %v99, 4294901760
    %540 = vmatmul.mubr.f32.gmra.mrb[0].mxu0 %v539
    %v541 = vpop.f32.mrb[0].mxu0
    %v542 = vadd.f32 %v451, %v541
    %v543 = vpop.f32.mrb[0].mxu0
    %544 = vmatprep.mubr.f32.mxu0 0.0
    %v545 = vand.u32 %v102, 4294901760
    %546 = vmatmul.mubr.f32.gmra.mrb[0].mxu0 %v545
    %v547 = vpop.f32.mrb[0].mxu0
    %v548 = vadd.f32 %v459, %v547
    %v549 = vpop.f32.mrb[0].mxu0
    %550 = vdwg.mxu0
    %551 = vmatprep.subr.mxu0 0.0
    %v552 = vand.u32 %v89, 4294901760
    %553 = vmatpush1.msra.mxu0 %v552
    %554 = vmatprep.subr.mxu0 0.0
    %v555 = vand.u32 %v90, 4294901760
    %556 = vmatpush1.msra.mxu0 %v555
    %557 = vmatprep.subr.mxu0 0.0
    %v558 = vand.u32 %v91, 4294901760
    %559 = vmatpush1.msra.mxu0 %v558
    %560 = vmatprep.subr.mxu0 0.0
    %v561 = vand.u32 %v92, 4294901760
    %562 = vmatpush1.msra.mxu0 %v561
    %563 = vmatprep.subr.mxu0 0.0
    %564 = vmatpush1.msra.mxu0 0.0
    %565 = vmatprep.subr.mxu0 0.0
    %566 = vmatpush1.msra.mxu0 0.0
    %567 = vmatprep.subr.mxu0 0.0
    %568 = vmatpush1.msra.mxu0 0.0
    %569 = vmatprep.subr.mxu0 0.0
    %570 = vmatpush1.msra.mxu0 0.0
    %571 = vmatprep.subr.mxu0 0.0
    %572 = vmatpush1.msra.mxu0 0.0
    %573 = vmatprep.subr.mxu0 0.0
    %574 = vmatpush1.msra.mxu0 0.0
    %575 = vmatprep.subr.mxu0 0.0
    %576 = vmatpush1.msra.mxu0 0.0
    %577 = vmatprep.subr.mxu0 0.0
    %578 = vmatpush1.msra.mxu0 0.0
    %579 = vmatprep.subr.mxu0 0.0
    %580 = vmatpush1.msra.mxu0 0.0
    %581 = vmatprep.subr.mxu0 0.0
    %582 = vmatpush1.msra.mxu0 0.0
    %583 = vmatprep.subr.mxu0 0.0
    %584 = vmatpush1.msra.mxu0 0.0
    %585 = vmatprep.subr.mxu0 0.0
    %586 = vmatpush1.msra.mxu0 0.0
    %587 = vmatprep.subr.mxu0 0.0
    %588 = vmatpush1.msra.mxu0 0.0
    %589 = vmatprep.subr.mxu0 0.0
    %590 = vmatpush1.msra.mxu0 0.0
    %591 = vmatprep.subr.mxu0 0.0
    %592 = vmatpush1.msra.mxu0 0.0
    %593 = vmatprep.subr.mxu0 0.0
    %594 = vmatpush1.msra.mxu0 0.0
    %595 = vmatprep.subr.mxu0 0.0
    %596 = vmatpush1.msra.mxu0 0.0
    %597 = vmatprep.subr.mxu0 0.0
    %598 = vmatpush1.msra.mxu0 0.0
    %599 = vmatprep.subr.mxu0 0.0
    %600 = vmatpush1.msra.mxu0 0.0
    %601 = vmatprep.subr.mxu0 0.0
    %602 = vmatpush1.msra.mxu0 0.0
    %603 = vmatprep.subr.mxu0 0.0
    %604 = vmatpush1.msra.mxu0 0.0
    %605 = vmatprep.subr.mxu0 0.0
    %606 = vmatpush1.msra.mxu0 0.0
    %607 = vmatprep.subr.mxu0 0.0
    %608 = vmatpush1.msra.mxu0 0.0
    %609 = vmatprep.subr.mxu0 0.0
    %610 = vmatpush1.msra.mxu0 0.0
    %611 = vmatprep.subr.mxu0 0.0
    %612 = vmatpush1.msra.mxu0 0.0
    %613 = vmatprep.subr.mxu0 0.0
    %614 = vmatpush1.msra.mxu0 0.0
    %615 = vmatprep.subr.mxu0 0.0
    %616 = vmatpush1.msra.mxu0 0.0
    %617 = vmatprep.subr.mxu0 0.0
    %618 = vmatpush1.msra.mxu0 0.0
    %619 = vmatprep.mubr.f32.mxu0 0.0
    %v620 = vand.u32 %v99, 4294901760
    %621 = vmatmul.mubr.f32.gmra.mrb[0].mxu0 %v620
    %v622 = vpop.f32.mrb[0].mxu0
    %v623 = vadd.f32 %v542, %v622
    %v624 = vpop.f32.mrb[0].mxu0
    %625 = vmatprep.mubr.f32.mxu0 0.0
    %v626 = vand.u32 %v102, 4294901760
    %627 = vmatmul.mubr.f32.gmra.mrb[0].mxu0 %v626
    %v628 = vpop.f32.mrb[0].mxu0
    %v629 = vadd.f32 %v548, %v628
    %v630 = vpop.f32.mrb[0].mxu0
    %631 = vdwg.mxu0
    %632 = vmatprep.subr.mxu0 0.0
    %633 = vmatpush1.msra.mxu0 1.0
    %634 = vmatprep.subr.mxu0 0.0
    %635 = vmatpush1.msra.mxu0 1.0
    %636 = vmatprep.subr.mxu0 0.0
    %637 = vmatpush1.msra.mxu0 1.0
    %638 = vmatprep.subr.mxu0 0.0
    %639 = vmatpush1.msra.mxu0 1.0
    %640 = vmatprep.subr.mxu0 0.0
    %641 = vmatpush1.msra.mxu0 1.0
    %642 = vmatprep.subr.mxu0 0.0
    %643 = vmatpush1.msra.mxu0 1.0
    %644 = vmatprep.subr.mxu0 0.0
    %645 = vmatpush1.msra.mxu0 1.0
    %646 = vmatprep.subr.mxu0 0.0
    %647 = vmatpush1.msra.mxu0 1.0
    %648 = vmatprep.subr.mxu0 0.0
    %649 = vmatpush1.msra.mxu0 1.0
    %650 = vmatprep.subr.mxu0 0.0
    %651 = vmatpush1.msra.mxu0 1.0
    %652 = vmatprep.subr.mxu0 0.0
    %653 = vmatpush1.msra.mxu0 1.0
    %654 = vmatprep.subr.mxu0 0.0
    %655 = vmatpush1.msra.mxu0 1.0
    %656 = vmatprep.subr.mxu0 0.0
    %657 = vmatpush1.msra.mxu0 1.0
    %658 = vmatprep.subr.mxu0 0.0
    %659 = vmatpush1.msra.mxu0 1.0
    %660 = vmatprep.subr.mxu0 0.0
    %661 = vmatpush1.msra.mxu0 1.0
    %662 = vmatprep.subr.mxu0 0.0
    %663 = vmatpush1.msra.mxu0 1.0
    %664 = vmatprep.subr.mxu0 0.0
    %665 = vmatpush1.msra.mxu0 0.0
    %666 = vmatprep.subr.mxu0 0.0
    %667 = vmatpush1.msra.mxu0 0.0
    %668 = vmatprep.subr.mxu0 0.0
    %669 = vmatpush1.msra.mxu0 0.0
    %670 = vmatprep.subr.mxu0 0.0
    %671 = vmatpush1.msra.mxu0 0.0
    %672 = vmatprep.subr.mxu0 0.0
    %673 = vmatpush1.msra.mxu0 0.0
    %674 = vmatprep.subr.mxu0 0.0
    %675 = vmatpush1.msra.mxu0 0.0
    %676 = vmatprep.subr.mxu0 0.0
    %677 = vmatpush1.msra.mxu0 0.0
    %678 = vmatprep.subr.mxu0 0.0
    %679 = vmatpush1.msra.mxu0 0.0
    %680 = vmatprep.subr.mxu0 0.0
    %681 = vmatpush1.msra.mxu0 0.0
    %682 = vmatprep.subr.mxu0 0.0
    %683 = vmatpush1.msra.mxu0 0.0
    %684 = vmatprep.subr.mxu0 0.0
    %685 = vmatpush1.msra.mxu0 0.0
    %686 = vmatprep.subr.mxu0 0.0
    %687 = vmatpush1.msra.mxu0 0.0
    %688 = vmatprep.subr.mxu0 0.0
    %689 = vmatpush1.msra.mxu0 0.0
    %690 = vmatprep.subr.mxu0 0.0
    %691 = vmatpush1.msra.mxu0 0.0
    %692 = vmatprep.subr.mxu0 0.0
    %693 = vmatpush1.msra.mxu0 0.0
    %694 = vmatprep.subr.mxu0 0.0
    %695 = vmatpush1.msra.mxu0 0.0
    %696 = vmatprep.mubr.f32.mxu0 0.0
    %v697 = vand.u32 %v623, 4294901760
    %v698 = vsub.f32 %v623, %v697
    %v699 = vand.u32 %v698, 4294901760
    %v700 = vsub.f32 %v698, %v699
    %v701 = vand.u32 %v700, 4294901760
    %702 = vmatmul.mubr.f32.gmra.mrb[0].mxu0 %v701
    %v703 = vpop.f32.mrb[0].mxu0
    %v704 = vadd.f32 0.0, %v703
    %v705 = vpop.f32.mrb[0].mxu0
    %706 = vmatprep.mubr.f32.mxu0 0.0
    %v707 = vand.u32 %v629, 4294901760
    %v708 = vsub.f32 %v629, %v707
    %v709 = vand.u32 %v708, 4294901760
    %v710 = vsub.f32 %v708, %v709
    %v711 = vand.u32 %v710, 4294901760
    %712 = vmatmul.mubr.f32.gmra.mrb[0].mxu0 %v711
    %v713 = vpop.f32.mrb[0].mxu0
    %v714 = vadd.f32 0.0, %v713
    %v715 = vpop.f32.mrb[0].mxu0
    %716 = vdwg.mxu0
    %717 = vmatprep.subr.mxu0 0.0
    %718 = vmatpush1.msra.mxu0 0.0
    %719 = vmatprep.subr.mxu0 0.0
    %720 = vmatpush1.msra.mxu0 0.0
    %721 = vmatprep.subr.mxu0 0.0
    %722 = vmatpush1.msra.mxu0 0.0
    %723 = vmatprep.subr.mxu0 0.0
    %724 = vmatpush1.msra.mxu0 0.0
    %725 = vmatprep.subr.mxu0 0.0
    %726 = vmatpush1.msra.mxu0 0.0
    %727 = vmatprep.subr.mxu0 0.0
    %728 = vmatpush1.msra.mxu0 0.0
    %729 = vmatprep.subr.mxu0 0.0
    %730 = vmatpush1.msra.mxu0 0.0
    %731 = vmatprep.subr.mxu0 0.0
    %732 = vmatpush1.msra.mxu0 0.0
    %733 = vmatprep.subr.mxu0 0.0
    %734 = vmatpush1.msra.mxu0 0.0
    %735 = vmatprep.subr.mxu0 0.0
    %736 = vmatpush1.msra.mxu0 0.0
    %737 = vmatprep.subr.mxu0 0.0
    %738 = vmatpush1.msra.mxu0 0.0
    %739 = vmatprep.subr.mxu0 0.0
    %740 = vmatpush1.msra.mxu0 0.0
    %741 = vmatprep.subr.mxu0 0.0
    %742 = vmatpush1.msra.mxu0 0.0
    %743 = vmatprep.subr.mxu0 0.0
    %744 = vmatpush1.msra.mxu0 0.0
    %745 = vmatprep.subr.mxu0 0.0
    %746 = vmatpush1.msra.mxu0 0.0
    %747 = vmatprep.subr.mxu0 0.0
    %748 = vmatpush1.msra.mxu0 0.0
    %749 = vmatprep.subr.mxu0 0.0
    %750 = vmatpush1.msra.mxu0 0.0
    %751 = vmatprep.subr.mxu0 0.0
    %752 = vmatpush1.msra.mxu0 0.0
    %753 = vmatprep.subr.mxu0 0.0
    %754 = vmatpush1.msra.mxu0 0.0
    %755 = vmatprep.subr.mxu0 0.0
    %756 = vmatpush1.msra.mxu0 0.0
    %757 = vmatprep.subr.mxu0 0.0
    %758 = vmatpush1.msra.mxu0 0.0
    %759 = vmatprep.subr.mxu0 0.0
    %760 = vmatpush1.msra.mxu0 0.0
    %761 = vmatprep.subr.mxu0 0.0
    %762 = vmatpush1.msra.mxu0 0.0
    %763 = vmatprep.subr.mxu0 0.0
    %764 = vmatpush1.msra.mxu0 0.0
    %765 = vmatprep.subr.mxu0 0.0
    %766 = vmatpush1.msra.mxu0 0.0
    %767 = vmatprep.subr.mxu0 0.0
    %768 = vmatpush1.msra.mxu0 0.0
    %769 = vmatprep.subr.mxu0 0.0
    %770 = vmatpush1.msra.mxu0 0.0
    %771 = vmatprep.subr.mxu0 0.0
    %772 = vmatpush1.msra.mxu0 0.0
    %773 = vmatprep.subr.mxu0 0.0
    %774 = vmatpush1.msra.mxu0 0.0
    %775 = vmatprep.subr.mxu0 0.0
    %776 = vmatpush1.msra.mxu0 0.0
    %777 = vmatprep.subr.mxu0 0.0
    %778 = vmatpush1.msra.mxu0 0.0
    %779 = vmatprep.subr.mxu0 0.0
    %780 = vmatpush1.msra.mxu0 0.0
    %781 = vmatprep.mubr.f32.mxu0 0.0
    %v782 = vand.u32 %v623, 4294901760
    %783 = vmatmul.mubr.f32.gmra.mrb[0].mxu0 %v782
    %v784 = vpop.f32.mrb[0].mxu0
    %v785 = vadd.f32 %v704, %v784
    %v786 = vpop.f32.mrb[0].mxu0
    %787 = vmatprep.mubr.f32.mxu0 0.0
    %v788 = vand.u32 %v629, 4294901760
    %789 = vmatmul.mubr.f32.gmra.mrb[0].mxu0 %v788
    %v790 = vpop.f32.mrb[0].mxu0
    %v791 = vadd.f32 %v714, %v790
    %v792 = vpop.f32.mrb[0].mxu0
    %793 = vdwg.mxu0
    %794 = vmatprep.subr.mxu0 0.0
    %795 = vmatpush1.msra.mxu0 0.0
    %796 = vmatprep.subr.mxu0 0.0
    %797 = vmatpush1.msra.mxu0 0.0
    %798 = vmatprep.subr.mxu0 0.0
    %799 = vmatpush1.msra.mxu0 0.0
    %800 = vmatprep.subr.mxu0 0.0
    %801 = vmatpush1.msra.mxu0 0.0
    %802 = vmatprep.subr.mxu0 0.0
    %803 = vmatpush1.msra.mxu0 0.0
    %804 = vmatprep.subr.mxu0 0.0
    %805 = vmatpush1.msra.mxu0 0.0
    %806 = vmatprep.subr.mxu0 0.0
    %807 = vmatpush1.msra.mxu0 0.0
    %808 = vmatprep.subr.mxu0 0.0
    %809 = vmatpush1.msra.mxu0 0.0
    %810 = vmatprep.subr.mxu0 0.0
    %811 = vmatpush1.msra.mxu0 0.0
    %812 = vmatprep.subr.mxu0 0.0
    %813 = vmatpush1.msra.mxu0 0.0
    %814 = vmatprep.subr.mxu0 0.0
    %815 = vmatpush1.msra.mxu0 0.0
    %816 = vmatprep.subr.mxu0 0.0
    %817 = vmatpush1.msra.mxu0 0.0
    %818 = vmatprep.subr.mxu0 0.0
    %819 = vmatpush1.msra.mxu0 0.0
    %820 = vmatprep.subr.mxu0 0.0
    %821 = vmatpush1.msra.mxu0 0.0
    %822 = vmatprep.subr.mxu0 0.0
    %823 = vmatpush1.msra.mxu0 0.0
    %824 = vmatprep.subr.mxu0 0.0
    %825 = vmatpush1.msra.mxu0 0.0
    %826 = vmatprep.subr.mxu0 0.0
    %827 = vmatpush1.msra.mxu0 0.0
    %828 = vmatprep.subr.mxu0 0.0
    %829 = vmatpush1.msra.mxu0 0.0
    %830 = vmatprep.subr.mxu0 0.0
    %831 = vmatpush1.msra.mxu0 0.0
    %832 = vmatprep.subr.mxu0 0.0
    %833 = vmatpush1.msra.mxu0 0.0
    %834 = vmatprep.subr.mxu0 0.0
    %835 = vmatpush1.msra.mxu0 0.0
    %836 = vmatprep.subr.mxu0 0.0
    %837 = vmatpush1.msra.mxu0 0.0
    %838 = vmatprep.subr.mxu0 0.0
    %839 = vmatpush1.msra.mxu0 0.0
    %840 = vmatprep.subr.mxu0 0.0
    %841 = vmatpush1.msra.mxu0 0.0
    %842 = vmatprep.subr.mxu0 0.0
    %843 = vmatpush1.msra.mxu0 0.0
    %844 = vmatprep.subr.mxu0 0.0
    %845 = vmatpush1.msra.mxu0 0.0
    %846 = vmatprep.subr.mxu0 0.0
    %847 = vmatpush1.msra.mxu0 0.0
    %848 = vmatprep.subr.mxu0 0.0
    %849 = vmatpush1.msra.mxu0 0.0
    %850 = vmatprep.subr.mxu0 0.0
    %851 = vmatpush1.msra.mxu0 0.0
    %852 = vmatprep.subr.mxu0 0.0
    %853 = vmatpush1.msra.mxu0 0.0
    %854 = vmatprep.subr.mxu0 0.0
    %855 = vmatpush1.msra.mxu0 0.0
    %856 = vmatprep.subr.mxu0 0.0
    %857 = vmatpush1.msra.mxu0 0.0
    %858 = vmatprep.mubr.f32.mxu0 0.0
    %v859 = vand.u32 %v623, 4294901760
    %v860 = vsub.f32 %v623, %v859
    %861 = vmatmul.mubr.f32.gmra.mrb[0].mxu0 %v860
    %v862 = vpop.f32.mrb[0].mxu0
    %v863 = vadd.f32 %v785, %v862
    %v864 = vpop.f32.mrb[0].mxu0
    %865 = vmatprep.mubr.f32.mxu0 0.0
    %v866 = vand.u32 %v629, 4294901760
    %v867 = vsub.f32 %v629, %v866
    %868 = vmatmul.mubr.f32.gmra.mrb[0].mxu0 %v867
    %v869 = vpop.f32.mrb[0].mxu0
    %v870 = vadd.f32 %v791, %v869
    %v871 = vpop.f32.mrb[0].mxu0
    %872 = vdwg.mxu0
    %873 = vmatprep.subr.mxu0 0.0
    %874 = vmatpush1.msra.mxu0 1.0
    %875 = vmatprep.subr.mxu0 0.0
    %876 = vmatpush1.msra.mxu0 1.0
    %877 = vmatprep.subr.mxu0 0.0
    %878 = vmatpush1.msra.mxu0 1.0
    %879 = vmatprep.subr.mxu0 0.0
    %880 = vmatpush1.msra.mxu0 1.0
    %881 = vmatprep.subr.mxu0 0.0
    %882 = vmatpush1.msra.mxu0 1.0
    %883 = vmatprep.subr.mxu0 0.0
    %884 = vmatpush1.msra.mxu0 1.0
    %885 = vmatprep.subr.mxu0 0.0
    %886 = vmatpush1.msra.mxu0 1.0
    %887 = vmatprep.subr.mxu0 0.0
    %888 = vmatpush1.msra.mxu0 1.0
    %889 = vmatprep.subr.mxu0 0.0
    %890 = vmatpush1.msra.mxu0 1.0
    %891 = vmatprep.subr.mxu0 0.0
    %892 = vmatpush1.msra.mxu0 1.0
    %893 = vmatprep.subr.mxu0 0.0
    %894 = vmatpush1.msra.mxu0 1.0
    %895 = vmatprep.subr.mxu0 0.0
    %896 = vmatpush1.msra.mxu0 1.0
    %897 = vmatprep.subr.mxu0 0.0
    %898 = vmatpush1.msra.mxu0 1.0
    %899 = vmatprep.subr.mxu0 0.0
    %900 = vmatpush1.msra.mxu0 1.0
    %901 = vmatprep.subr.mxu0 0.0
    %902 = vmatpush1.msra.mxu0 1.0
    %903 = vmatprep.subr.mxu0 0.0
    %904 = vmatpush1.msra.mxu0 1.0
    %905 = vmatprep.subr.mxu0 0.0
    %906 = vmatpush1.msra.mxu0 0.0
    %907 = vmatprep.subr.mxu0 0.0
    %908 = vmatpush1.msra.mxu0 0.0
    %909 = vmatprep.subr.mxu0 0.0
    %910 = vmatpush1.msra.mxu0 0.0
    %911 = vmatprep.subr.mxu0 0.0
    %912 = vmatpush1.msra.mxu0 0.0
    %913 = vmatprep.subr.mxu0 0.0
    %914 = vmatpush1.msra.mxu0 0.0
    %915 = vmatprep.subr.mxu0 0.0
    %916 = vmatpush1.msra.mxu0 0.0
    %917 = vmatprep.subr.mxu0 0.0
    %918 = vmatpush1.msra.mxu0 0.0
    %919 = vmatprep.subr.mxu0 0.0
    %920 = vmatpush1.msra.mxu0 0.0
    %921 = vmatprep.subr.mxu0 0.0
    %922 = vmatpush1.msra.mxu0 0.0
    %923 = vmatprep.subr.mxu0 0.0
    %924 = vmatpush1.msra.mxu0 0.0
    %925 = vmatprep.subr.mxu0 0.0
    %926 = vmatpush1.msra.mxu0 0.0
    %927 = vmatprep.subr.mxu0 0.0
    %928 = vmatpush1.msra.mxu0 0.0
    %929 = vmatprep.subr.mxu0 0.0
    %930 = vmatpush1.msra.mxu0 0.0
    %931 = vmatprep.subr.mxu0 0.0
    %932 = vmatpush1.msra.mxu0 0.0
    %933 = vmatprep.subr.mxu0 0.0
    %934 = vmatpush1.msra.mxu0 0.0
    %935 = vmatprep.subr.mxu0 0.0
    %936 = vmatpush1.msra.mxu0 0.0
    %937 = vmatprep.mubr.f32.mxu0 0.0
    %v938 = vand.u32 %v623, 4294901760
    %v939 = vsub.f32 %v623, %v938
    %v940 = vand.u32 %v939, 4294901760
    %941 = vmatmul.mubr.f32.gmra.mrb[0].mxu0 %v940
    %v942 = vpop.f32.mrb[0].mxu0
    %v943 = vadd.f32 %v863, %v942
    %v944 = vpop.f32.mrb[0].mxu0
    %945 = vmatprep.mubr.f32.mxu0 0.0
    %v946 = vand.u32 %v629, 4294901760
    %v947 = vsub.f32 %v629, %v946
    %v948 = vand.u32 %v947, 4294901760
    %949 = vmatmul.mubr.f32.gmra.mrb[0].mxu0 %v948
    %v950 = vpop.f32.mrb[0].mxu0
    %v951 = vadd.f32 %v870, %v950
    %v952 = vpop.f32.mrb[0].mxu0
    %953 = vdwg.mxu0
    %954 = vmatprep.subr.mxu0 0.0
    %955 = vmatpush1.msra.mxu0 0.0
    %956 = vmatprep.subr.mxu0 0.0
    %957 = vmatpush1.msra.mxu0 0.0
    %958 = vmatprep.subr.mxu0 0.0
    %959 = vmatpush1.msra.mxu0 0.0
    %960 = vmatprep.subr.mxu0 0.0
    %961 = vmatpush1.msra.mxu0 0.0
    %962 = vmatprep.subr.mxu0 0.0
    %963 = vmatpush1.msra.mxu0 0.0
    %964 = vmatprep.subr.mxu0 0.0
    %965 = vmatpush1.msra.mxu0 0.0
    %966 = vmatprep.subr.mxu0 0.0
    %967 = vmatpush1.msra.mxu0 0.0
    %968 = vmatprep.subr.mxu0 0.0
    %969 = vmatpush1.msra.mxu0 0.0
    %970 = vmatprep.subr.mxu0 0.0
    %971 = vmatpush1.msra.mxu0 0.0
    %972 = vmatprep.subr.mxu0 0.0
    %973 = vmatpush1.msra.mxu0 0.0
    %974 = vmatprep.subr.mxu0 0.0
    %975 = vmatpush1.msra.mxu0 0.0
    %976 = vmatprep.subr.mxu0 0.0
    %977 = vmatpush1.msra.mxu0 0.0
    %978 = vmatprep.subr.mxu0 0.0
    %979 = vmatpush1.msra.mxu0 0.0
    %980 = vmatprep.subr.mxu0 0.0
    %981 = vmatpush1.msra.mxu0 0.0
    %982 = vmatprep.subr.mxu0 0.0
    %983 = vmatpush1.msra.mxu0 0.0
    %984 = vmatprep.subr.mxu0 0.0
    %985 = vmatpush1.msra.mxu0 0.0
    %986 = vmatprep.subr.mxu0 0.0
    %987 = vmatpush1.msra.mxu0 0.0
    %988 = vmatprep.subr.mxu0 0.0
    %989 = vmatpush1.msra.mxu0 0.0
    %990 = vmatprep.subr.mxu0 0.0
    %991 = vmatpush1.msra.mxu0 0.0
    %992 = vmatprep.subr.mxu0 0.0
    %993 = vmatpush1.msra.mxu0 0.0
    %994 = vmatprep.subr.mxu0 0.0
    %995 = vmatpush1.msra.mxu0 0.0
    %996 = vmatprep.subr.mxu0 0.0
    %997 = vmatpush1.msra.mxu0 0.0
    %998 = vmatprep.subr.mxu0 0.0
    %999 = vmatpush1.msra.mxu0 0.0
    %1000 = vmatprep.subr.mxu0 0.0
    %1001 = vmatpush1.msra.mxu0 0.0
    %1002 = vmatprep.subr.mxu0 0.0
    %1003 = vmatpush1.msra.mxu0 0.0
    %1004 = vmatprep.subr.mxu0 0.0
    %1005 = vmatpush1.msra.mxu0 0.0
    %1006 = vmatprep.subr.mxu0 0.0
    %1007 = vmatpush1.msra.mxu0 0.0
    %1008 = vmatprep.subr.mxu0 0.0
    %1009 = vmatpush1.msra.mxu0 0.0
    %1010 = vmatprep.subr.mxu0 0.0
    %1011 = vmatpush1.msra.mxu0 0.0
    %1012 = vmatprep.subr.mxu0 0.0
    %1013 = vmatpush1.msra.mxu0 0.0
    %1014 = vmatprep.subr.mxu0 0.0
    %1015 = vmatpush1.msra.mxu0 0.0
    %1016 = vmatprep.subr.mxu0 0.0
    %1017 = vmatpush1.msra.mxu0 0.0
    %1018 = vmatprep.mubr.f32.mxu0 0.0
    %v1019 = vand.u32 %v623, 4294901760
    %1020 = vmatmul.mubr.f32.gmra.mrb[0].mxu0 %v1019
    %v1021 = vpop.f32.mrb[0].mxu0
    %v1022 = vadd.f32 %v943, %v1021
    %v1023 = vpop.f32.mrb[0].mxu0
    %1024 = vmatprep.mubr.f32.mxu0 0.0
    %v1025 = vand.u32 %v629, 4294901760
    %1026 = vmatmul.mubr.f32.gmra.mrb[0].mxu0 %v1025
    %v1027 = vpop.f32.mrb[0].mxu0
    %v1028 = vadd.f32 %v951, %v1027
    %v1029 = vpop.f32.mrb[0].mxu0
    %1030 = vdwg.mxu0
    %1031 = vmatprep.subr.mxu0 0.0
    %1032 = vmatpush1.msra.mxu0 1.0
    %1033 = vmatprep.subr.mxu0 0.0
    %1034 = vmatpush1.msra.mxu0 1.0
    %1035 = vmatprep.subr.mxu0 0.0
    %1036 = vmatpush1.msra.mxu0 1.0
    %1037 = vmatprep.subr.mxu0 0.0
    %1038 = vmatpush1.msra.mxu0 1.0
    %1039 = vmatprep.subr.mxu0 0.0
    %1040 = vmatpush1.msra.mxu0 1.0
    %1041 = vmatprep.subr.mxu0 0.0
    %1042 = vmatpush1.msra.mxu0 1.0
    %1043 = vmatprep.subr.mxu0 0.0
    %1044 = vmatpush1.msra.mxu0 1.0
    %1045 = vmatprep.subr.mxu0 0.0
    %1046 = vmatpush1.msra.mxu0 1.0
    %1047 = vmatprep.subr.mxu0 0.0
    %1048 = vmatpush1.msra.mxu0 1.0
    %1049 = vmatprep.subr.mxu0 0.0
    %1050 = vmatpush1.msra.mxu0 1.0
    %1051 = vmatprep.subr.mxu0 0.0
    %1052 = vmatpush1.msra.mxu0 1.0
    %1053 = vmatprep.subr.mxu0 0.0
    %1054 = vmatpush1.msra.mxu0 1.0
    %1055 = vmatprep.subr.mxu0 0.0
    %1056 = vmatpush1.msra.mxu0 1.0
    %1057 = vmatprep.subr.mxu0 0.0
    %1058 = vmatpush1.msra.mxu0 1.0
    %1059 = vmatprep.subr.mxu0 0.0
    %1060 = vmatpush1.msra.mxu0 1.0
    %1061 = vmatprep.subr.mxu0 0.0
    %1062 = vmatpush1.msra.mxu0 1.0
    %1063 = vmatprep.subr.mxu0 0.0
    %1064 = vmatpush1.msra.mxu0 0.0
    %1065 = vmatprep.subr.mxu0 0.0
    %1066 = vmatpush1.msra.mxu0 0.0
    %1067 = vmatprep.subr.mxu0 0.0
    %1068 = vmatpush1.msra.mxu0 0.0
    %1069 = vmatprep.subr.mxu0 0.0
    %1070 = vmatpush1.msra.mxu0 0.0
    %1071 = vmatprep.subr.mxu0 0.0
    %1072 = vmatpush1.msra.mxu0 0.0
    %1073 = vmatprep.subr.mxu0 0.0
    %1074 = vmatpush1.msra.mxu0 0.0
    %1075 = vmatprep.subr.mxu0 0.0
    %1076 = vmatpush1.msra.mxu0 0.0
    %1077 = vmatprep.subr.mxu0 0.0
    %1078 = vmatpush1.msra.mxu0 0.0
    %1079 = vmatprep.subr.mxu0 0.0
    %1080 = vmatpush1.msra.mxu0 0.0
    %1081 = vmatprep.subr.mxu0 0.0
    %1082 = vmatpush1.msra.mxu0 0.0
    %1083 = vmatprep.subr.mxu0 0.0
    %1084 = vmatpush1.msra.mxu0 0.0
    %1085 = vmatprep.subr.mxu0 0.0
    %1086 = vmatpush1.msra.mxu0 0.0
    %1087 = vmatprep.subr.mxu0 0.0
    %1088 = vmatpush1.msra.mxu0 0.0
    %1089 = vmatprep.subr.mxu0 0.0
    %1090 = vmatpush1.msra.mxu0 0.0
    %1091 = vmatprep.subr.mxu0 0.0
    %1092 = vmatpush1.msra.mxu0 0.0
    %1093 = vmatprep.subr.mxu0 0.0
    %1094 = vmatpush1.msra.mxu0 0.0
    %1095 = vmatprep.mubr.f32.mxu0 0.0
    %v1096 = vand.u32 %v623, 4294901760
    %1097 = vmatmul.mubr.f32.gmra.mrb[0].mxu0 %v1096
    %v1098 = vpop.f32.mrb[0].mxu0
    %v1099 = vadd.f32 %v1022, %v1098
    %v1100 = vpop.f32.mrb[0].mxu0
    %1101 = vmatprep.mubr.f32.mxu0 0.0
    %v1102 = vand.u32 %v629, 4294901760
    %1103 = vmatmul.mubr.f32.gmra.mrb[0].mxu0 %v1102
    %v1104 = vpop.f32.mrb[0].mxu0
    %v1105 = vadd.f32 %v1028, %v1104
    %v1106 = vpop.f32.mrb[0].mxu0
    %1107 = vdwg.mxu0
    %v1108 = vmul.f32 %v1099, 0.015625
    %v1109 = vmul.f32 %v1105, 0.015625
    %v1110 = vmul.f32 %v623, %v623
    %v1111 = vmul.f32 %v629, %v629
    %1112 = vmatprep.subr.mxu0 0.0
    %1113 = vmatpush1.msra.mxu0 1.0
    %1114 = vmatprep.subr.mxu0 0.0
    %1115 = vmatpush1.msra.mxu0 1.0
    %1116 = vmatprep.subr.mxu0 0.0
    %1117 = vmatpush1.msra.mxu0 1.0
    %1118 = vmatprep.subr.mxu0 0.0
    %1119 = vmatpush1.msra.mxu0 1.0
    %1120 = vmatprep.subr.mxu0 0.0
    %1121 = vmatpush1.msra.mxu0 1.0
    %1122 = vmatprep.subr.mxu0 0.0
    %1123 = vmatpush1.msra.mxu0 1.0
    %1124 = vmatprep.subr.mxu0 0.0
    %1125 = vmatpush1.msra.mxu0 1.0
    %1126 = vmatprep.subr.mxu0 0.0
    %1127 = vmatpush1.msra.mxu0 1.0
    %1128 = vmatprep.subr.mxu0 0.0
    %1129 = vmatpush1.msra.mxu0 1.0
    %1130 = vmatprep.subr.mxu0 0.0
    %1131 = vmatpush1.msra.mxu0 1.0
    %1132 = vmatprep.subr.mxu0 0.0
    %1133 = vmatpush1.msra.mxu0 1.0
    %1134 = vmatprep.subr.mxu0 0.0
    %1135 = vmatpush1.msra.mxu0 1.0
    %1136 = vmatprep.subr.mxu0 0.0
    %1137 = vmatpush1.msra.mxu0 1.0
    %1138 = vmatprep.subr.mxu0 0.0
    %1139 = vmatpush1.msra.mxu0 1.0
    %1140 = vmatprep.subr.mxu0 0.0
    %1141 = vmatpush1.msra.mxu0 1.0
    %1142 = vmatprep.subr.mxu0 0.0
    %1143 = vmatpush1.msra.mxu0 1.0
    %1144 = vmatprep.subr.mxu0 0.0
    %1145 = vmatpush1.msra.mxu0 0.0
    %1146 = vmatprep.subr.mxu0 0.0
    %1147 = vmatpush1.msra.mxu0 0.0
    %1148 = vmatprep.subr.mxu0 0.0
    %1149 = vmatpush1.msra.mxu0 0.0
    %1150 = vmatprep.subr.mxu0 0.0
    %1151 = vmatpush1.msra.mxu0 0.0
    %1152 = vmatprep.subr.mxu0 0.0
    %1153 = vmatpush1.msra.mxu0 0.0
    %1154 = vmatprep.subr.mxu0 0.0
    %1155 = vmatpush1.msra.mxu0 0.0
    %1156 = vmatprep.subr.mxu0 0.0
    %1157 = vmatpush1.msra.mxu0 0.0
    %1158 = vmatprep.subr.mxu0 0.0
    %1159 = vmatpush1.msra.mxu0 0.0
    %1160 = vmatprep.subr.mxu0 0.0
    %1161 = vmatpush1.msra.mxu0 0.0
    %1162 = vmatprep.subr.mxu0 0.0
    %1163 = vmatpush1.msra.mxu0 0.0
    %1164 = vmatprep.subr.mxu0 0.0
    %1165 = vmatpush1.msra.mxu0 0.0
    %1166 = vmatprep.subr.mxu0 0.0
    %1167 = vmatpush1.msra.mxu0 0.0
    %1168 = vmatprep.subr.mxu0 0.0
    %1169 = vmatpush1.msra.mxu0 0.0
    %1170 = vmatprep.subr.mxu0 0.0
    %1171 = vmatpush1.msra.mxu0 0.0
    %1172 = vmatprep.subr.mxu0 0.0
    %1173 = vmatpush1.msra.mxu0 0.0
    %1174 = vmatprep.subr.mxu0 0.0
    %1175 = vmatpush1.msra.mxu0 0.0
    %1176 = vmatprep.mubr.f32.mxu0 0.0
    %v1177 = vand.u32 %v1110, 4294901760
    %v1178 = vsub.f32 %v1110, %v1177
    %v1179 = vand.u32 %v1178, 4294901760
    %v1180 = vsub.f32 %v1178, %v1179
    %v1181 = vand.u32 %v1180, 4294901760
    %1182 = vmatmul.mubr.f32.gmra.mrb[0].mxu0 %v1181
    %v1183 = vpop.f32.mrb[0].mxu0
    %v1184 = vadd.f32 0.0, %v1183
    %v1185 = vpop.f32.mrb[0].mxu0
    %1186 = vmatprep.mubr.f32.mxu0 0.0
    %v1187 = vand.u32 %v1111, 4294901760
    %v1188 = vsub.f32 %v1111, %v1187
    %v1189 = vand.u32 %v1188, 4294901760
    %v1190 = vsub.f32 %v1188, %v1189
    %v1191 = vand.u32 %v1190, 4294901760
    %1192 = vmatmul.mubr.f32.gmra.mrb[0].mxu0 %v1191
    %v1193 = vpop.f32.mrb[0].mxu0
    %v1194 = vadd.f32 0.0, %v1193
    %v1195 = vpop.f32.mrb[0].mxu0
    %1196 = vdwg.mxu0
    %1197 = vmatprep.subr.mxu0 0.0
    %1198 = vmatpush1.msra.mxu0 0.0
    %1199 = vmatprep.subr.mxu0 0.0
    %1200 = vmatpush1.msra.mxu0 0.0
    %1201 = vmatprep.subr.mxu0 0.0
    %1202 = vmatpush1.msra.mxu0 0.0
    %1203 = vmatprep.subr.mxu0 0.0
    %1204 = vmatpush1.msra.mxu0 0.0
    %1205 = vmatprep.subr.mxu0 0.0
    %1206 = vmatpush1.msra.mxu0 0.0
    %1207 = vmatprep.subr.mxu0 0.0
    %1208 = vmatpush1.msra.mxu0 0.0
    %1209 = vmatprep.subr.mxu0 0.0
    %1210 = vmatpush1.msra.mxu0 0.0
    %1211 = vmatprep.subr.mxu0 0.0
    %1212 = vmatpush1.msra.mxu0 0.0
    %1213 = vmatprep.subr.mxu0 0.0
    %1214 = vmatpush1.msra.mxu0 0.0
    %1215 = vmatprep.subr.mxu0 0.0
    %1216 = vmatpush1.msra.mxu0 0.0
    %1217 = vmatprep.subr.mxu0 0.0
    %1218 = vmatpush1.msra.mxu0 0.0
    %1219 = vmatprep.subr.mxu0 0.0
    %1220 = vmatpush1.msra.mxu0 0.0
    %1221 = vmatprep.subr.mxu0 0.0
    %1222 = vmatpush1.msra.mxu0 0.0
    %1223 = vmatprep.subr.mxu0 0.0
    %1224 = vmatpush1.msra.mxu0 0.0
    %1225 = vmatprep.subr.mxu0 0.0
    %1226 = vmatpush1.msra.mxu0 0.0
    %1227 = vmatprep.subr.mxu0 0.0
    %1228 = vmatpush1.msra.mxu0 0.0
    %1229 = vmatprep.subr.mxu0 0.0
    %1230 = vmatpush1.msra.mxu0 0.0
    %1231 = vmatprep.subr.mxu0 0.0
    %1232 = vmatpush1.msra.mxu0 0.0
    %1233 = vmatprep.subr.mxu0 0.0
    %1234 = vmatpush1.msra.mxu0 0.0
    %1235 = vmatprep.subr.mxu0 0.0
    %1236 = vmatpush1.msra.mxu0 0.0
    %1237 = vmatprep.subr.mxu0 0.0
    %1238 = vmatpush1.msra.mxu0 0.0
    %1239 = vmatprep.subr.mxu0 0.0
    %1240 = vmatpush1.msra.mxu0 0.0
    %1241 = vmatprep.subr.mxu0 0.0
    %1242 = vmatpush1.msra.mxu0 0.0
    %1243 = vmatprep.subr.mxu0 0.0
    %1244 = vmatpush1.msra.mxu0 0.0
    %1245 = vmatprep.subr.mxu0 0.0
    %1246 = vmatpush1.msra.mxu0 0.0
    %1247 = vmatprep.subr.mxu0 0.0
    %1248 = vmatpush1.msra.mxu0 0.0
    %1249 = vmatprep.subr.mxu0 0.0
    %1250 = vmatpush1.msra.mxu0 0.0
    %1251 = vmatprep.subr.mxu0 0.0
    %1252 = vmatpush1.msra.mxu0 0.0
    %1253 = vmatprep.subr.mxu0 0.0
    %1254 = vmatpush1.msra.mxu0 0.0
    %1255 = vmatprep.subr.mxu0 0.0
    %1256 = vmatpush1.msra.mxu0 0.0
    %1257 = vmatprep.subr.mxu0 0.0
    %1258 = vmatpush1.msra.mxu0 0.0
    %1259 = vmatprep.subr.mxu0 0.0
    %1260 = vmatpush1.msra.mxu0 0.0
    %1261 = vmatprep.mubr.f32.mxu0 0.0
    %v1262 = vand.u32 %v1110, 4294901760
    %1263 = vmatmul.mubr.f32.gmra.mrb[0].mxu0 %v1262
    %v1264 = vpop.f32.mrb[0].mxu0
    %v1265 = vadd.f32 %v1184, %v1264
    %v1266 = vpop.f32.mrb[0].mxu0
    %1267 = vmatprep.mubr.f32.mxu0 0.0
    %v1268 = vand.u32 %v1111, 4294901760
    %1269 = vmatmul.mubr.f32.gmra.mrb[0].mxu0 %v1268
    %v1270 = vpop.f32.mrb[0].mxu0
    %v1271 = vadd.f32 %v1194, %v1270
    %v1272 = vpop.f32.mrb[0].mxu0
    %1273 = vdwg.mxu0
    %1274 = vmatprep.subr.mxu0 0.0
    %1275 = vmatpush1.msra.mxu0 0.0
    %1276 = vmatprep.subr.mxu0 0.0
    %1277 = vmatpush1.msra.mxu0 0.0
    %1278 = vmatprep.subr.mxu0 0.0
    %1279 = vmatpush1.msra.mxu0 0.0
    %1280 = vmatprep.subr.mxu0 0.0
    %1281 = vmatpush1.msra.mxu0 0.0
    %1282 = vmatprep.subr.mxu0 0.0
    %1283 = vmatpush1.msra.mxu0 0.0
    %1284 = vmatprep.subr.mxu0 0.0
    %1285 = vmatpush1.msra.mxu0 0.0
    %1286 = vmatprep.subr.mxu0 0.0
    %1287 = vmatpush1.msra.mxu0 0.0
    %1288 = vmatprep.subr.mxu0 0.0
    %1289 = vmatpush1.msra.mxu0 0.0
    %1290 = vmatprep.subr.mxu0 0.0
    %1291 = vmatpush1.msra.mxu0 0.0
    %1292 = vmatprep.subr.mxu0 0.0
    %1293 = vmatpush1.msra.mxu0 0.0
    %1294 = vmatprep.subr.mxu0 0.0
    %1295 = vmatpush1.msra.mxu0 0.0
    %1296 = vmatprep.subr.mxu0 0.0
    %1297 = vmatpush1.msra.mxu0 0.0
    %1298 = vmatprep.subr.mxu0 0.0
    %1299 = vmatpush1.msra.mxu0 0.0
    %1300 = vmatprep.subr.mxu0 0.0
    %1301 = vmatpush1.msra.mxu0 0.0
    %1302 = vmatprep.subr.mxu0 0.0
    %1303 = vmatpush1.msra.mxu0 0.0
    %1304 = vmatprep.subr.mxu0 0.0
    %1305 = vmatpush1.msra.mxu0 0.0
    %1306 = vmatprep.subr.mxu0 0.0
    %1307 = vmatpush1.msra.mxu0 0.0
    %1308 = vmatprep.subr.mxu0 0.0
    %1309 = vmatpush1.msra.mxu0 0.0
    %1310 = vmatprep.subr.mxu0 0.0
    %1311 = vmatpush1.msra.mxu0 0.0
    %1312 = vmatprep.subr.mxu0 0.0
    %1313 = vmatpush1.msra.mxu0 0.0
    %1314 = vmatprep.subr.mxu0 0.0
    %1315 = vmatpush1.msra.mxu0 0.0
    %1316 = vmatprep.subr.mxu0 0.0
    %1317 = vmatpush1.msra.mxu0 0.0
    %1318 = vmatprep.subr.mxu0 0.0
    %1319 = vmatpush1.msra.mxu0 0.0
    %1320 = vmatprep.subr.mxu0 0.0
    %1321 = vmatpush1.msra.mxu0 0.0
    %1322 = vmatprep.subr.mxu0 0.0
    %1323 = vmatpush1.msra.mxu0 0.0
    %1324 = vmatprep.subr.mxu0 0.0
    %1325 = vmatpush1.msra.mxu0 0.0
    %1326 = vmatprep.subr.mxu0 0.0
    %1327 = vmatpush1.msra.mxu0 0.0
    %1328 = vmatprep.subr.mxu0 0.0
    %1329 = vmatpush1.msra.mxu0 0.0
    %1330 = vmatprep.subr.mxu0 0.0
    %1331 = vmatpush1.msra.mxu0 0.0
    %1332 = vmatprep.subr.mxu0 0.0
    %1333 = vmatpush1.msra.mxu0 0.0
    %1334 = vmatprep.subr.mxu0 0.0
    %1335 = vmatpush1.msra.mxu0 0.0
    %1336 = vmatprep.subr.mxu0 0.0
    %1337 = vmatpush1.msra.mxu0 0.0
    %1338 = vmatprep.mubr.f32.mxu0 0.0
    %v1339 = vand.u32 %v1110, 4294901760
    %v1340 = vsub.f32 %v1110, %v1339
    %1341 = vmatmul.mubr.f32.gmra.mrb[0].mxu0 %v1340
    %v1342 = vpop.f32.mrb[0].mxu0
    %v1343 = vadd.f32 %v1265, %v1342
    %v1344 = vpop.f32.mrb[0].mxu0
    %1345 = vmatprep.mubr.f32.mxu0 0.0
    %v1346 = vand.u32 %v1111, 4294901760
    %v1347 = vsub.f32 %v1111, %v1346
    %1348 = vmatmul.mubr.f32.gmra.mrb[0].mxu0 %v1347
    %v1349 = vpop.f32.mrb[0].mxu0
    %v1350 = vadd.f32 %v1271, %v1349
    %v1351 = vpop.f32.mrb[0].mxu0
    %1352 = vdwg.mxu0
    %1353 = vmatprep.subr.mxu0 0.0
    %1354 = vmatpush1.msra.mxu0 1.0
    %1355 = vmatprep.subr.mxu0 0.0
    %1356 = vmatpush1.msra.mxu0 1.0
    %1357 = vmatprep.subr.mxu0 0.0
    %1358 = vmatpush1.msra.mxu0 1.0
    %1359 = vmatprep.subr.mxu0 0.0
    %1360 = vmatpush1.msra.mxu0 1.0
    %1361 = vmatprep.subr.mxu0 0.0
    %1362 = vmatpush1.msra.mxu0 1.0
    %1363 = vmatprep.subr.mxu0 0.0
    %1364 = vmatpush1.msra.mxu0 1.0
    %1365 = vmatprep.subr.mxu0 0.0
    %1366 = vmatpush1.msra.mxu0 1.0
    %1367 = vmatprep.subr.mxu0 0.0
    %1368 = vmatpush1.msra.mxu0 1.0
    %1369 = vmatprep.subr.mxu0 0.0
    %1370 = vmatpush1.msra.mxu0 1.0
    %1371 = vmatprep.subr.mxu0 0.0
    %1372 = vmatpush1.msra.mxu0 1.0
    %1373 = vmatprep.subr.mxu0 0.0
    %1374 = vmatpush1.msra.mxu0 1.0
    %1375 = vmatprep.subr.mxu0 0.0
    %1376 = vmatpush1.msra.mxu0 1.0
    %1377 = vmatprep.subr.mxu0 0.0
    %1378 = vmatpush1.msra.mxu0 1.0
    %1379 = vmatprep.subr.mxu0 0.0
    %1380 = vmatpush1.msra.mxu0 1.0
    %1381 = vmatprep.subr.mxu0 0.0
    %1382 = vmatpush1.msra.mxu0 1.0
    %1383 = vmatprep.subr.mxu0 0.0
    %1384 = vmatpush1.msra.mxu0 1.0
    %1385 = vmatprep.subr.mxu0 0.0
    %1386 = vmatpush1.msra.mxu0 0.0
    %1387 = vmatprep.subr.mxu0 0.0
    %1388 = vmatpush1.msra.mxu0 0.0
    %1389 = vmatprep.subr.mxu0 0.0
    %1390 = vmatpush1.msra.mxu0 0.0
    %1391 = vmatprep.subr.mxu0 0.0
    %1392 = vmatpush1.msra.mxu0 0.0
    %1393 = vmatprep.subr.mxu0 0.0
    %1394 = vmatpush1.msra.mxu0 0.0
    %1395 = vmatprep.subr.mxu0 0.0
    %1396 = vmatpush1.msra.mxu0 0.0
    %1397 = vmatprep.subr.mxu0 0.0
    %1398 = vmatpush1.msra.mxu0 0.0
    %1399 = vmatprep.subr.mxu0 0.0
    %1400 = vmatpush1.msra.mxu0 0.0
    %1401 = vmatprep.subr.mxu0 0.0
    %1402 = vmatpush1.msra.mxu0 0.0
    %1403 = vmatprep.subr.mxu0 0.0
    %1404 = vmatpush1.msra.mxu0 0.0
    %1405 = vmatprep.subr.mxu0 0.0
    %1406 = vmatpush1.msra.mxu0 0.0
    %1407 = vmatprep.subr.mxu0 0.0
    %1408 = vmatpush1.msra.mxu0 0.0
    %1409 = vmatprep.subr.mxu0 0.0
    %1410 = vmatpush1.msra.mxu0 0.0
    %1411 = vmatprep.subr.mxu0 0.0
    %1412 = vmatpush1.msra.mxu0 0.0
    %1413 = vmatprep.subr.mxu0 0.0
    %1414 = vmatpush1.msra.mxu0 0.0
    %1415 = vmatprep.subr.mxu0 0.0
    %1416 = vmatpush1.msra.mxu0 0.0
    %1417 = vmatprep.mubr.f32.mxu0 0.0
    %v1418 = vand.u32 %v1110, 4294901760
    %v1419 = vsub.f32 %v1110, %v1418
    %v1420 = vand.u32 %v1419, 4294901760
    %1421 = vmatmul.mubr.f32.gmra.mrb[0].mxu0 %v1420
    %v1422 = vpop.f32.mrb[0].mxu0
    %v1423 = vadd.f32 %v1343, %v1422
    %v1424 = vpop.f32.mrb[0].mxu0
    %1425 = vmatprep.mubr.f32.mxu0 0.0
    %v1426 = vand.u32 %v1111, 4294901760
    %v1427 = vsub.f32 %v1111, %v1426
    %v1428 = vand.u32 %v1427, 4294901760
    %1429 = vmatmul.mubr.f32.gmra.mrb[0].mxu0 %v1428
    %v1430 = vpop.f32.mrb[0].mxu0
    %v1431 = vadd.f32 %v1350, %v1430
    %v1432 = vpop.f32.mrb[0].mxu0
    %1433 = vdwg.mxu0
    %1434 = vmatprep.subr.mxu0 0.0
    %1435 = vmatpush1.msra.mxu0 0.0
    %1436 = vmatprep.subr.mxu0 0.0
    %1437 = vmatpush1.msra.mxu0 0.0
    %1438 = vmatprep.subr.mxu0 0.0
    %1439 = vmatpush1.msra.mxu0 0.0
    %1440 = vmatprep.subr.mxu0 0.0
    %1441 = vmatpush1.msra.mxu0 0.0
    %1442 = vmatprep.subr.mxu0 0.0
    %1443 = vmatpush1.msra.mxu0 0.0
    %1444 = vmatprep.subr.mxu0 0.0
    %1445 = vmatpush1.msra.mxu0 0.0
    %1446 = vmatprep.subr.mxu0 0.0
    %1447 = vmatpush1.msra.mxu0 0.0
    %1448 = vmatprep.subr.mxu0 0.0
    %1449 = vmatpush1.msra.mxu0 0.0
    %1450 = vmatprep.subr.mxu0 0.0
    %1451 = vmatpush1.msra.mxu0 0.0
    %1452 = vmatprep.subr.mxu0 0.0
    %1453 = vmatpush1.msra.mxu0 0.0
    %1454 = vmatprep.subr.mxu0 0.0
    %1455 = vmatpush1.msra.mxu0 0.0
    %1456 = vmatprep.subr.mxu0 0.0
    %1457 = vmatpush1.msra.mxu0 0.0
    %1458 = vmatprep.subr.mxu0 0.0
    %1459 = vmatpush1.msra.mxu0 0.0
    %1460 = vmatprep.subr.mxu0 0.0
    %1461 = vmatpush1.msra.mxu0 0.0
    %1462 = vmatprep.subr.mxu0 0.0
    %1463 = vmatpush1.msra.mxu0 0.0
    %1464 = vmatprep.subr.mxu0 0.0
    %1465 = vmatpush1.msra.mxu0 0.0
    %1466 = vmatprep.subr.mxu0 0.0
    %1467 = vmatpush1.msra.mxu0 0.0
    %1468 = vmatprep.subr.mxu0 0.0
    %1469 = vmatpush1.msra.mxu0 0.0
    %1470 = vmatprep.subr.mxu0 0.0
    %1471 = vmatpush1.msra.mxu0 0.0
    %1472 = vmatprep.subr.mxu0 0.0
    %1473 = vmatpush1.msra.mxu0 0.0
    %1474 = vmatprep.subr.mxu0 0.0
    %1475 = vmatpush1.msra.mxu0 0.0
    %1476 = vmatprep.subr.mxu0 0.0
    %1477 = vmatpush1.msra.mxu0 0.0
    %1478 = vmatprep.subr.mxu0 0.0
    %1479 = vmatpush1.msra.mxu0 0.0
    %1480 = vmatprep.subr.mxu0 0.0
    %1481 = vmatpush1.msra.mxu0 0.0
    %1482 = vmatprep.subr.mxu0 0.0
    %1483 = vmatpush1.msra.mxu0 0.0
    %1484 = vmatprep.subr.mxu0 0.0
    %1485 = vmatpush1.msra.mxu0 0.0
    %1486 = vmatprep.subr.mxu0 0.0
    %1487 = vmatpush1.msra.mxu0 0.0
    %1488 = vmatprep.subr.mxu0 0.0
    %1489 = vmatpush1.msra.mxu0 0.0
    %1490 = vmatprep.subr.mxu0 0.0
    %1491 = vmatpush1.msra.mxu0 0.0
    %1492 = vmatprep.subr.mxu0 0.0
    %1493 = vmatpush1.msra.mxu0 0.0
    %1494 = vmatprep.subr.mxu0 0.0
    %1495 = vmatpush1.msra.mxu0 0.0
    %1496 = vmatprep.subr.mxu0 0.0
    %1497 = vmatpush1.msra.mxu0 0.0
    %1498 = vmatprep.mubr.f32.mxu0 0.0
    %v1499 = vand.u32 %v1110, 4294901760
    %1500 = vmatmul.mubr.f32.gmra.mrb[0].mxu0 %v1499
    %v1501 = vpop.f32.mrb[0].mxu0
    %v1502 = vadd.f32 %v1423, %v1501
    %v1503 = vpop.f32.mrb[0].mxu0
    %1504 = vmatprep.mubr.f32.mxu0 0.0
    %v1505 = vand.u32 %v1111, 4294901760
    %1506 = vmatmul.mubr.f32.gmra.mrb[0].mxu0 %v1505
    %v1507 = vpop.f32.mrb[0].mxu0
    %v1508 = vadd.f32 %v1431, %v1507
    %v1509 = vpop.f32.mrb[0].mxu0
    %1510 = vdwg.mxu0
    %1511 = vmatprep.subr.mxu0 0.0
    %1512 = vmatpush1.msra.mxu0 1.0
    %1513 = vmatprep.subr.mxu0 0.0
    %1514 = vmatpush1.msra.mxu0 1.0
    %1515 = vmatprep.subr.mxu0 0.0
    %1516 = vmatpush1.msra.mxu0 1.0
    %1517 = vmatprep.subr.mxu0 0.0
    %1518 = vmatpush1.msra.mxu0 1.0
    %1519 = vmatprep.subr.mxu0 0.0
    %1520 = vmatpush1.msra.mxu0 1.0
    %1521 = vmatprep.subr.mxu0 0.0
    %1522 = vmatpush1.msra.mxu0 1.0
    %1523 = vmatprep.subr.mxu0 0.0
    %1524 = vmatpush1.msra.mxu0 1.0
    %1525 = vmatprep.subr.mxu0 0.0
    %1526 = vmatpush1.msra.mxu0 1.0
    %1527 = vmatprep.subr.mxu0 0.0
    %1528 = vmatpush1.msra.mxu0 1.0
    %1529 = vmatprep.subr.mxu0 0.0
    %1530 = vmatpush1.msra.mxu0 1.0
    %1531 = vmatprep.subr.mxu0 0.0
    %1532 = vmatpush1.msra.mxu0 1.0
    %1533 = vmatprep.subr.mxu0 0.0
    %1534 = vmatpush1.msra.mxu0 1.0
    %1535 = vmatprep.subr.mxu0 0.0
    %1536 = vmatpush1.msra.mxu0 1.0
    %1537 = vmatprep.subr.mxu0 0.0
    %1538 = vmatpush1.msra.mxu0 1.0
    %1539 = vmatprep.subr.mxu0 0.0
    %1540 = vmatpush1.msra.mxu0 1.0
    %1541 = vmatprep.subr.mxu0 0.0
    %1542 = vmatpush1.msra.mxu0 1.0
    %1543 = vmatprep.subr.mxu0 0.0
    %1544 = vmatpush1.msra.mxu0 0.0
    %1545 = vmatprep.subr.mxu0 0.0
    %1546 = vmatpush1.msra.mxu0 0.0
    %1547 = vmatprep.subr.mxu0 0.0
    %1548 = vmatpush1.msra.mxu0 0.0
    %1549 = vmatprep.subr.mxu0 0.0
    %1550 = vmatpush1.msra.mxu0 0.0
    %1551 = vmatprep.subr.mxu0 0.0
    %1552 = vmatpush1.msra.mxu0 0.0
    %1553 = vmatprep.subr.mxu0 0.0
    %1554 = vmatpush1.msra.mxu0 0.0
    %1555 = vmatprep.subr.mxu0 0.0
    %1556 = vmatpush1.msra.mxu0 0.0
    %1557 = vmatprep.subr.mxu0 0.0
    %1558 = vmatpush1.msra.mxu0 0.0
    %1559 = vmatprep.subr.mxu0 0.0
    %1560 = vmatpush1.msra.mxu0 0.0
    %1561 = vmatprep.subr.mxu0 0.0
    %1562 = vmatpush1.msra.mxu0 0.0
    %1563 = vmatprep.subr.mxu0 0.0
    %1564 = vmatpush1.msra.mxu0 0.0
    %1565 = vmatprep.subr.mxu0 0.0
    %1566 = vmatpush1.msra.mxu0 0.0
    %1567 = vmatprep.subr.mxu0 0.0
    %1568 = vmatpush1.msra.mxu0 0.0
    %1569 = vmatprep.subr.mxu0 0.0
    %1570 = vmatpush1.msra.mxu0 0.0
    %1571 = vmatprep.subr.mxu0 0.0
    %1572 = vmatpush1.msra.mxu0 0.0
    %1573 = vmatprep.subr.mxu0 0.0
    %1574 = vmatpush1.msra.mxu0 0.0
    %1575 = vmatprep.mubr.f32.mxu0 0.0
    %v1576 = vand.u32 %v1110, 4294901760
    %1577 = vmatmul.mubr.f32.gmra.mrb[0].mxu0 %v1576
    %v1578 = vpop.f32.mrb[0].mxu0
    %v1579 = vadd.f32 %v1502, %v1578
    %v1580 = vpop.f32.mrb[0].mxu0
    %1581 = vmatprep.mubr.f32.mxu0 0.0
    %v1582 = vand.u32 %v1111, 4294901760
    %1583 = vmatmul.mubr.f32.gmra.mrb[0].mxu0 %v1582
    %v1584 = vpop.f32.mrb[0].mxu0
    %v1585 = vadd.f32 %v1508, %v1584
    %v1586 = vpop.f32.mrb[0].mxu0
    %1587 = vdwg.mxu0
    %v1588 = vmul.f32 %v1579, 0.015625
    %v1589 = vmul.f32 %v1585, 0.015625
    %v1590 = vmul.f32 %v1108, %v1108
    %v1591 = vmul.f32 %v1109, %v1109
    %v1592 = vsub.f32 %v1588, %v1590
    %v1593 = vsub.f32 %v1589, %v1591
    %v1594 = vmax.f32 %v1592, 0.0
    %v1595 = vmax.f32 %v1593, 0.0
    %1597 = vset.pattern.permute.xlu0 0
    %1598 = vperm.xlu0 %1597, %v1108
    %v1599 = vpop.permute.xlu0 %1598
    %1602 = vset.pattern.permute.xlu0 0
    %1603 = vperm.xlu0 %1602, %v1109
    %v1604 = vpop.permute.xlu0 %1603
    %v1606 = vsub.f32 %v623, %v1599
    %v1607 = vsub.f32 %v629, %v1604
    %v1608 = vadd.f32 %v1594, 1e-05
    %v1609 = vadd.f32 %v1595, 1e-05
    %v1610 = vrsqrt.pop %v1608
    %v1611 = vrsqrt.pop %v1609
    %1613 = vset.pattern.permute.xlu0 0
    %1614 = vperm.xlu0 %1613, %v1610
    %v1615 = vpop.permute.xlu0 %1614
    %1618 = vset.pattern.permute.xlu0 0
    %1619 = vperm.xlu0 %1618, %v1611
    %v1620 = vpop.permute.xlu0 %1619
    %v1622 = vmul.f32 %v1606, %v1615
    %v1623 = vmul.f32 %v1607, %v1620
    %v1624 = vlaneseq
    %v1625 = vshrl.u32 %v1624, 7
    %v1626 = vsub.s32 1, %v1625
    %v1627 = vrot.slane %v88, %v1626
    %v1628 = vmul.f32 %v1622, %v1627
    %v1629 = vmul.f32 %v1623, %v1627
    %v1630 = vlaneseq
    %v1631 = vshrl.u32 %v1630, 7
    %v1632 = vsub.s32 2, %v1631
    %v1633 = vrot.slane %v88, %v1632
    %v1634 = vadd.f32 %v1628, %v1633
    %v1635 = vadd.f32 %v1629, %v1633
    %v1636 = vmul.f32 %v1634, 0.5
    %v1637 = vmul.f32 %v1635, 0.5
    %v1638 = vmul.f32 %v1634, 0.70710677
    %v1639 = vmul.f32 %v1635, 0.70710677
    %v1640 = verf.f32.pop %v1638
    %v1641 = verf.f32.pop %v1639
    %v1642 = vadd.f32 %v1640, 1.0
    %v1643 = vadd.f32 %v1641, 1.0
    %v1644 = vmul.f32 %v1636, %v1642
    %v1645 = vmul.f32 %v1637, %v1643
    %v1646 = vld [vmem:[#allocation7] sm:$0xff]
    %v1647 = vld [vmem:[#allocation7 + $0x8] sm:$0xff]
    %v1648 = vld [vmem:[#allocation7 + $0x10] sm:$0xff]
    %v1649 = vld [vmem:[#allocation7 + $0x18] sm:$0xff]
    %v1650 = vld [vmem:[#allocation7 + $0x20] sm:$0xff]
    %v1651 = vld [vmem:[#allocation7 + $0x28] sm:$0xff]
    %v1652 = vld [vmem:[#allocation7 + $0x30] sm:$0xff]
    %v1653 = vld [vmem:[#allocation7 + $0x38] sm:$0xff]
    %v1654 = vld [vmem:[#allocation7 + $0x40] sm:$0xff]
    %v1655 = vld [vmem:[#allocation7 + $0x48] sm:$0xff]
    %v1656 = vld [vmem:[#allocation7 + $0x50] sm:$0xff]
    %v1657 = vld [vmem:[#allocation7 + $0x58] sm:$0xff]
    %v1658 = vld [vmem:[#allocation7 + $0x60] sm:$0xff]
    %v1659 = vld [vmem:[#allocation7 + $0x68] sm:$0xff]
    %v1660 = vld [vmem:[#allocation7 + $0x70] sm:$0xff]
    %v1661 = vld [vmem:[#allocation7 + $0x78] sm:$0xff]
    %v1662 = vlaneseq
    %v1663 = vshrl.u32 %v1662, 7
    %v1664 = vsub.s32 3, %v1663
    %v1665 = vrot.slane %v88, %v1664
    %1666 = vmatprep.subr.mxu0 0.0
    %v1667 = vand.u32 %v1646, 4294901760
    %1668 = vmatpush1.msra.mxu0 %v1667
    %1669 = vmatprep.subr.mxu0 0.0
    %v1670 = vand.u32 %v1647, 4294901760
    %1671 = vmatpush1.msra.mxu0 %v1670
    %1672 = vmatprep.subr.mxu0 0.0
    %v1673 = vand.u32 %v1648, 4294901760
    %1674 = vmatpush1.msra.mxu0 %v1673
    %1675 = vmatprep.subr.mxu0 0.0
    %v1676 = vand.u32 %v1649, 4294901760
    %1677 = vmatpush1.msra.mxu0 %v1676
    %1678 = vmatprep.subr.mxu0 0.0
    %v1679 = vand.u32 %v1650, 4294901760
    %1680 = vmatpush1.msra.mxu0 %v1679
    %1681 = vmatprep.subr.mxu0 0.0
    %v1682 = vand.u32 %v1651, 4294901760
    %1683 = vmatpush1.msra.mxu0 %v1682
    %1684 = vmatprep.subr.mxu0 0.0
    %v1685 = vand.u32 %v1652, 4294901760
    %1686 = vmatpush1.msra.mxu0 %v1685
    %1687 = vmatprep.subr.mxu0 0.0
    %v1688 = vand.u32 %v1653, 4294901760
    %1689 = vmatpush1.msra.mxu0 %v1688
    %1690 = vmatprep.subr.mxu0 0.0
    %v1691 = vand.u32 %v1654, 4294901760
    %1692 = vmatpush1.msra.mxu0 %v1691
    %1693 = vmatprep.subr.mxu0 0.0
    %v1694 = vand.u32 %v1655, 4294901760
    %1695 = vmatpush1.msra.mxu0 %v1694
    %1696 = vmatprep.subr.mxu0 0.0
    %v1697 = vand.u32 %v1656, 4294901760
    %1698 = vmatpush1.msra.mxu0 %v1697
    %1699 = vmatprep.subr.mxu0 0.0
    %v1700 = vand.u32 %v1657, 4294901760
    %1701 = vmatpush1.msra.mxu0 %v1700
    %1702 = vmatprep.subr.mxu0 0.0
    %v1703 = vand.u32 %v1658, 4294901760
    %1704 = vmatpush1.msra.mxu0 %v1703
    %1705 = vmatprep.subr.mxu0 0.0
    %v1706 = vand.u32 %v1659, 4294901760
    %1707 = vmatpush1.msra.mxu0 %v1706
    %1708 = vmatprep.subr.mxu0 0.0
    %v1709 = vand.u32 %v1660, 4294901760
    %1710 = vmatpush1.msra.mxu0 %v1709
    %1711 = vmatprep.subr.mxu0 0.0
    %v1712 = vand.u32 %v1661, 4294901760
    %1713 = vmatpush1.msra.mxu0 %v1712
    %1714 = vmatprep.subr.mxu0 0.0
    %1715 = vmatpush1.msra.mxu0 0.0
    %1716 = vmatprep.subr.mxu0 0.0
    %1717 = vmatpush1.msra.mxu0 0.0
    %1718 = vmatprep.subr.mxu0 0.0
    %1719 = vmatpush1.msra.mxu0 0.0
    %1720 = vmatprep.subr.mxu0 0.0
    %1721 = vmatpush1.msra.mxu0 0.0
    %1722 = vmatprep.subr.mxu0 0.0
    %1723 = vmatpush1.msra.mxu0 0.0
    %1724 = vmatprep.subr.mxu0 0.0
    %1725 = vmatpush1.msra.mxu0 0.0
    %1726 = vmatprep.subr.mxu0 0.0
    %1727 = vmatpush1.msra.mxu0 0.0
    %1728 = vmatprep.subr.mxu0 0.0
    %1729 = vmatpush1.msra.mxu0 0.0
    %1730 = vmatprep.subr.mxu0 0.0
    %1731 = vmatpush1.msra.mxu0 0.0
    %1732 = vmatprep.subr.mxu0 0.0
    %1733 = vmatpush1.msra.mxu0 0.0
    %1734 = vmatprep.subr.mxu0 0.0
    %1735 = vmatpush1.msra.mxu0 0.0
    %1736 = vmatprep.subr.mxu0 0.0
    %1737 = vmatpush1.msra.mxu0 0.0
    %1738 = vmatprep.subr.mxu0 0.0
    %1739 = vmatpush1.msra.mxu0 0.0
    %1740 = vmatprep.subr.mxu0 0.0
    %1741 = vmatpush1.msra.mxu0 0.0
    %1742 = vmatprep.subr.mxu0 0.0
    %1743 = vmatpush1.msra.mxu0 0.0
    %1744 = vmatprep.subr.mxu0 0.0
    %1745 = vmatpush1.msra.mxu0 0.0
    %1746 = vmatprep.mubr.f32.mxu0 0.0
    %v1747 = vand.u32 %v1644, 4294901760
    %v1748 = vsub.f32 %v1644, %v1747
    %v1749 = vand.u32 %v1748, 4294901760
    %v1750 = vsub.f32 %v1748, %v1749
    %v1751 = vand.u32 %v1750, 4294901760
    %1752 = vmatmul.mubr.f32.gmra.mrb[0].mxu0 %v1751
    %v1753 = vpop.f32.mrb[0].mxu0
    %v1754 = vadd.f32 %v1665, %v1753
    %v1755 = vpop.f32.mrb[0].mxu0
    %1756 = vmatprep.mubr.f32.mxu0 0.0
    %v1757 = vand.u32 %v1645, 4294901760
    %v1758 = vsub.f32 %v1645, %v1757
    %v1759 = vand.u32 %v1758, 4294901760
    %v1760 = vsub.f32 %v1758, %v1759
    %v1761 = vand.u32 %v1760, 4294901760
    %1762 = vmatmul.mubr.f32.gmra.mrb[0].mxu0 %v1761
    %v1763 = vpop.f32.mrb[0].mxu0
    %v1764 = vadd.f32 %v1665, %v1763
    %v1765 = vpop.f32.mrb[0].mxu0
    %1766 = vdwg.mxu0
    %1767 = vmatprep.subr.mxu0 0.0
    %v1768 = vand.u32 %v1646, 4294901760
    %v1769 = vsub.f32 %v1646, %v1768
    %v1770 = vand.u32 %v1769, 4294901760
    %v1771 = vsub.f32 %v1769, %v1770
    %v1772 = vand.u32 %v1771, 4294901760
    %1773 = vmatpush1.msra.mxu0 %v1772
    %1774 = vmatprep.subr.mxu0 0.0
    %v1775 = vand.u32 %v1647, 4294901760
    %v1776 = vsub.f32 %v1647, %v1775
    %v1777 = vand.u32 %v1776, 4294901760
    %v1778 = vsub.f32 %v1776, %v1777
    %v1779 = vand.u32 %v1778, 4294901760
    %1780 = vmatpush1.msra.mxu0 %v1779
    %1781 = vmatprep.subr.mxu0 0.0
    %v1782 = vand.u32 %v1648, 4294901760
    %v1783 = vsub.f32 %v1648, %v1782
    %v1784 = vand.u32 %v1783, 4294901760
    %v1785 = vsub.f32 %v1783, %v1784
    %v1786 = vand.u32 %v1785, 4294901760
    %1787 = vmatpush1.msra.mxu0 %v1786
    %1788 = vmatprep.subr.mxu0 0.0
    %v1789 = vand.u32 %v1649, 4294901760
    %v1790 = vsub.f32 %v1649, %v1789
    %v1791 = vand.u32 %v1790, 4294901760
    %v1792 = vsub.f32 %v1790, %v1791
    %v1793 = vand.u32 %v1792, 4294901760
    %1794 = vmatpush1.msra.mxu0 %v1793
    %1795 = vmatprep.subr.mxu0 0.0
    %v1796 = vand.u32 %v1650, 4294901760
    %v1797 = vsub.f32 %v1650, %v1796
    %v1798 = vand.u32 %v1797, 4294901760
    %v1799 = vsub.f32 %v1797, %v1798
    %v1800 = vand.u32 %v1799, 4294901760
    %1801 = vmatpush1.msra.mxu0 %v1800
    %1802 = vmatprep.subr.mxu0 0.0
    %v1803 = vand.u32 %v1651, 4294901760
    %v1804 = vsub.f32 %v1651, %v1803
    %v1805 = vand.u32 %v1804, 4294901760
    %v1806 = vsub.f32 %v1804, %v1805
    %v1807 = vand.u32 %v1806, 4294901760
    %1808 = vmatpush1.msra.mxu0 %v1807
    %1809 = vmatprep.subr.mxu0 0.0
    %v1810 = vand.u32 %v1652, 4294901760
    %v1811 = vsub.f32 %v1652, %v1810
    %v1812 = vand.u32 %v1811, 4294901760
    %v1813 = vsub.f32 %v1811, %v1812
    %v1814 = vand.u32 %v1813, 4294901760
    %1815 = vmatpush1.msra.mxu0 %v1814
    %1816 = vmatprep.subr.mxu0 0.0
    %v1817 = vand.u32 %v1653, 4294901760
    %v1818 = vsub.f32 %v1653, %v1817
    %v1819 = vand.u32 %v1818, 4294901760
    %v1820 = vsub.f32 %v1818, %v1819
    %v1821 = vand.u32 %v1820, 4294901760
    %1822 = vmatpush1.msra.mxu0 %v1821
    %1823 = vmatprep.subr.mxu0 0.0
    %v1824 = vand.u32 %v1654, 4294901760
    %v1825 = vsub.f32 %v1654, %v1824
    %v1826 = vand.u32 %v1825, 4294901760
    %v1827 = vsub.f32 %v1825, %v1826
    %v1828 = vand.u32 %v1827, 4294901760
    %1829 = vmatpush1.msra.mxu0 %v1828
    %1830 = vmatprep.subr.mxu0 0.0
    %v1831 = vand.u32 %v1655, 4294901760
    %v1832 = vsub.f32 %v1655, %v1831
    %v1833 = vand.u32 %v1832, 4294901760
    %v1834 = vsub.f32 %v1832, %v1833
    %v1835 = vand.u32 %v1834, 4294901760
    %1836 = vmatpush1.msra.mxu0 %v1835
    %1837 = vmatprep.subr.mxu0 0.0
    %v1838 = vand.u32 %v1656, 4294901760
    %v1839 = vsub.f32 %v1656, %v1838
    %v1840 = vand.u32 %v1839, 4294901760
    %v1841 = vsub.f32 %v1839, %v1840
    %v1842 = vand.u32 %v1841, 4294901760
    %1843 = vmatpush1.msra.mxu0 %v1842
    %1844 = vmatprep.subr.mxu0 0.0
    %v1845 = vand.u32 %v1657, 4294901760
    %v1846 = vsub.f32 %v1657, %v1845
    %v1847 = vand.u32 %v1846, 4294901760
    %v1848 = vsub.f32 %v1846, %v1847
    %v1849 = vand.u32 %v1848, 4294901760
    %1850 = vmatpush1.msra.mxu0 %v1849
    %1851 = vmatprep.subr.mxu0 0.0
    %v1852 = vand.u32 %v1658, 4294901760
    %v1853 = vsub.f32 %v1658, %v1852
    %v1854 = vand.u32 %v1853, 4294901760
    %v1855 = vsub.f32 %v1853, %v1854
    %v1856 = vand.u32 %v1855, 4294901760
    %1857 = vmatpush1.msra.mxu0 %v1856
    %1858 = vmatprep.subr.mxu0 0.0
    %v1859 = vand.u32 %v1659, 4294901760
    %v1860 = vsub.f32 %v1659, %v1859
    %v1861 = vand.u32 %v1860, 4294901760
    %v1862 = vsub.f32 %v1860, %v1861
    %v1863 = vand.u32 %v1862, 4294901760
    %1864 = vmatpush1.msra.mxu0 %v1863
    %1865 = vmatprep.subr.mxu0 0.0
    %v1866 = vand.u32 %v1660, 4294901760
    %v1867 = vsub.f32 %v1660, %v1866
    %v1868 = vand.u32 %v1867, 4294901760
    %v1869 = vsub.f32 %v1867, %v1868
    %v1870 = vand.u32 %v1869, 4294901760
    %1871 = vmatpush1.msra.mxu0 %v1870
    %1872 = vmatprep.subr.mxu0 0.0
    %v1873 = vand.u32 %v1661, 4294901760
    %v1874 = vsub.f32 %v1661, %v1873
    %v1875 = vand.u32 %v1874, 4294901760
    %v1876 = vsub.f32 %v1874, %v1875
    %v1877 = vand.u32 %v1876, 4294901760
    %1878 = vmatpush1.msra.mxu0 %v1877
    %1879 = vmatprep.subr.mxu0 0.0
    %1880 = vmatpush1.msra.mxu0 0.0
    %1881 = vmatprep.subr.mxu0 0.0
    %1882 = vmatpush1.msra.mxu0 0.0
    %1883 = vmatprep.subr.mxu0 0.0
    %1884 = vmatpush1.msra.mxu0 0.0
    %1885 = vmatprep.subr.mxu0 0.0
    %1886 = vmatpush1.msra.mxu0 0.0
    %1887 = vmatprep.subr.mxu0 0.0
    %1888 = vmatpush1.msra.mxu0 0.0
    %1889 = vmatprep.subr.mxu0 0.0
    %1890 = vmatpush1.msra.mxu0 0.0
    %1891 = vmatprep.subr.mxu0 0.0
    %1892 = vmatpush1.msra.mxu0 0.0
    %1893 = vmatprep.subr.mxu0 0.0
    %1894 = vmatpush1.msra.mxu0 0.0
    %1895 = vmatprep.subr.mxu0 0.0
    %1896 = vmatpush1.msra.mxu0 0.0
    %1897 = vmatprep.subr.mxu0 0.0
    %1898 = vmatpush1.msra.mxu0 0.0
    %1899 = vmatprep.subr.mxu0 0.0
    %1900 = vmatpush1.msra.mxu0 0.0
    %1901 = vmatprep.subr.mxu0 0.0
    %1902 = vmatpush1.msra.mxu0 0.0
    %1903 = vmatprep.subr.mxu0 0.0
    %1904 = vmatpush1.msra.mxu0 0.0
    %1905 = vmatprep.subr.mxu0 0.0
    %1906 = vmatpush1.msra.mxu0 0.0
    %1907 = vmatprep.subr.mxu0 0.0
    %1908 = vmatpush1.msra.mxu0 0.0
    %1909 = vmatprep.subr.mxu0 0.0
    %1910 = vmatpush1.msra.mxu0 0.0
    %1911 = vmatprep.mubr.f32.mxu0 0.0
    %v1912 = vand.u32 %v1644, 4294901760
    %1913 = vmatmul.mubr.f32.gmra.mrb[0].mxu0 %v1912
    %v1914 = vpop.f32.mrb[0].mxu0
    %v1915 = vadd.f32 %v1754, %v1914
    %v1916 = vpop.f32.mrb[0].mxu0
    %1917 = vmatprep.mubr.f32.mxu0 0.0
    %v1918 = vand.u32 %v1645, 4294901760
    %1919 = vmatmul.mubr.f32.gmra.mrb[0].mxu0 %v1918
    %v1920 = vpop.f32.mrb[0].mxu0
    %v1921 = vadd.f32 %v1764, %v1920
    %v1922 = vpop.f32.mrb[0].mxu0
    %1923 = vdwg.mxu0
    %1924 = vmatprep.subr.mxu0 0.0
    %v1925 = vand.u32 %v1646, 4294901760
    %v1926 = vsub.f32 %v1646, %v1925
    %1927 = vmatpush1.msra.mxu0 %v1926
    %1928 = vmatprep.subr.mxu0 0.0
    %v1929 = vand.u32 %v1647, 4294901760
    %v1930 = vsub.f32 %v1647, %v1929
    %1931 = vmatpush1.msra.mxu0 %v1930
    %1932 = vmatprep.subr.mxu0 0.0
    %v1933 = vand.u32 %v1648, 4294901760
    %v1934 = vsub.f32 %v1648, %v1933
    %1935 = vmatpush1.msra.mxu0 %v1934
    %1936 = vmatprep.subr.mxu0 0.0
    %v1937 = vand.u32 %v1649, 4294901760
    %v1938 = vsub.f32 %v1649, %v1937
    %1939 = vmatpush1.msra.mxu0 %v1938
    %1940 = vmatprep.subr.mxu0 0.0
    %v1941 = vand.u32 %v1650, 4294901760
    %v1942 = vsub.f32 %v1650, %v1941
    %1943 = vmatpush1.msra.mxu0 %v1942
    %1944 = vmatprep.subr.mxu0 0.0
    %v1945 = vand.u32 %v1651, 4294901760
    %v1946 = vsub.f32 %v1651, %v1945
    %1947 = vmatpush1.msra.mxu0 %v1946
    %1948 = vmatprep.subr.mxu0 0.0
    %v1949 = vand.u32 %v1652, 4294901760
    %v1950 = vsub.f32 %v1652, %v1949
    %1951 = vmatpush1.msra.mxu0 %v1950
    %1952 = vmatprep.subr.mxu0 0.0
    %v1953 = vand.u32 %v1653, 4294901760
    %v1954 = vsub.f32 %v1653, %v1953
    %1955 = vmatpush1.msra.mxu0 %v1954
    %1956 = vmatprep.subr.mxu0 0.0
    %v1957 = vand.u32 %v1654, 4294901760
    %v1958 = vsub.f32 %v1654, %v1957
    %1959 = vmatpush1.msra.mxu0 %v1958
    %1960 = vmatprep.subr.mxu0 0.0
    %v1961 = vand.u32 %v1655, 4294901760
    %v1962 = vsub.f32 %v1655, %v1961
    %1963 = vmatpush1.msra.mxu0 %v1962
    %1964 = vmatprep.subr.mxu0 0.0
    %v1965 = vand.u32 %v1656, 4294901760
    %v1966 = vsub.f32 %v1656, %v1965
    %1967 = vmatpush1.msra.mxu0 %v1966
    %1968 = vmatprep.subr.mxu0 0.0
    %v1969 = vand.u32 %v1657, 4294901760
    %v1970 = vsub.f32 %v1657, %v1969
    %1971 = vmatpush1.msra.mxu0 %v1970
    %1972 = vmatprep.subr.mxu0 0.0
    %v1973 = vand.u32 %v1658, 4294901760
    %v1974 = vsub.f32 %v1658, %v1973
    %1975 = vmatpush1.msra.mxu0 %v1974
    %1976 = vmatprep.subr.mxu0 0.0
    %v1977 = vand.u32 %v1659, 4294901760
    %v1978 = vsub.f32 %v1659, %v1977
    %1979 = vmatpush1.msra.mxu0 %v1978
    %1980 = vmatprep.subr.mxu0 0.0
    %v1981 = vand.u32 %v1660, 4294901760
    %v1982 = vsub.f32 %v1660, %v1981
    %1983 = vmatpush1.msra.mxu0 %v1982
    %1984 = vmatprep.subr.mxu0 0.0
    %v1985 = vand.u32 %v1661, 4294901760
    %v1986 = vsub.f32 %v1661, %v1985
    %1987 = vmatpush1.msra.mxu0 %v1986
    %1988 = vmatprep.subr.mxu0 0.0
    %1989 = vmatpush1.msra.mxu0 0.0
    %1990 = vmatprep.subr.mxu0 0.0
    %1991 = vmatpush1.msra.mxu0 0.0
    %1992 = vmatprep.subr.mxu0 0.0
    %1993 = vmatpush1.msra.mxu0 0.0
    %1994 = vmatprep.subr.mxu0 0.0
    %1995 = vmatpush1.msra.mxu0 0.0
    %1996 = vmatprep.subr.mxu0 0.0
    %1997 = vmatpush1.msra.mxu0 0.0
    %1998 = vmatprep.subr.mxu0 0.0
    %1999 = vmatpush1.msra.mxu0 0.0
    %2000 = vmatprep.subr.mxu0 0.0
    %2001 = vmatpush1.msra.mxu0 0.0
    %2002 = vmatprep.subr.mxu0 0.0
    %2003 = vmatpush1.msra.mxu0 0.0
    %2004 = vmatprep.subr.mxu0 0.0
    %2005 = vmatpush1.msra.mxu0 0.0
    %2006 = vmatprep.subr.mxu0 0.0
    %2007 = vmatpush1.msra.mxu0 0.0
    %2008 = vmatprep.subr.mxu0 0.0
    %2009 = vmatpush1.msra.mxu0 0.0
    %2010 = vmatprep.subr.mxu0 0.0
    %2011 = vmatpush1.msra.mxu0 0.0
    %2012 = vmatprep.subr.mxu0 0.0
    %2013 = vmatpush1.msra.mxu0 0.0
    %2014 = vmatprep.subr.mxu0 0.0
    %2015 = vmatpush1.msra.mxu0 0.0
    %2016 = vmatprep.subr.mxu0 0.0
    %2017 = vmatpush1.msra.mxu0 0.0
    %2018 = vmatprep.subr.mxu0 0.0
    %2019 = vmatpush1.msra.mxu0 0.0
    %2020 = vmatprep.mubr.f32.mxu0 0.0
    %v2021 = vand.u32 %v1644, 4294901760
    %v2022 = vsub.f32 %v1644, %v2021
    %2023 = vmatmul.mubr.f32.gmra.mrb[0].mxu0 %v2022
    %v2024 = vpop.f32.mrb[0].mxu0
    %v2025 = vadd.f32 %v1915, %v2024
    %v2026 = vpop.f32.mrb[0].mxu0
    %2027 = vmatprep.mubr.f32.mxu0 0.0
    %v2028 = vand.u32 %v1645, 4294901760
    %v2029 = vsub.f32 %v1645, %v2028
    %2030 = vmatmul.mubr.f32.gmra.mrb[0].mxu0 %v2029
    %v2031 = vpop.f32.mrb[0].mxu0
    %v2032 = vadd.f32 %v1921, %v2031
    %v2033 = vpop.f32.mrb[0].mxu0
    %2034 = vdwg.mxu0
    %2035 = vmatprep.subr.mxu0 0.0
    %v2036 = vand.u32 %v1646, 4294901760
    %2037 = vmatpush1.msra.mxu0 %v2036
    %2038 = vmatprep.subr.mxu0 0.0
    %v2039 = vand.u32 %v1647, 4294901760
    %2040 = vmatpush1.msra.mxu0 %v2039
    %2041 = vmatprep.subr.mxu0 0.0
    %v2042 = vand.u32 %v1648, 4294901760
    %2043 = vmatpush1.msra.mxu0 %v2042
    %2044 = vmatprep.subr.mxu0 0.0
    %v2045 = vand.u32 %v1649, 4294901760
    %2046 = vmatpush1.msra.mxu0 %v2045
    %2047 = vmatprep.subr.mxu0 0.0
    %v2048 = vand.u32 %v1650, 4294901760
    %2049 = vmatpush1.msra.mxu0 %v2048
    %2050 = vmatprep.subr.mxu0 0.0
    %v2051 = vand.u32 %v1651, 4294901760
    %2052 = vmatpush1.msra.mxu0 %v2051
    %2053 = vmatprep.subr.mxu0 0.0
    %v2054 = vand.u32 %v1652, 4294901760
    %2055 = vmatpush1.msra.mxu0 %v2054
    %2056 = vmatprep.subr.mxu0 0.0
    %v2057 = vand.u32 %v1653, 4294901760
    %2058 = vmatpush1.msra.mxu0 %v2057
    %2059 = vmatprep.subr.mxu0 0.0
    %v2060 = vand.u32 %v1654, 4294901760
    %2061 = vmatpush1.msra.mxu0 %v2060
    %2062 = vmatprep.subr.mxu0 0.0
    %v2063 = vand.u32 %v1655, 4294901760
    %2064 = vmatpush1.msra.mxu0 %v2063
    %2065 = vmatprep.subr.mxu0 0.0
    %v2066 = vand.u32 %v1656, 4294901760
    %2067 = vmatpush1.msra.mxu0 %v2066
    %2068 = vmatprep.subr.mxu0 0.0
    %v2069 = vand.u32 %v1657, 4294901760
    %2070 = vmatpush1.msra.mxu0 %v2069
    %2071 = vmatprep.subr.mxu0 0.0
    %v2072 = vand.u32 %v1658, 4294901760
    %2073 = vmatpush1.msra.mxu0 %v2072
    %2074 = vmatprep.subr.mxu0 0.0
    %v2075 = vand.u32 %v1659, 4294901760
    %2076 = vmatpush1.msra.mxu0 %v2075
    %2077 = vmatprep.subr.mxu0 0.0
    %v2078 = vand.u32 %v1660, 4294901760
    %2079 = vmatpush1.msra.mxu0 %v2078
    %2080 = vmatprep.subr.mxu0 0.0
    %v2081 = vand.u32 %v1661, 4294901760
    %2082 = vmatpush1.msra.mxu0 %v2081
    %2083 = vmatprep.subr.mxu0 0.0
    %2084 = vmatpush1.msra.mxu0 0.0
    %2085 = vmatprep.subr.mxu0 0.0
    %2086 = vmatpush1.msra.mxu0 0.0
    %2087 = vmatprep.subr.mxu0 0.0
    %2088 = vmatpush1.msra.mxu0 0.0
    %2089 = vmatprep.subr.mxu0 0.0
    %2090 = vmatpush1.msra.mxu0 0.0
    %2091 = vmatprep.subr.mxu0 0.0
    %2092 = vmatpush1.msra.mxu0 0.0
    %2093 = vmatprep.subr.mxu0 0.0
    %2094 = vmatpush1.msra.mxu0 0.0
    %2095 = vmatprep.subr.mxu0 0.0
    %2096 = vmatpush1.msra.mxu0 0.0
    %2097 = vmatprep.subr.mxu0 0.0
    %2098 = vmatpush1.msra.mxu0 0.0
    %2099 = vmatprep.subr.mxu0 0.0
    %2100 = vmatpush1.msra.mxu0 0.0
    %2101 = vmatprep.subr.mxu0 0.0
    %2102 = vmatpush1.msra.mxu0 0.0
    %2103 = vmatprep.subr.mxu0 0.0
    %2104 = vmatpush1.msra.mxu0 0.0
    %2105 = vmatprep.subr.mxu0 0.0
    %2106 = vmatpush1.msra.mxu0 0.0
    %2107 = vmatprep.subr.mxu0 0.0
    %2108 = vmatpush1.msra.mxu0 0.0
    %2109 = vmatprep.subr.mxu0 0.0
    %2110 = vmatpush1.msra.mxu0 0.0
    %2111 = vmatprep.subr.mxu0 0.0
    %2112 = vmatpush1.msra.mxu0 0.0
    %2113 = vmatprep.subr.mxu0 0.0
    %2114 = vmatpush1.msra.mxu0 0.0
    %2115 = vmatprep.mubr.f32.mxu0 0.0
    %v2116 = vand.u32 %v1644, 4294901760
    %v2117 = vsub.f32 %v1644, %v2116
    %v2118 = vand.u32 %v2117, 4294901760
    %2119 = vmatmul.mubr.f32.gmra.mrb[0].mxu0 %v2118
    %v2120 = vpop.f32.mrb[0].mxu0
    %v2121 = vadd.f32 %v2025, %v2120
    %v2122 = vpop.f32.mrb[0].mxu0
    %2123 = vmatprep.mubr.f32.mxu0 0.0
    %v2124 = vand.u32 %v1645, 4294901760
    %v2125 = vsub.f32 %v1645, %v2124
    %v2126 = vand.u32 %v2125, 4294901760
    %2127 = vmatmul.mubr.f32.gmra.mrb[0].mxu0 %v2126
    %v2128 = vpop.f32.mrb[0].mxu0
    %v2129 = vadd.f32 %v2032, %v2128
    %v2130 = vpop.f32.mrb[0].mxu0
    %2131 = vdwg.mxu0
    %2132 = vmatprep.subr.mxu0 0.0
    %v2133 = vand.u32 %v1646, 4294901760
    %v2134 = vsub.f32 %v1646, %v2133
    %v2135 = vand.u32 %v2134, 4294901760
    %2136 = vmatpush1.msra.mxu0 %v2135
    %2137 = vmatprep.subr.mxu0 0.0
    %v2138 = vand.u32 %v1647, 4294901760
    %v2139 = vsub.f32 %v1647, %v2138
    %v2140 = vand.u32 %v2139, 4294901760
    %2141 = vmatpush1.msra.mxu0 %v2140
    %2142 = vmatprep.subr.mxu0 0.0
    %v2143 = vand.u32 %v1648, 4294901760
    %v2144 = vsub.f32 %v1648, %v2143
    %v2145 = vand.u32 %v2144, 4294901760
    %2146 = vmatpush1.msra.mxu0 %v2145
    %2147 = vmatprep.subr.mxu0 0.0
    %v2148 = vand.u32 %v1649, 4294901760
    %v2149 = vsub.f32 %v1649, %v2148
    %v2150 = vand.u32 %v2149, 4294901760
    %2151 = vmatpush1.msra.mxu0 %v2150
    %2152 = vmatprep.subr.mxu0 0.0
    %v2153 = vand.u32 %v1650, 4294901760
    %v2154 = vsub.f32 %v1650, %v2153
    %v2155 = vand.u32 %v2154, 4294901760
    %2156 = vmatpush1.msra.mxu0 %v2155
    %2157 = vmatprep.subr.mxu0 0.0
    %v2158 = vand.u32 %v1651, 4294901760
    %v2159 = vsub.f32 %v1651, %v2158
    %v2160 = vand.u32 %v2159, 4294901760
    %2161 = vmatpush1.msra.mxu0 %v2160
    %2162 = vmatprep.subr.mxu0 0.0
    %v2163 = vand.u32 %v1652, 4294901760
    %v2164 = vsub.f32 %v1652, %v2163
    %v2165 = vand.u32 %v2164, 4294901760
    %2166 = vmatpush1.msra.mxu0 %v2165
    %2167 = vmatprep.subr.mxu0 0.0
    %v2168 = vand.u32 %v1653, 4294901760
    %v2169 = vsub.f32 %v1653, %v2168
    %v2170 = vand.u32 %v2169, 4294901760
    %2171 = vmatpush1.msra.mxu0 %v2170
    %2172 = vmatprep.subr.mxu0 0.0
    %v2173 = vand.u32 %v1654, 4294901760
    %v2174 = vsub.f32 %v1654, %v2173
    %v2175 = vand.u32 %v2174, 4294901760
    %2176 = vmatpush1.msra.mxu0 %v2175
    %2177 = vmatprep.subr.mxu0 0.0
    %v2178 = vand.u32 %v1655, 4294901760
    %v2179 = vsub.f32 %v1655, %v2178
    %v2180 = vand.u32 %v2179, 4294901760
    %2181 = vmatpush1.msra.mxu0 %v2180
    %2182 = vmatprep.subr.mxu0 0.0
    %v2183 = vand.u32 %v1656, 4294901760
    %v2184 = vsub.f32 %v1656, %v2183
    %v2185 = vand.u32 %v2184, 4294901760
    %2186 = vmatpush1.msra.mxu0 %v2185
    %2187 = vmatprep.subr.mxu0 0.0
    %v2188 = vand.u32 %v1657, 4294901760
    %v2189 = vsub.f32 %v1657, %v2188
    %v2190 = vand.u32 %v2189, 4294901760
    %2191 = vmatpush1.msra.mxu0 %v2190
    %2192 = vmatprep.subr.mxu0 0.0
    %v2193 = vand.u32 %v1658, 4294901760
    %v2194 = vsub.f32 %v1658, %v2193
    %v2195 = vand.u32 %v2194, 4294901760
    %2196 = vmatpush1.msra.mxu0 %v2195
    %2197 = vmatprep.subr.mxu0 0.0
    %v2198 = vand.u32 %v1659, 4294901760
    %v2199 = vsub.f32 %v1659, %v2198
    %v2200 = vand.u32 %v2199, 4294901760
    %2201 = vmatpush1.msra.mxu0 %v2200
    %2202 = vmatprep.subr.mxu0 0.0
    %v2203 = vand.u32 %v1660, 4294901760
    %v2204 = vsub.f32 %v1660, %v2203
    %v2205 = vand.u32 %v2204, 4294901760
    %2206 = vmatpush1.msra.mxu0 %v2205
    %2207 = vmatprep.subr.mxu0 0.0
    %v2208 = vand.u32 %v1661, 4294901760
    %v2209 = vsub.f32 %v1661, %v2208
    %v2210 = vand.u32 %v2209, 4294901760
    %2211 = vmatpush1.msra.mxu0 %v2210
    %2212 = vmatprep.subr.mxu0 0.0
    %2213 = vmatpush1.msra.mxu0 0.0
    %2214 = vmatprep.subr.mxu0 0.0
    %2215 = vmatpush1.msra.mxu0 0.0
    %2216 = vmatprep.subr.mxu0 0.0
    %2217 = vmatpush1.msra.mxu0 0.0
    %2218 = vmatprep.subr.mxu0 0.0
    %2219 = vmatpush1.msra.mxu0 0.0
    %2220 = vmatprep.subr.mxu0 0.0
    %2221 = vmatpush1.msra.mxu0 0.0
    %2222 = vmatprep.subr.mxu0 0.0
    %2223 = vmatpush1.msra.mxu0 0.0
    %2224 = vmatprep.subr.mxu0 0.0
    %2225 = vmatpush1.msra.mxu0 0.0
    %2226 = vmatprep.subr.mxu0 0.0
    %2227 = vmatpush1.msra.mxu0 0.0
    %2228 = vmatprep.subr.mxu0 0.0
    %2229 = vmatpush1.msra.mxu0 0.0
    %2230 = vmatprep.subr.mxu0 0.0
    %2231 = vmatpush1.msra.mxu0 0.0
    %2232 = vmatprep.subr.mxu0 0.0
    %2233 = vmatpush1.msra.mxu0 0.0
    %2234 = vmatprep.subr.mxu0 0.0
    %2235 = vmatpush1.msra.mxu0 0.0
    %2236 = vmatprep.subr.mxu0 0.0
    %2237 = vmatpush1.msra.mxu0 0.0
    %2238 = vmatprep.subr.mxu0 0.0
    %2239 = vmatpush1.msra.mxu0 0.0
    %2240 = vmatprep.subr.mxu0 0.0
    %2241 = vmatpush1.msra.mxu0 0.0
    %2242 = vmatprep.subr.mxu0 0.0
    %2243 = vmatpush1.msra.mxu0 0.0
    %2244 = vmatprep.mubr.f32.mxu0 0.0
    %v2245 = vand.u32 %v1644, 4294901760
    %2246 = vmatmul.mubr.f32.gmra.mrb[0].mxu0 %v2245
    %v2247 = vpop.f32.mrb[0].mxu0
    %v2248 = vadd.f32 %v2121, %v2247
    %v2249 = vpop.f32.mrb[0].mxu0
    %2250 = vmatprep.mubr.f32.mxu0 0.0
    %v2251 = vand.u32 %v1645, 4294901760
    %2252 = vmatmul.mubr.f32.gmra.mrb[0].mxu0 %v2251
    %v2253 = vpop.f32.mrb[0].mxu0
    %v2254 = vadd.f32 %v2129, %v2253
    %v2255 = vpop.f32.mrb[0].mxu0
    %2256 = vdwg.mxu0
    %2257 = vmatprep.subr.mxu0 0.0
    %v2258 = vand.u32 %v1646, 4294901760
    %2259 = vmatpush1.msra.mxu0 %v2258
    %2260 = vmatprep.subr.mxu0 0.0
    %v2261 = vand.u32 %v1647, 4294901760
    %2262 = vmatpush1.msra.mxu0 %v2261
    %2263 = vmatprep.subr.mxu0 0.0
    %v2264 = vand.u32 %v1648, 4294901760
    %2265 = vmatpush1.msra.mxu0 %v2264
    %2266 = vmatprep.subr.mxu0 0.0
    %v2267 = vand.u32 %v1649, 4294901760
    %2268 = vmatpush1.msra.mxu0 %v2267
    %2269 = vmatprep.subr.mxu0 0.0
    %v2270 = vand.u32 %v1650, 4294901760
    %2271 = vmatpush1.msra.mxu0 %v2270
    %2272 = vmatprep.subr.mxu0 0.0
    %v2273 = vand.u32 %v1651, 4294901760
    %2274 = vmatpush1.msra.mxu0 %v2273
    %2275 = vmatprep.subr.mxu0 0.0
    %v2276 = vand.u32 %v1652, 4294901760
    %2277 = vmatpush1.msra.mxu0 %v2276
    %2278 = vmatprep.subr.mxu0 0.0
    %v2279 = vand.u32 %v1653, 4294901760
    %2280 = vmatpush1.msra.mxu0 %v2279
    %2281 = vmatprep.subr.mxu0 0.0
    %v2282 = vand.u32 %v1654, 4294901760
    %2283 = vmatpush1.msra.mxu0 %v2282
    %2284 = vmatprep.subr.mxu0 0.0
    %v2285 = vand.u32 %v1655, 4294901760
    %2286 = vmatpush1.msra.mxu0 %v2285
    %2287 = vmatprep.subr.mxu0 0.0
    %v2288 = vand.u32 %v1656, 4294901760
    %2289 = vmatpush1.msra.mxu0 %v2288
    %2290 = vmatprep.subr.mxu0 0.0
    %v2291 = vand.u32 %v1657, 4294901760
    %2292 = vmatpush1.msra.mxu0 %v2291
    %2293 = vmatprep.subr.mxu0 0.0
    %v2294 = vand.u32 %v1658, 4294901760
    %2295 = vmatpush1.msra.mxu0 %v2294
    %2296 = vmatprep.subr.mxu0 0.0
    %v2297 = vand.u32 %v1659, 4294901760
    %2298 = vmatpush1.msra.mxu0 %v2297
    %2299 = vmatprep.subr.mxu0 0.0
    %v2300 = vand.u32 %v1660, 4294901760
    %2301 = vmatpush1.msra.mxu0 %v2300
    %2302 = vmatprep.subr.mxu0 0.0
    %v2303 = vand.u32 %v1661, 4294901760
    %2304 = vmatpush1.msra.mxu0 %v2303
    %2305 = vmatprep.subr.mxu0 0.0
    %2306 = vmatpush1.msra.mxu0 0.0
    %2307 = vmatprep.subr.mxu0 0.0
    %2308 = vmatpush1.msra.mxu0 0.0
    %2309 = vmatprep.subr.mxu0 0.0
    %2310 = vmatpush1.msra.mxu0 0.0
    %2311 = vmatprep.subr.mxu0 0.0
    %2312 = vmatpush1.msra.mxu0 0.0
    %2313 = vmatprep.subr.mxu0 0.0
    %2314 = vmatpush1.msra.mxu0 0.0
    %2315 = vmatprep.subr.mxu0 0.0
    %2316 = vmatpush1.msra.mxu0 0.0
    %2317 = vmatprep.subr.mxu0 0.0
    %2318 = vmatpush1.msra.mxu0 0.0
    %2319 = vmatprep.subr.mxu0 0.0
    %2320 = vmatpush1.msra.mxu0 0.0
    %2321 = vmatprep.subr.mxu0 0.0
    %2322 = vmatpush1.msra.mxu0 0.0
    %2323 = vmatprep.subr.mxu0 0.0
    %2324 = vmatpush1.msra.mxu0 0.0
    %2325 = vmatprep.subr.mxu0 0.0
    %2326 = vmatpush1.msra.mxu0 0.0
    %2327 = vmatprep.subr.mxu0 0.0
    %2328 = vmatpush1.msra.mxu0 0.0
    %2329 = vmatprep.subr.mxu0 0.0
    %2330 = vmatpush1.msra.mxu0 0.0
    %2331 = vmatprep.subr.mxu0 0.0
    %2332 = vmatpush1.msra.mxu0 0.0
    %2333 = vmatprep.subr.mxu0 0.0
    %2334 = vmatpush1.msra.mxu0 0.0
    %2335 = vmatprep.subr.mxu0 0.0
    %2336 = vmatpush1.msra.mxu0 0.0
    %2337 = vmatprep.mubr.f32.mxu0 0.0
    %v2338 = vand.u32 %v1644, 4294901760
    %2339 = vmatmul.mubr.f32.gmra.mrb[0].mxu0 %v2338
    %v2340 = vpop.f32.mrb[0].mxu0
    %v2341 = vadd.f32 %v2248, %v2340
    %v2342 = vpop.f32.mrb[0].mxu0
    %2343 = vmatprep.mubr.f32.mxu0 0.0
    %v2344 = vand.u32 %v1645, 4294901760
    %2345 = vmatmul.mubr.f32.gmra.mrb[0].mxu0 %v2344
    %v2346 = vpop.f32.mrb[0].mxu0
    %v2347 = vadd.f32 %v2254, %v2346
    %v2348 = vpop.f32.mrb[0].mxu0
    %2349 = vdwg.mxu0
    %2350 = vmatprep.subr.mxu0 0.0
    %2351 = vmatpush1.msra.mxu0 1.0
    %2352 = vmatprep.subr.mxu0 0.0
    %2353 = vmatpush1.msra.mxu0 1.0
    %2354 = vmatprep.subr.mxu0 0.0
    %2355 = vmatpush1.msra.mxu0 1.0
    %2356 = vmatprep.subr.mxu0 0.0
    %2357 = vmatpush1.msra.mxu0 1.0
    %2358 = vmatprep.subr.mxu0 0.0
    %2359 = vmatpush1.msra.mxu0 1.0
    %2360 = vmatprep.subr.mxu0 0.0
    %2361 = vmatpush1.msra.mxu0 1.0
    %2362 = vmatprep.subr.mxu0 0.0
    %2363 = vmatpush1.msra.mxu0 1.0
    %2364 = vmatprep.subr.mxu0 0.0
    %2365 = vmatpush1.msra.mxu0 1.0
    %2366 = vmatprep.subr.mxu0 0.0
    %2367 = vmatpush1.msra.mxu0 1.0
    %2368 = vmatprep.subr.mxu0 0.0
    %2369 = vmatpush1.msra.mxu0 1.0
    %2370 = vmatprep.subr.mxu0 0.0
    %2371 = vmatpush1.msra.mxu0 1.0
    %2372 = vmatprep.subr.mxu0 0.0
    %2373 = vmatpush1.msra.mxu0 1.0
    %2374 = vmatprep.subr.mxu0 0.0
    %2375 = vmatpush1.msra.mxu0 1.0
    %2376 = vmatprep.subr.mxu0 0.0
    %2377 = vmatpush1.msra.mxu0 1.0
    %2378 = vmatprep.subr.mxu0 0.0
    %2379 = vmatpush1.msra.mxu0 1.0
    %2380 = vmatprep.subr.mxu0 0.0
    %2381 = vmatpush1.msra.mxu0 1.0
    %2382 = vmatprep.subr.mxu0 0.0
    %2383 = vmatpush1.msra.mxu0 0.0
    %2384 = vmatprep.subr.mxu0 0.0
    %2385 = vmatpush1.msra.mxu0 0.0
    %2386 = vmatprep.subr.mxu0 0.0
    %2387 = vmatpush1.msra.mxu0 0.0
    %2388 = vmatprep.subr.mxu0 0.0
    %2389 = vmatpush1.msra.mxu0 0.0
    %2390 = vmatprep.subr.mxu0 0.0
    %2391 = vmatpush1.msra.mxu0 0.0
    %2392 = vmatprep.subr.mxu0 0.0
    %2393 = vmatpush1.msra.mxu0 0.0
    %2394 = vmatprep.subr.mxu0 0.0
    %2395 = vmatpush1.msra.mxu0 0.0
    %2396 = vmatprep.subr.mxu0 0.0
    %2397 = vmatpush1.msra.mxu0 0.0
    %2398 = vmatprep.subr.mxu0 0.0
    %2399 = vmatpush1.msra.mxu0 0.0
    %2400 = vmatprep.subr.mxu0 0.0
    %2401 = vmatpush1.msra.mxu0 0.0
    %2402 = vmatprep.subr.mxu0 0.0
    %2403 = vmatpush1.msra.mxu0 0.0
    %2404 = vmatprep.subr.mxu0 0.0
    %2405 = vmatpush1.msra.mxu0 0.0
    %2406 = vmatprep.subr.mxu0 0.0
    %2407 = vmatpush1.msra.mxu0 0.0
    %2408 = vmatprep.subr.mxu0 0.0
    %2409 = vmatpush1.msra.mxu0 0.0
    %2410 = vmatprep.subr.mxu0 0.0
    %2411 = vmatpush1.msra.mxu0 0.0
    %2412 = vmatprep.subr.mxu0 0.0
    %2413 = vmatpush1.msra.mxu0 0.0
    %2414 = vmatprep.mubr.f32.mxu0 0.0
    %v2415 = vand.u32 %v2341, 4294901760
    %v2416 = vsub.f32 %v2341, %v2415
    %v2417 = vand.u32 %v2416, 4294901760
    %v2418 = vsub.f32 %v2416, %v2417
    %v2419 = vand.u32 %v2418, 4294901760
    %2420 = vmatmul.mubr.f32.gmra.mrb[0].mxu0 %v2419
    %v2421 = vpop.f32.mrb[0].mxu0
    %v2422 = vadd.f32 0.0, %v2421
    %v2423 = vpop.f32.mrb[0].mxu0
    %2424 = vmatprep.mubr.f32.mxu0 0.0
    %v2425 = vand.u32 %v2347, 4294901760
    %v2426 = vsub.f32 %v2347, %v2425
    %v2427 = vand.u32 %v2426, 4294901760
    %v2428 = vsub.f32 %v2426, %v2427
    %v2429 = vand.u32 %v2428, 4294901760
    %2430 = vmatmul.mubr.f32.gmra.mrb[0].mxu0 %v2429
    %v2431 = vpop.f32.mrb[0].mxu0
    %v2432 = vadd.f32 0.0, %v2431
    %v2433 = vpop.f32.mrb[0].mxu0
    %2434 = vdwg.mxu0
    %2435 = vmatprep.subr.mxu0 0.0
    %2436 = vmatpush1.msra.mxu0 0.0
    %2437 = vmatprep.subr.mxu0 0.0
    %2438 = vmatpush1.msra.mxu0 0.0
    %2439 = vmatprep.subr.mxu0 0.0
    %2440 = vmatpush1.msra.mxu0 0.0
    %2441 = vmatprep.subr.mxu0 0.0
    %2442 = vmatpush1.msra.mxu0 0.0
    %2443 = vmatprep.subr.mxu0 0.0
    %2444 = vmatpush1.msra.mxu0 0.0
    %2445 = vmatprep.subr.mxu0 0.0
    %2446 = vmatpush1.msra.mxu0 0.0
    %2447 = vmatprep.subr.mxu0 0.0
    %2448 = vmatpush1.msra.mxu0 0.0
    %2449 = vmatprep.subr.mxu0 0.0
    %2450 = vmatpush1.msra.mxu0 0.0
    %2451 = vmatprep.subr.mxu0 0.0
    %2452 = vmatpush1.msra.mxu0 0.0
    %2453 = vmatprep.subr.mxu0 0.0
    %2454 = vmatpush1.msra.mxu0 0.0
    %2455 = vmatprep.subr.mxu0 0.0
    %2456 = vmatpush1.msra.mxu0 0.0
    %2457 = vmatprep.subr.mxu0 0.0
    %2458 = vmatpush1.msra.mxu0 0.0
    %2459 = vmatprep.subr.mxu0 0.0
    %2460 = vmatpush1.msra.mxu0 0.0
    %2461 = vmatprep.subr.mxu0 0.0
    %2462 = vmatpush1.msra.mxu0 0.0
    %2463 = vmatprep.subr.mxu0 0.0
    %2464 = vmatpush1.msra.mxu0 0.0
    %2465 = vmatprep.subr.mxu0 0.0
    %2466 = vmatpush1.msra.mxu0 0.0
    %2467 = vmatprep.subr.mxu0 0.0
    %2468 = vmatpush1.msra.mxu0 0.0
    %2469 = vmatprep.subr.mxu0 0.0
    %2470 = vmatpush1.msra.mxu0 0.0
    %2471 = vmatprep.subr.mxu0 0.0
    %2472 = vmatpush1.msra.mxu0 0.0
    %2473 = vmatprep.subr.mxu0 0.0
    %2474 = vmatpush1.msra.mxu0 0.0
    %2475 = vmatprep.subr.mxu0 0.0
    %2476 = vmatpush1.msra.mxu0 0.0
    %2477 = vmatprep.subr.mxu0 0.0
    %2478 = vmatpush1.msra.mxu0 0.0
    %2479 = vmatprep.subr.mxu0 0.0
    %2480 = vmatpush1.msra.mxu0 0.0
    %2481 = vmatprep.subr.mxu0 0.0
    %2482 = vmatpush1.msra.mxu0 0.0
    %2483 = vmatprep.subr.mxu0 0.0
    %2484 = vmatpush1.msra.mxu0 0.0
    %2485 = vmatprep.subr.mxu0 0.0
    %2486 = vmatpush1.msra.mxu0 0.0
    %2487 = vmatprep.subr.mxu0 0.0
    %2488 = vmatpush1.msra.mxu0 0.0
    %2489 = vmatprep.subr.mxu0 0.0
    %2490 = vmatpush1.msra.mxu0 0.0
    %2491 = vmatprep.subr.mxu0 0.0
    %2492 = vmatpush1.msra.mxu0 0.0
    %2493 = vmatprep.subr.mxu0 0.0
    %2494 = vmatpush1.msra.mxu0 0.0
    %2495 = vmatprep.subr.mxu0 0.0
    %2496 = vmatpush1.msra.mxu0 0.0
    %2497 = vmatprep.subr.mxu0 0.0
    %2498 = vmatpush1.msra.mxu0 0.0
    %2499 = vmatprep.mubr.f32.mxu0 0.0
    %v2500 = vand.u32 %v2341, 4294901760
    %2501 = vmatmul.mubr.f32.gmra.mrb[0].mxu0 %v2500
    %v2502 = vpop.f32.mrb[0].mxu0
    %v2503 = vadd.f32 %v2422, %v2502
    %v2504 = vpop.f32.mrb[0].mxu0
    %2505 = vmatprep.mubr.f32.mxu0 0.0
    %v2506 = vand.u32 %v2347, 4294901760
    %2507 = vmatmul.mubr.f32.gmra.mrb[0].mxu0 %v2506
    %v2508 = vpop.f32.mrb[0].mxu0
    %v2509 = vadd.f32 %v2432, %v2508
    %v2510 = vpop.f32.mrb[0].mxu0
    %2511 = vdwg.mxu0
    %2512 = vmatprep.subr.mxu0 0.0
    %2513 = vmatpush1.msra.mxu0 0.0
    %2514 = vmatprep.subr.mxu0 0.0
    %2515 = vmatpush1.msra.mxu0 0.0
    %2516 = vmatprep.subr.mxu0 0.0
    %2517 = vmatpush1.msra.mxu0 0.0
    %2518 = vmatprep.subr.mxu0 0.0
    %2519 = vmatpush1.msra.mxu0 0.0
    %2520 = vmatprep.subr.mxu0 0.0
    %2521 = vmatpush1.msra.mxu0 0.0
    %2522 = vmatprep.subr.mxu0 0.0
    %2523 = vmatpush1.msra.mxu0 0.0
    %2524 = vmatprep.subr.mxu0 0.0
    %2525 = vmatpush1.msra.mxu0 0.0
    %2526 = vmatprep.subr.mxu0 0.0
    %2527 = vmatpush1.msra.mxu0 0.0
    %2528 = vmatprep.subr.mxu0 0.0
    %2529 = vmatpush1.msra.mxu0 0.0
    %2530 = vmatprep.subr.mxu0 0.0
    %2531 = vmatpush1.msra.mxu0 0.0
    %2532 = vmatprep.subr.mxu0 0.0
    %2533 = vmatpush1.msra.mxu0 0.0
    %2534 = vmatprep.subr.mxu0 0.0
    %2535 = vmatpush1.msra.mxu0 0.0
    %2536 = vmatprep.subr.mxu0 0.0
    %2537 = vmatpush1.msra.mxu0 0.0
    %2538 = vmatprep.subr.mxu0 0.0
    %2539 = vmatpush1.msra.mxu0 0.0
    %2540 = vmatprep.subr.mxu0 0.0
    %2541 = vmatpush1.msra.mxu0 0.0
    %2542 = vmatprep.subr.mxu0 0.0
    %2543 = vmatpush1.msra.mxu0 0.0
    %2544 = vmatprep.subr.mxu0 0.0
    %2545 = vmatpush1.msra.mxu0 0.0
    %2546 = vmatprep.subr.mxu0 0.0
    %2547 = vmatpush1.msra.mxu0 0.0
    %2548 = vmatprep.subr.mxu0 0.0
    %2549 = vmatpush1.msra.mxu0 0.0
    %2550 = vmatprep.subr.mxu0 0.0
    %2551 = vmatpush1.msra.mxu0 0.0
    %2552 = vmatprep.subr.mxu0 0.0
    %2553 = vmatpush1.msra.mxu0 0.0
    %2554 = vmatprep.subr.mxu0 0.0
    %2555 = vmatpush1.msra.mxu0 0.0
    %2556 = vmatprep.subr.mxu0 0.0
    %2557 = vmatpush1.msra.mxu0 0.0
    %2558 = vmatprep.subr.mxu0 0.0
    %2559 = vmatpush1.msra.mxu0 0.0
    %2560 = vmatprep.subr.mxu0 0.0
    %2561 = vmatpush1.msra.mxu0 0.0
    %2562 = vmatprep.subr.mxu0 0.0
    %2563 = vmatpush1.msra.mxu0 0.0
    %2564 = vmatprep.subr.mxu0 0.0
    %2565 = vmatpush1.msra.mxu0 0.0
    %2566 = vmatprep.subr.mxu0 0.0
    %2567 = vmatpush1.msra.mxu0 0.0
    %2568 = vmatprep.subr.mxu0 0.0
    %2569 = vmatpush1.msra.mxu0 0.0
    %2570 = vmatprep.subr.mxu0 0.0
    %2571 = vmatpush1.msra.mxu0 0.0
    %2572 = vmatprep.subr.mxu0 0.0
    %2573 = vmatpush1.msra.mxu0 0.0
    %2574 = vmatprep.subr.mxu0 0.0
    %2575 = vmatpush1.msra.mxu0 0.0
    %2576 = vmatprep.mubr.f32.mxu0 0.0
    %v2577 = vand.u32 %v2341, 4294901760
    %v2578 = vsub.f32 %v2341, %v2577
    %2579 = vmatmul.mubr.f32.gmra.mrb[0].mxu0 %v2578
    %v2580 = vpop.f32.mrb[0].mxu0
    %v2581 = vadd.f32 %v2503, %v2580
    %v2582 = vpop.f32.mrb[0].mxu0
    %2583 = vmatprep.mubr.f32.mxu0 0.0
    %v2584 = vand.u32 %v2347, 4294901760
    %v2585 = vsub.f32 %v2347, %v2584
    %2586 = vmatmul.mubr.f32.gmra.mrb[0].mxu0 %v2585
    %v2587 = vpop.f32.mrb[0].mxu0
    %v2588 = vadd.f32 %v2509, %v2587
    %v2589 = vpop.f32.mrb[0].mxu0
    %2590 = vdwg.mxu0
    %2591 = vmatprep.subr.mxu0 0.0
    %2592 = vmatpush1.msra.mxu0 1.0
    %2593 = vmatprep.subr.mxu0 0.0
    %2594 = vmatpush1.msra.mxu0 1.0
    %2595 = vmatprep.subr.mxu0 0.0
    %2596 = vmatpush1.msra.mxu0 1.0
    %2597 = vmatprep.subr.mxu0 0.0
    %2598 = vmatpush1.msra.mxu0 1.0
    %2599 = vmatprep.subr.mxu0 0.0
    %2600 = vmatpush1.msra.mxu0 1.0
    %2601 = vmatprep.subr.mxu0 0.0
    %2602 = vmatpush1.msra.mxu0 1.0
    %2603 = vmatprep.subr.mxu0 0.0
    %2604 = vmatpush1.msra.mxu0 1.0
    %2605 = vmatprep.subr.mxu0 0.0
    %2606 = vmatpush1.msra.mxu0 1.0
    %2607 = vmatprep.subr.mxu0 0.0
    %2608 = vmatpush1.msra.mxu0 1.0
    %2609 = vmatprep.subr.mxu0 0.0
    %2610 = vmatpush1.msra.mxu0 1.0
    %2611 = vmatprep.subr.mxu0 0.0
    %2612 = vmatpush1.msra.mxu0 1.0
    %2613 = vmatprep.subr.mxu0 0.0
    %2614 = vmatpush1.msra.mxu0 1.0
    %2615 = vmatprep.subr.mxu0 0.0
    %2616 = vmatpush1.msra.mxu0 1.0
    %2617 = vmatprep.subr.mxu0 0.0
    %2618 = vmatpush1.msra.mxu0 1.0
    %2619 = vmatprep.subr.mxu0 0.0
    %2620 = vmatpush1.msra.mxu0 1.0
    %2621 = vmatprep.subr.mxu0 0.0
    %2622 = vmatpush1.msra.mxu0 1.0
    %2623 = vmatprep.subr.mxu0 0.0
    %2624 = vmatpush1.msra.mxu0 0.0
    %2625 = vmatprep.subr.mxu0 0.0
    %2626 = vmatpush1.msra.mxu0 0.0
    %2627 = vmatprep.subr.mxu0 0.0
    %2628 = vmatpush1.msra.mxu0 0.0
    %2629 = vmatprep.subr.mxu0 0.0
    %2630 = vmatpush1.msra.mxu0 0.0
    %2631 = vmatprep.subr.mxu0 0.0
    %2632 = vmatpush1.msra.mxu0 0.0
    %2633 = vmatprep.subr.mxu0 0.0
    %2634 = vmatpush1.msra.mxu0 0.0
    %2635 = vmatprep.subr.mxu0 0.0
    %2636 = vmatpush1.msra.mxu0 0.0
    %2637 = vmatprep.subr.mxu0 0.0
    %2638 = vmatpush1.msra.mxu0 0.0
    %2639 = vmatprep.subr.mxu0 0.0
    %2640 = vmatpush1.msra.mxu0 0.0
    %2641 = vmatprep.subr.mxu0 0.0
    %2642 = vmatpush1.msra.mxu0 0.0
    %2643 = vmatprep.subr.mxu0 0.0
    %2644 = vmatpush1.msra.mxu0 0.0
    %2645 = vmatprep.subr.mxu0 0.0
    %2646 = vmatpush1.msra.mxu0 0.0
    %2647 = vmatprep.subr.mxu0 0.0
    %2648 = vmatpush1.msra.mxu0 0.0
    %2649 = vmatprep.subr.mxu0 0.0
    %2650 = vmatpush1.msra.mxu0 0.0
    %2651 = vmatprep.subr.mxu0 0.0
    %2652 = vmatpush1.msra.mxu0 0.0
    %2653 = vmatprep.subr.mxu0 0.0
    %2654 = vmatpush1.msra.mxu0 0.0
    %2655 = vmatprep.mubr.f32.mxu0 0.0
    %v2656 = vand.u32 %v2341, 4294901760
    %v2657 = vsub.f32 %v2341, %v2656
    %v2658 = vand.u32 %v2657, 4294901760
    %2659 = vmatmul.mubr.f32.gmra.mrb[0].mxu0 %v2658
    %v2660 = vpop.f32.mrb[0].mxu0
    %v2661 = vadd.f32 %v2581, %v2660
    %v2662 = vpop.f32.mrb[0].mxu0
    %2663 = vmatprep.mubr.f32.mxu0 0.0
    %v2664 = vand.u32 %v2347, 4294901760
    %v2665 = vsub.f32 %v2347, %v2664
    %v2666 = vand.u32 %v2665, 4294901760
    %2667 = vmatmul.mubr.f32.gmra.mrb[0].mxu0 %v2666
    %v2668 = vpop.f32.mrb[0].mxu0
    %v2669 = vadd.f32 %v2588, %v2668
    %v2670 = vpop.f32.mrb[0].mxu0
    %2671 = vdwg.mxu0
    %2672 = vmatprep.subr.mxu0 0.0
    %2673 = vmatpush1.msra.mxu0 0.0
    %2674 = vmatprep.subr.mxu0 0.0
    %2675 = vmatpush1.msra.mxu0 0.0
    %2676 = vmatprep.subr.mxu0 0.0
    %2677 = vmatpush1.msra.mxu0 0.0
    %2678 = vmatprep.subr.mxu0 0.0
    %2679 = vmatpush1.msra.mxu0 0.0
    %2680 = vmatprep.subr.mxu0 0.0
    %2681 = vmatpush1.msra.mxu0 0.0
    %2682 = vmatprep.subr.mxu0 0.0
    %2683 = vmatpush1.msra.mxu0 0.0
    %2684 = vmatprep.subr.mxu0 0.0
    %2685 = vmatpush1.msra.mxu0 0.0
    %2686 = vmatprep.subr.mxu0 0.0
    %2687 = vmatpush1.msra.mxu0 0.0
    %2688 = vmatprep.subr.mxu0 0.0
    %2689 = vmatpush1.msra.mxu0 0.0
    %2690 = vmatprep.subr.mxu0 0.0
    %2691 = vmatpush1.msra.mxu0 0.0
    %2692 = vmatprep.subr.mxu0 0.0
    %2693 = vmatpush1.msra.mxu0 0.0
    %2694 = vmatprep.subr.mxu0 0.0
    %2695 = vmatpush1.msra.mxu0 0.0
    %2696 = vmatprep.subr.mxu0 0.0
    %2697 = vmatpush1.msra.mxu0 0.0
    %2698 = vmatprep.subr.mxu0 0.0
    %2699 = vmatpush1.msra.mxu0 0.0
    %2700 = vmatprep.subr.mxu0 0.0
    %2701 = vmatpush1.msra.mxu0 0.0
    %2702 = vmatprep.subr.mxu0 0.0
    %2703 = vmatpush1.msra.mxu0 0.0
    %2704 = vmatprep.subr.mxu0 0.0
    %2705 = vmatpush1.msra.mxu0 0.0
    %2706 = vmatprep.subr.mxu0 0.0
    %2707 = vmatpush1.msra.mxu0 0.0
    %2708 = vmatprep.subr.mxu0 0.0
    %2709 = vmatpush1.msra.mxu0 0.0
    %2710 = vmatprep.subr.mxu0 0.0
    %2711 = vmatpush1.msra.mxu0 0.0
    %2712 = vmatprep.subr.mxu0 0.0
    %2713 = vmatpush1.msra.mxu0 0.0
    %2714 = vmatprep.subr.mxu0 0.0
    %2715 = vmatpush1.msra.mxu0 0.0
    %2716 = vmatprep.subr.mxu0 0.0
    %2717 = vmatpush1.msra.mxu0 0.0
    %2718 = vmatprep.subr.mxu0 0.0
    %2719 = vmatpush1.msra.mxu0 0.0
    %2720 = vmatprep.subr.mxu0 0.0
    %2721 = vmatpush1.msra.mxu0 0.0
    %2722 = vmatprep.subr.mxu0 0.0
    %2723 = vmatpush1.msra.mxu0 0.0
    %2724 = vmatprep.subr.mxu0 0.0
    %2725 = vmatpush1.msra.mxu0 0.0
    %2726 = vmatprep.subr.mxu0 0.0
    %2727 = vmatpush1.msra.mxu0 0.0
    %2728 = vmatprep.subr.mxu0 0.0
    %2729 = vmatpush1.msra.mxu0 0.0
    %2730 = vmatprep.subr.mxu0 0.0
    %2731 = vmatpush1.msra.mxu0 0.0
    %2732 = vmatprep.subr.mxu0 0.0
    %2733 = vmatpush1.msra.mxu0 0.0
    %2734 = vmatprep.subr.mxu0 0.0
    %2735 = vmatpush1.msra.mxu0 0.0
    %2736 = vmatprep.mubr.f32.mxu0 0.0
    %v2737 = vand.u32 %v2341, 4294901760
    %2738 = vmatmul.mubr.f32.gmra.mrb[0].mxu0 %v2737
    %v2739 = vpop.f32.mrb[0].mxu0
    %v2740 = vadd.f32 %v2661, %v2739
    %v2741 = vpop.f32.mrb[0].mxu0
    %2742 = vmatprep.mubr.f32.mxu0 0.0
    %v2743 = vand.u32 %v2347, 4294901760
    %2744 = vmatmul.mubr.f32.gmra.mrb[0].mxu0 %v2743
    %v2745 = vpop.f32.mrb[0].mxu0
    %v2746 = vadd.f32 %v2669, %v2745
    %v2747 = vpop.f32.mrb[0].mxu0
    %2748 = vdwg.mxu0
    %2749 = vmatprep.subr.mxu0 0.0
    %2750 = vmatpush1.msra.mxu0 1.0
    %2751 = vmatprep.subr.mxu0 0.0
    %2752 = vmatpush1.msra.mxu0 1.0
    %2753 = vmatprep.subr.mxu0 0.0
    %2754 = vmatpush1.msra.mxu0 1.0
    %2755 = vmatprep.subr.mxu0 0.0
    %2756 = vmatpush1.msra.mxu0 1.0
    %2757 = vmatprep.subr.mxu0 0.0
    %2758 = vmatpush1.msra.mxu0 1.0
    %2759 = vmatprep.subr.mxu0 0.0
    %2760 = vmatpush1.msra.mxu0 1.0
    %2761 = vmatprep.subr.mxu0 0.0
    %2762 = vmatpush1.msra.mxu0 1.0
    %2763 = vmatprep.subr.mxu0 0.0
    %2764 = vmatpush1.msra.mxu0 1.0
    %2765 = vmatprep.subr.mxu0 0.0
    %2766 = vmatpush1.msra.mxu0 1.0
    %2767 = vmatprep.subr.mxu0 0.0
    %2768 = vmatpush1.msra.mxu0 1.0
    %2769 = vmatprep.subr.mxu0 0.0
    %2770 = vmatpush1.msra.mxu0 1.0
    %2771 = vmatprep.subr.mxu0 0.0
    %2772 = vmatpush1.msra.mxu0 1.0
    %2773 = vmatprep.subr.mxu0 0.0
    %2774 = vmatpush1.msra.mxu0 1.0
    %2775 = vmatprep.subr.mxu0 0.0
    %2776 = vmatpush1.msra.mxu0 1.0
    %2777 = vmatprep.subr.mxu0 0.0
    %2778 = vmatpush1.msra.mxu0 1.0
    %2779 = vmatprep.subr.mxu0 0.0
    %2780 = vmatpush1.msra.mxu0 1.0
    %2781 = vmatprep.subr.mxu0 0.0
    %2782 = vmatpush1.msra.mxu0 0.0
    %2783 = vmatprep.subr.mxu0 0.0
    %2784 = vmatpush1.msra.mxu0 0.0
    %2785 = vmatprep.subr.mxu0 0.0
    %2786 = vmatpush1.msra.mxu0 0.0
    %2787 = vmatprep.subr.mxu0 0.0
    %2788 = vmatpush1.msra.mxu0 0.0
    %2789 = vmatprep.subr.mxu0 0.0
    %2790 = vmatpush1.msra.mxu0 0.0
    %2791 = vmatprep.subr.mxu0 0.0
    %2792 = vmatpush1.msra.mxu0 0.0
    %2793 = vmatprep.subr.mxu0 0.0
    %2794 = vmatpush1.msra.mxu0 0.0
    %2795 = vmatprep.subr.mxu0 0.0
    %2796 = vmatpush1.msra.mxu0 0.0
    %2797 = vmatprep.subr.mxu0 0.0
    %2798 = vmatpush1.msra.mxu0 0.0
    %2799 = vmatprep.subr.mxu0 0.0
    %2800 = vmatpush1.msra.mxu0 0.0
    %2801 = vmatprep.subr.mxu0 0.0
    %2802 = vmatpush1.msra.mxu0 0.0
    %2803 = vmatprep.subr.mxu0 0.0
    %2804 = vmatpush1.msra.mxu0 0.0
    %2805 = vmatprep.subr.mxu0 0.0
    %2806 = vmatpush1.msra.mxu0 0.0
    %2807 = vmatprep.subr.mxu0 0.0
    %2808 = vmatpush1.msra.mxu0 0.0
    %2809 = vmatprep.subr.mxu0 0.0
    %2810 = vmatpush1.msra.mxu0 0.0
    %2811 = vmatprep.subr.mxu0 0.0
    %2812 = vmatpush1.msra.mxu0 0.0
    %2813 = vmatprep.mubr.f32.mxu0 0.0
    %v2814 = vand.u32 %v2341, 4294901760
    %2815 = vmatmul.mubr.f32.gmra.mrb[0].mxu0 %v2814
    %v2816 = vpop.f32.mrb[0].mxu0
    %v2817 = vadd.f32 %v2740, %v2816
    %v2818 = vpop.f32.mrb[0].mxu0
    %2819 = vmatprep.mubr.f32.mxu0 0.0
    %v2820 = vand.u32 %v2347, 4294901760
    %2821 = vmatmul.mubr.f32.gmra.mrb[0].mxu0 %v2820
    %v2822 = vpop.f32.mrb[0].mxu0
    %v2823 = vadd.f32 %v2746, %v2822
    %v2824 = vpop.f32.mrb[0].mxu0
    %2825 = vdwg.mxu0
    %v2826 = vmul.f32 %v2817, 0.015625
    %v2827 = vmul.f32 %v2823, 0.015625
    %v2828 = vmul.f32 %v2341, %v2341
    %v2829 = vmul.f32 %v2347, %v2347
    %2830 = vmatprep.subr.mxu0 0.0
    %2831 = vmatpush1.msra.mxu0 1.0
    %2832 = vmatprep.subr.mxu0 0.0
    %2833 = vmatpush1.msra.mxu0 1.0
    %2834 = vmatprep.subr.mxu0 0.0
    %2835 = vmatpush1.msra.mxu0 1.0
    %2836 = vmatprep.subr.mxu0 0.0
    %2837 = vmatpush1.msra.mxu0 1.0
    %2838 = vmatprep.subr.mxu0 0.0
    %2839 = vmatpush1.msra.mxu0 1.0
    %2840 = vmatprep.subr.mxu0 0.0
    %2841 = vmatpush1.msra.mxu0 1.0
    %2842 = vmatprep.subr.mxu0 0.0
    %2843 = vmatpush1.msra.mxu0 1.0
    %2844 = vmatprep.subr.mxu0 0.0
    %2845 = vmatpush1.msra.mxu0 1.0
    %2846 = vmatprep.subr.mxu0 0.0
    %2847 = vmatpush1.msra.mxu0 1.0
    %2848 = vmatprep.subr.mxu0 0.0
    %2849 = vmatpush1.msra.mxu0 1.0
    %2850 = vmatprep.subr.mxu0 0.0
    %2851 = vmatpush1.msra.mxu0 1.0
    %2852 = vmatprep.subr.mxu0 0.0
    %2853 = vmatpush1.msra.mxu0 1.0
    %2854 = vmatprep.subr.mxu0 0.0
    %2855 = vmatpush1.msra.mxu0 1.0
    %2856 = vmatprep.subr.mxu0 0.0
    %2857 = vmatpush1.msra.mxu0 1.0
    %2858 = vmatprep.subr.mxu0 0.0
    %2859 = vmatpush1.msra.mxu0 1.0
    %2860 = vmatprep.subr.mxu0 0.0
    %2861 = vmatpush1.msra.mxu0 1.0
    %2862 = vmatprep.subr.mxu0 0.0
    %2863 = vmatpush1.msra.mxu0 0.0
    %2864 = vmatprep.subr.mxu0 0.0
    %2865 = vmatpush1.msra.mxu0 0.0
    %2866 = vmatprep.subr.mxu0 0.0
    %2867 = vmatpush1.msra.mxu0 0.0
    %2868 = vmatprep.subr.mxu0 0.0
    %2869 = vmatpush1.msra.mxu0 0.0
    %2870 = vmatprep.subr.mxu0 0.0
    %2871 = vmatpush1.msra.mxu0 0.0
    %2872 = vmatprep.subr.mxu0 0.0
    %2873 = vmatpush1.msra.mxu0 0.0
    %2874 = vmatprep.subr.mxu0 0.0
    %2875 = vmatpush1.msra.mxu0 0.0
    %2876 = vmatprep.subr.mxu0 0.0
    %2877 = vmatpush1.msra.mxu0 0.0
    %2878 = vmatprep.subr.mxu0 0.0
    %2879 = vmatpush1.msra.mxu0 0.0
    %2880 = vmatprep.subr.mxu0 0.0
    %2881 = vmatpush1.msra.mxu0 0.0
    %2882 = vmatprep.subr.mxu0 0.0
    %2883 = vmatpush1.msra.mxu0 0.0
    %2884 = vmatprep.subr.mxu0 0.0
    %2885 = vmatpush1.msra.mxu0 0.0
    %2886 = vmatprep.subr.mxu0 0.0
    %2887 = vmatpush1.msra.mxu0 0.0
    %2888 = vmatprep.subr.mxu0 0.0
    %2889 = vmatpush1.msra.mxu0 0.0
    %2890 = vmatprep.subr.mxu0 0.0
    %2891 = vmatpush1.msra.mxu0 0.0
    %2892 = vmatprep.subr.mxu0 0.0
    %2893 = vmatpush1.msra.mxu0 0.0
    %2894 = vmatprep.mubr.f32.mxu0 0.0
    %v2895 = vand.u32 %v2828, 4294901760
    %v2896 = vsub.f32 %v2828, %v2895
    %v2897 = vand.u32 %v2896, 4294901760
    %v2898 = vsub.f32 %v2896, %v2897
    %v2899 = vand.u32 %v2898, 4294901760
    %2900 = vmatmul.mubr.f32.gmra.mrb[0].mxu0 %v2899
    %v2901 = vpop.f32.mrb[0].mxu0
    %v2902 = vadd.f32 0.0, %v2901
    %v2903 = vpop.f32.mrb[0].mxu0
    %2904 = vmatprep.mubr.f32.mxu0 0.0
    %v2905 = vand.u32 %v2829, 4294901760
    %v2906 = vsub.f32 %v2829, %v2905
    %v2907 = vand.u32 %v2906, 4294901760
    %v2908 = vsub.f32 %v2906, %v2907
    %v2909 = vand.u32 %v2908, 4294901760
    %2910 = vmatmul.mubr.f32.gmra.mrb[0].mxu0 %v2909
    %v2911 = vpop.f32.mrb[0].mxu0
    %v2912 = vadd.f32 0.0, %v2911
    %v2913 = vpop.f32.mrb[0].mxu0
    %2914 = vdwg.mxu0
    %2915 = vmatprep.subr.mxu0 0.0
    %2916 = vmatpush1.msra.mxu0 0.0
    %2917 = vmatprep.subr.mxu0 0.0
    %2918 = vmatpush1.msra.mxu0 0.0
    %2919 = vmatprep.subr.mxu0 0.0
    %2920 = vmatpush1.msra.mxu0 0.0
    %2921 = vmatprep.subr.mxu0 0.0
    %2922 = vmatpush1.msra.mxu0 0.0
    %2923 = vmatprep.subr.mxu0 0.0
    %2924 = vmatpush1.msra.mxu0 0.0
    %2925 = vmatprep.subr.mxu0 0.0
    %2926 = vmatpush1.msra.mxu0 0.0
    %2927 = vmatprep.subr.mxu0 0.0
    %2928 = vmatpush1.msra.mxu0 0.0
    %2929 = vmatprep.subr.mxu0 0.0
    %2930 = vmatpush1.msra.mxu0 0.0
    %2931 = vmatprep.subr.mxu0 0.0
    %2932 = vmatpush1.msra.mxu0 0.0
    %2933 = vmatprep.subr.mxu0 0.0
    %2934 = vmatpush1.msra.mxu0 0.0
    %2935 = vmatprep.subr.mxu0 0.0
    %2936 = vmatpush1.msra.mxu0 0.0
    %2937 = vmatprep.subr.mxu0 0.0
    %2938 = vmatpush1.msra.mxu0 0.0
    %2939 = vmatprep.subr.mxu0 0.0
    %2940 = vmatpush1.msra.mxu0 0.0
    %2941 = vmatprep.subr.mxu0 0.0
    %2942 = vmatpush1.msra.mxu0 0.0
    %2943 = vmatprep.subr.mxu0 0.0
    %2944 = vmatpush1.msra.mxu0 0.0
    %2945 = vmatprep.subr.mxu0 0.0
    %2946 = vmatpush1.msra.mxu0 0.0
    %2947 = vmatprep.subr.mxu0 0.0
    %2948 = vmatpush1.msra.mxu0 0.0
    %2949 = vmatprep.subr.mxu0 0.0
    %2950 = vmatpush1.msra.mxu0 0.0
    %2951 = vmatprep.subr.mxu0 0.0
    %2952 = vmatpush1.msra.mxu0 0.0
    %2953 = vmatprep.subr.mxu0 0.0
    %2954 = vmatpush1.msra.mxu0 0.0
    %2955 = vmatprep.subr.mxu0 0.0
    %2956 = vmatpush1.msra.mxu0 0.0
    %2957 = vmatprep.subr.mxu0 0.0
    %2958 = vmatpush1.msra.mxu0 0.0
    %2959 = vmatprep.subr.mxu0 0.0
    %2960 = vmatpush1.msra.mxu0 0.0
    %2961 = vmatprep.subr.mxu0 0.0
    %2962 = vmatpush1.msra.mxu0 0.0
    %2963 = vmatprep.subr.mxu0 0.0
    %2964 = vmatpush1.msra.mxu0 0.0
    %2965 = vmatprep.subr.mxu0 0.0
    %2966 = vmatpush1.msra.mxu0 0.0
    %2967 = vmatprep.subr.mxu0 0.0
    %2968 = vmatpush1.msra.mxu0 0.0
    %2969 = vmatprep.subr.mxu0 0.0
    %2970 = vmatpush1.msra.mxu0 0.0
    %2971 = vmatprep.subr.mxu0 0.0
    %2972 = vmatpush1.msra.mxu0 0.0
    %2973 = vmatprep.subr.mxu0 0.0
    %2974 = vmatpush1.msra.mxu0 0.0
    %2975 = vmatprep.subr.mxu0 0.0
    %2976 = vmatpush1.msra.mxu0 0.0
    %2977 = vmatprep.subr.mxu0 0.0
    %2978 = vmatpush1.msra.mxu0 0.0
    %2979 = vmatprep.mubr.f32.mxu0 0.0
    %v2980 = vand.u32 %v2828, 4294901760
    %2981 = vmatmul.mubr.f32.gmra.mrb[0].mxu0 %v2980
    %v2982 = vpop.f32.mrb[0].mxu0
    %v2983 = vadd.f32 %v2902, %v2982
    %v2984 = vpop.f32.mrb[0].mxu0
    %2985 = vmatprep.mubr.f32.mxu0 0.0
    %v2986 = vand.u32 %v2829, 4294901760
    %2987 = vmatmul.mubr.f32.gmra.mrb[0].mxu0 %v2986
    %v2988 = vpop.f32.mrb[0].mxu0
    %v2989 = vadd.f32 %v2912, %v2988
    %v2990 = vpop.f32.mrb[0].mxu0
    %2991 = vdwg.mxu0
    %2992 = vmatprep.subr.mxu0 0.0
    %2993 = vmatpush1.msra.mxu0 0.0
    %2994 = vmatprep.subr.mxu0 0.0
    %2995 = vmatpush1.msra.mxu0 0.0
    %2996 = vmatprep.subr.mxu0 0.0
    %2997 = vmatpush1.msra.mxu0 0.0
    %2998 = vmatprep.subr.mxu0 0.0
    %2999 = vmatpush1.msra.mxu0 0.0
    %3000 = vmatprep.subr.mxu0 0.0
    %3001 = vmatpush1.msra.mxu0 0.0
    %3002 = vmatprep.subr.mxu0 0.0
    %3003 = vmatpush1.msra.mxu0 0.0
    %3004 = vmatprep.subr.mxu0 0.0
    %3005 = vmatpush1.msra.mxu0 0.0
    %3006 = vmatprep.subr.mxu0 0.0
    %3007 = vmatpush1.msra.mxu0 0.0
    %3008 = vmatprep.subr.mxu0 0.0
    %3009 = vmatpush1.msra.mxu0 0.0
    %3010 = vmatprep.subr.mxu0 0.0
    %3011 = vmatpush1.msra.mxu0 0.0
    %3012 = vmatprep.subr.mxu0 0.0
    %3013 = vmatpush1.msra.mxu0 0.0
    %3014 = vmatprep.subr.mxu0 0.0
    %3015 = vmatpush1.msra.mxu0 0.0
    %3016 = vmatprep.subr.mxu0 0.0
    %3017 = vmatpush1.msra.mxu0 0.0
    %3018 = vmatprep.subr.mxu0 0.0
    %3019 = vmatpush1.msra.mxu0 0.0
    %3020 = vmatprep.subr.mxu0 0.0
    %3021 = vmatpush1.msra.mxu0 0.0
    %3022 = vmatprep.subr.mxu0 0.0
    %3023 = vmatpush1.msra.mxu0 0.0
    %3024 = vmatprep.subr.mxu0 0.0
    %3025 = vmatpush1.msra.mxu0 0.0
    %3026 = vmatprep.subr.mxu0 0.0
    %3027 = vmatpush1.msra.mxu0 0.0
    %3028 = vmatprep.subr.mxu0 0.0
    %3029 = vmatpush1.msra.mxu0 0.0
    %3030 = vmatprep.subr.mxu0 0.0
    %3031 = vmatpush1.msra.mxu0 0.0
    %3032 = vmatprep.subr.mxu0 0.0
    %3033 = vmatpush1.msra.mxu0 0.0
    %3034 = vmatprep.subr.mxu0 0.0
    %3035 = vmatpush1.msra.mxu0 0.0
    %3036 = vmatprep.subr.mxu0 0.0
    %3037 = vmatpush1.msra.mxu0 0.0
    %3038 = vmatprep.subr.mxu0 0.0
    %3039 = vmatpush1.msra.mxu0 0.0
    %3040 = vmatprep.subr.mxu0 0.0
    %3041 = vmatpush1.msra.mxu0 0.0
    %3042 = vmatprep.subr.mxu0 0.0
    %3043 = vmatpush1.msra.mxu0 0.0
    %3044 = vmatprep.subr.mxu0 0.0
    %3045 = vmatpush1.msra.mxu0 0.0
    %3046 = vmatprep.subr.mxu0 0.0
    %3047 = vmatpush1.msra.mxu0 0.0
    %3048 = vmatprep.subr.mxu0 0.0
    %3049 = vmatpush1.msra.mxu0 0.0
    %3050 = vmatprep.subr.mxu0 0.0
    %3051 = vmatpush1.msra.mxu0 0.0
    %3052 = vmatprep.subr.mxu0 0.0
    %3053 = vmatpush1.msra.mxu0 0.0
    %3054 = vmatprep.subr.mxu0 0.0
    %3055 = vmatpush1.msra.mxu0 0.0
    %3056 = vmatprep.mubr.f32.mxu0 0.0
    %v3057 = vand.u32 %v2828, 4294901760
    %v3058 = vsub.f32 %v2828, %v3057
    %3059 = vmatmul.mubr.f32.gmra.mrb[0].mxu0 %v3058
    %v3060 = vpop.f32.mrb[0].mxu0
    %v3061 = vadd.f32 %v2983, %v3060
    %v3062 = vpop.f32.mrb[0].mxu0
    %3063 = vmatprep.mubr.f32.mxu0 0.0
    %v3064 = vand.u32 %v2829, 4294901760
    %v3065 = vsub.f32 %v2829, %v3064
    %3066 = vmatmul.mubr.f32.gmra.mrb[0].mxu0 %v3065
    %v3067 = vpop.f32.mrb[0].mxu0
    %v3068 = vadd.f32 %v2989, %v3067
    %v3069 = vpop.f32.mrb[0].mxu0
    %3070 = vdwg.mxu0
    %3071 = vmatprep.subr.mxu0 0.0
    %3072 = vmatpush1.msra.mxu0 1.0
    %3073 = vmatprep.subr.mxu0 0.0
    %3074 = vmatpush1.msra.mxu0 1.0
    %3075 = vmatprep.subr.mxu0 0.0
    %3076 = vmatpush1.msra.mxu0 1.0
    %3077 = vmatprep.subr.mxu0 0.0
    %3078 = vmatpush1.msra.mxu0 1.0
    %3079 = vmatprep.subr.mxu0 0.0
    %3080 = vmatpush1.msra.mxu0 1.0
    %3081 = vmatprep.subr.mxu0 0.0
    %3082 = vmatpush1.msra.mxu0 1.0
    %3083 = vmatprep.subr.mxu0 0.0
    %3084 = vmatpush1.msra.mxu0 1.0
    %3085 = vmatprep.subr.mxu0 0.0
    %3086 = vmatpush1.msra.mxu0 1.0
    %3087 = vmatprep.subr.mxu0 0.0
    %3088 = vmatpush1.msra.mxu0 1.0
    %3089 = vmatprep.subr.mxu0 0.0
    %3090 = vmatpush1.msra.mxu0 1.0
    %3091 = vmatprep.subr.mxu0 0.0
    %3092 = vmatpush1.msra.mxu0 1.0
    %3093 = vmatprep.subr.mxu0 0.0
    %3094 = vmatpush1.msra.mxu0 1.0
    %3095 = vmatprep.subr.mxu0 0.0
    %3096 = vmatpush1.msra.mxu0 1.0
    %3097 = vmatprep.subr.mxu0 0.0
    %3098 = vmatpush1.msra.mxu0 1.0
    %3099 = vmatprep.subr.mxu0 0.0
    %3100 = vmatpush1.msra.mxu0 1.0
    %3101 = vmatprep.subr.mxu0 0.0
    %3102 = vmatpush1.msra.mxu0 1.0
    %3103 = vmatprep.subr.mxu0 0.0
    %3104 = vmatpush1.msra.mxu0 0.0
    %3105 = vmatprep.subr.mxu0 0.0
    %3106 = vmatpush1.msra.mxu0 0.0
    %3107 = vmatprep.subr.mxu0 0.0
    %3108 = vmatpush1.msra.mxu0 0.0
    %3109 = vmatprep.subr.mxu0 0.0
    %3110 = vmatpush1.msra.mxu0 0.0
    %3111 = vmatprep.subr.mxu0 0.0
    %3112 = vmatpush1.msra.mxu0 0.0
    %3113 = vmatprep.subr.mxu0 0.0
    %3114 = vmatpush1.msra.mxu0 0.0
    %3115 = vmatprep.subr.mxu0 0.0
    %3116 = vmatpush1.msra.mxu0 0.0
    %3117 = vmatprep.subr.mxu0 0.0
    %3118 = vmatpush1.msra.mxu0 0.0
    %3119 = vmatprep.subr.mxu0 0.0
    %3120 = vmatpush1.msra.mxu0 0.0
    %3121 = vmatprep.subr.mxu0 0.0
    %3122 = vmatpush1.msra.mxu0 0.0
    %3123 = vmatprep.subr.mxu0 0.0
    %3124 = vmatpush1.msra.mxu0 0.0
    %3125 = vmatprep.subr.mxu0 0.0
    %3126 = vmatpush1.msra.mxu0 0.0
    %3127 = vmatprep.subr.mxu0 0.0
    %3128 = vmatpush1.msra.mxu0 0.0
    %3129 = vmatprep.subr.mxu0 0.0
    %3130 = vmatpush1.msra.mxu0 0.0
    %3131 = vmatprep.subr.mxu0 0.0
    %3132 = vmatpush1.msra.mxu0 0.0
    %3133 = vmatprep.subr.mxu0 0.0
    %3134 = vmatpush1.msra.mxu0 0.0
    %3135 = vmatprep.mubr.f32.mxu0 0.0
    %v3136 = vand.u32 %v2828, 4294901760
    %v3137 = vsub.f32 %v2828, %v3136
    %v3138 = vand.u32 %v3137, 4294901760
    %3139 = vmatmul.mubr.f32.gmra.mrb[0].mxu0 %v3138
    %v3140 = vpop.f32.mrb[0].mxu0
    %v3141 = vadd.f32 %v3061, %v3140
    %v3142 = vpop.f32.mrb[0].mxu0
    %3143 = vmatprep.mubr.f32.mxu0 0.0
    %v3144 = vand.u32 %v2829, 4294901760
    %v3145 = vsub.f32 %v2829, %v3144
    %v3146 = vand.u32 %v3145, 4294901760
    %3147 = vmatmul.mubr.f32.gmra.mrb[0].mxu0 %v3146
    %v3148 = vpop.f32.mrb[0].mxu0
    %v3149 = vadd.f32 %v3068, %v3148
    %v3150 = vpop.f32.mrb[0].mxu0
    %3151 = vdwg.mxu0
    %3152 = vmatprep.subr.mxu0 0.0
    %3153 = vmatpush1.msra.mxu0 0.0
    %3154 = vmatprep.subr.mxu0 0.0
    %3155 = vmatpush1.msra.mxu0 0.0
    %3156 = vmatprep.subr.mxu0 0.0
    %3157 = vmatpush1.msra.mxu0 0.0
    %3158 = vmatprep.subr.mxu0 0.0
    %3159 = vmatpush1.msra.mxu0 0.0
    %3160 = vmatprep.subr.mxu0 0.0
    %3161 = vmatpush1.msra.mxu0 0.0
    %3162 = vmatprep.subr.mxu0 0.0
    %3163 = vmatpush1.msra.mxu0 0.0
    %3164 = vmatprep.subr.mxu0 0.0
    %3165 = vmatpush1.msra.mxu0 0.0
    %3166 = vmatprep.subr.mxu0 0.0
    %3167 = vmatpush1.msra.mxu0 0.0
    %3168 = vmatprep.subr.mxu0 0.0
    %3169 = vmatpush1.msra.mxu0 0.0
    %3170 = vmatprep.subr.mxu0 0.0
    %3171 = vmatpush1.msra.mxu0 0.0
    %3172 = vmatprep.subr.mxu0 0.0
    %3173 = vmatpush1.msra.mxu0 0.0
    %3174 = vmatprep.subr.mxu0 0.0
    %3175 = vmatpush1.msra.mxu0 0.0
    %3176 = vmatprep.subr.mxu0 0.0
    %3177 = vmatpush1.msra.mxu0 0.0
    %3178 = vmatprep.subr.mxu0 0.0
    %3179 = vmatpush1.msra.mxu0 0.0
    %3180 = vmatprep.subr.mxu0 0.0
    %3181 = vmatpush1.msra.mxu0 0.0
    %3182 = vmatprep.subr.mxu0 0.0
    %3183 = vmatpush1.msra.mxu0 0.0
    %3184 = vmatprep.subr.mxu0 0.0
    %3185 = vmatpush1.msra.mxu0 0.0
    %3186 = vmatprep.subr.mxu0 0.0
    %3187 = vmatpush1.msra.mxu0 0.0
    %3188 = vmatprep.subr.mxu0 0.0
    %3189 = vmatpush1.msra.mxu0 0.0
    %3190 = vmatprep.subr.mxu0 0.0
    %3191 = vmatpush1.msra.mxu0 0.0
    %3192 = vmatprep.subr.mxu0 0.0
    %3193 = vmatpush1.msra.mxu0 0.0
    %3194 = vmatprep.subr.mxu0 0.0
    %3195 = vmatpush1.msra.mxu0 0.0
    %3196 = vmatprep.subr.mxu0 0.0
    %3197 = vmatpush1.msra.mxu0 0.0
    %3198 = vmatprep.subr.mxu0 0.0
    %3199 = vmatpush1.msra.mxu0 0.0
    %3200 = vmatprep.subr.mxu0 0.0
    %3201 = vmatpush1.msra.mxu0 0.0
    %3202 = vmatprep.subr.mxu0 0.0
    %3203 = vmatpush1.msra.mxu0 0.0
    %3204 = vmatprep.subr.mxu0 0.0
    %3205 = vmatpush1.msra.mxu0 0.0
    %3206 = vmatprep.subr.mxu0 0.0
    %3207 = vmatpush1.msra.mxu0 0.0
    %3208 = vmatprep.subr.mxu0 0.0
    %3209 = vmatpush1.msra.mxu0 0.0
    %3210 = vmatprep.subr.mxu0 0.0
    %3211 = vmatpush1.msra.mxu0 0.0
    %3212 = vmatprep.subr.mxu0 0.0
    %3213 = vmatpush1.msra.mxu0 0.0
    %3214 = vmatprep.subr.mxu0 0.0
    %3215 = vmatpush1.msra.mxu0 0.0
    %3216 = vmatprep.mubr.f32.mxu0 0.0
    %v3217 = vand.u32 %v2828, 4294901760
    %3218 = vmatmul.mubr.f32.gmra.mrb[0].mxu0 %v3217
    %v3219 = vpop.f32.mrb[0].mxu0
    %v3220 = vadd.f32 %v3141, %v3219
    %v3221 = vpop.f32.mrb[0].mxu0
    %3222 = vmatprep.mubr.f32.mxu0 0.0
    %v3223 = vand.u32 %v2829, 4294901760
    %3224 = vmatmul.mubr.f32.gmra.mrb[0].mxu0 %v3223
    %v3225 = vpop.f32.mrb[0].mxu0
    %v3226 = vadd.f32 %v3149, %v3225
    %v3227 = vpop.f32.mrb[0].mxu0
    %3228 = vdwg.mxu0
    %3229 = vmatprep.subr.mxu0 0.0
    %3230 = vmatpush1.msra.mxu0 1.0
    %3231 = vmatprep.subr.mxu0 0.0
    %3232 = vmatpush1.msra.mxu0 1.0
    %3233 = vmatprep.subr.mxu0 0.0
    %3234 = vmatpush1.msra.mxu0 1.0
    %3235 = vmatprep.subr.mxu0 0.0
    %3236 = vmatpush1.msra.mxu0 1.0
    %3237 = vmatprep.subr.mxu0 0.0
    %3238 = vmatpush1.msra.mxu0 1.0
    %3239 = vmatprep.subr.mxu0 0.0
    %3240 = vmatpush1.msra.mxu0 1.0
    %3241 = vmatprep.subr.mxu0 0.0
    %3242 = vmatpush1.msra.mxu0 1.0
    %3243 = vmatprep.subr.mxu0 0.0
    %3244 = vmatpush1.msra.mxu0 1.0
    %3245 = vmatprep.subr.mxu0 0.0
    %3246 = vmatpush1.msra.mxu0 1.0
    %3247 = vmatprep.subr.mxu0 0.0
    %3248 = vmatpush1.msra.mxu0 1.0
    %3249 = vmatprep.subr.mxu0 0.0
    %3250 = vmatpush1.msra.mxu0 1.0
    %3251 = vmatprep.subr.mxu0 0.0
    %3252 = vmatpush1.msra.mxu0 1.0
    %3253 = vmatprep.subr.mxu0 0.0
    %3254 = vmatpush1.msra.mxu0 1.0
    %3255 = vmatprep.subr.mxu0 0.0
    %3256 = vmatpush1.msra.mxu0 1.0
    %3257 = vmatprep.subr.mxu0 0.0
    %3258 = vmatpush1.msra.mxu0 1.0
    %3259 = vmatprep.subr.mxu0 0.0
    %3260 = vmatpush1.msra.mxu0 1.0
    %3261 = vmatprep.subr.mxu0 0.0
    %3262 = vmatpush1.msra.mxu0 0.0
    %3263 = vmatprep.subr.mxu0 0.0
    %3264 = vmatpush1.msra.mxu0 0.0
    %3265 = vmatprep.subr.mxu0 0.0
    %3266 = vmatpush1.msra.mxu0 0.0
    %3267 = vmatprep.subr.mxu0 0.0
    %3268 = vmatpush1.msra.mxu0 0.0
    %3269 = vmatprep.subr.mxu0 0.0
    %3270 = vmatpush1.msra.mxu0 0.0
    %3271 = vmatprep.subr.mxu0 0.0
    %3272 = vmatpush1.msra.mxu0 0.0
    %3273 = vmatprep.subr.mxu0 0.0
    %3274 = vmatpush1.msra.mxu0 0.0
    %3275 = vmatprep.subr.mxu0 0.0
    %3276 = vmatpush1.msra.mxu0 0.0
    %3277 = vmatprep.subr.mxu0 0.0
    %3278 = vmatpush1.msra.mxu0 0.0
    %3279 = vmatprep.subr.mxu0 0.0
    %3280 = vmatpush1.msra.mxu0 0.0
    %3281 = vmatprep.subr.mxu0 0.0
    %3282 = vmatpush1.msra.mxu0 0.0
    %3283 = vmatprep.subr.mxu0 0.0
    %3284 = vmatpush1.msra.mxu0 0.0
    %3285 = vmatprep.subr.mxu0 0.0
    %3286 = vmatpush1.msra.mxu0 0.0
    %3287 = vmatprep.subr.mxu0 0.0
    %3288 = vmatpush1.msra.mxu0 0.0
    %3289 = vmatprep.subr.mxu0 0.0
    %3290 = vmatpush1.msra.mxu0 0.0
    %3291 = vmatprep.subr.mxu0 0.0
    %3292 = vmatpush1.msra.mxu0 0.0
    %3293 = vmatprep.mubr.f32.mxu0 0.0
    %v3294 = vand.u32 %v2828, 4294901760
    %3295 = vmatmul.mubr.f32.gmra.mrb[0].mxu0 %v3294
    %v3296 = vpop.f32.mrb[0].mxu0
    %v3297 = vadd.f32 %v3220, %v3296
    %v3298 = vpop.f32.mrb[0].mxu0
    %3299 = vmatprep.mubr.f32.mxu0 0.0
    %v3300 = vand.u32 %v2829, 4294901760
    %3301 = vmatmul.mubr.f32.gmra.mrb[0].mxu0 %v3300
    %v3302 = vpop.f32.mrb[0].mxu0
    %v3303 = vadd.f32 %v3226, %v3302
    %v3304 = vpop.f32.mrb[0].mxu0
    %3305 = vdwg.mxu0
    %v3306 = vmul.f32 %v3297, 0.015625
    %v3307 = vmul.f32 %v3303, 0.015625
    %v3308 = vmul.f32 %v2826, %v2826
    %v3309 = vmul.f32 %v2827, %v2827
    %v3310 = vsub.f32 %v3306, %v3308
    %v3311 = vsub.f32 %v3307, %v3309
    %v3312 = vmax.f32 %v3310, 0.0
    %v3313 = vmax.f32 %v3311, 0.0
    %3315 = vset.pattern.permute.xlu0 0
    %3316 = vperm.xlu0 %3315, %v2826
    %v3317 = vpop.permute.xlu0 %3316
    %3320 = vset.pattern.permute.xlu0 0
    %3321 = vperm.xlu0 %3320, %v2827
    %v3322 = vpop.permute.xlu0 %3321
    %v3324 = vsub.f32 %v2341, %v3317
    %v3325 = vsub.f32 %v2347, %v3322
    %v3326 = vadd.f32 %v3312, 1e-05
    %v3327 = vadd.f32 %v3313, 1e-05
    %v3328 = vrsqrt.pop %v3326
    %v3329 = vrsqrt.pop %v3327
    %3331 = vset.pattern.permute.xlu0 0
    %3332 = vperm.xlu0 %3331, %v3328
    %v3333 = vpop.permute.xlu0 %3332
    %3336 = vset.pattern.permute.xlu0 0
    %3337 = vperm.xlu0 %3336, %v3329
    %v3338 = vpop.permute.xlu0 %3337
    %v3340 = vmul.f32 %v3324, %v3333
    %v3341 = vmul.f32 %v3325, %v3338
    %v3342 = vlaneseq
    %v3343 = vshrl.u32 %v3342, 7
    %v3344 = vsub.s32 4, %v3343
    %v3345 = vrot.slane %v88, %v3344
    %v3346 = vmul.f32 %v3340, %v3345
    %v3347 = vmul.f32 %v3341, %v3345
    %v3348 = vlaneseq
    %v3349 = vshrl.u32 %v3348, 7
    %v3350 = vsub.s32 5, %v3349
    %v3351 = vrot.slane %v88, %v3350
    %v3352 = vadd.f32 %v3346, %v3351
    %v3353 = vadd.f32 %v3347, %v3351
    %v3354 = vmul.f32 %v3352, 0.5
    %v3355 = vmul.f32 %v3353, 0.5
    %v3356 = vmul.f32 %v3352, 0.70710677
    %v3357 = vmul.f32 %v3353, 0.70710677
    %v3358 = verf.f32.pop %v3356
    %v3359 = verf.f32.pop %v3357
    %v3360 = vadd.f32 %v3358, 1.0
    %v3361 = vadd.f32 %v3359, 1.0
    %v3362 = vmul.f32 %v3354, %v3360
    %v3363 = vmul.f32 %v3355, %v3361
    %v3364 = vld [vmem:[#allocation9] sm:$0xff]
    %v3365 = vld [vmem:[#allocation9 + $0x8] sm:$0xff]
    %v3366 = vld [vmem:[#allocation9 + $0x10] sm:$0xff]
    %v3367 = vld [vmem:[#allocation9 + $0x18] sm:$0xff]
    %v3368 = vld [vmem:[#allocation9 + $0x20] sm:$0xff]
    %v3369 = vld [vmem:[#allocation9 + $0x28] sm:$0xff]
    %v3370 = vld [vmem:[#allocation9 + $0x30] sm:$0xff]
    %v3371 = vld [vmem:[#allocation9 + $0x38] sm:$0xff]
    %v3372 = vld [vmem:[#allocation9 + $0x40] sm:$0xff]
    %v3373 = vld [vmem:[#allocation9 + $0x48] sm:$0xff]
    %v3374 = vld [vmem:[#allocation9 + $0x50] sm:$0xff]
    %v3375 = vld [vmem:[#allocation9 + $0x58] sm:$0xff]
    %v3376 = vld [vmem:[#allocation9 + $0x60] sm:$0xff]
    %v3377 = vld [vmem:[#allocation9 + $0x68] sm:$0xff]
    %v3378 = vld [vmem:[#allocation9 + $0x70] sm:$0xff]
    %v3379 = vld [vmem:[#allocation9 + $0x78] sm:$0xff]
    %v3380 = vlaneseq
    %v3381 = vshrl.u32 %v3380, 7
    %v3382 = vsub.s32 7, %v3381
    %v3383 = vrot.slane %v88, %v3382
    %3384 = vmatprep.subr.mxu0 0.0
    %v3385 = vand.u32 %v3364, 4294901760
    %3386 = vmatpush1.msra.mxu0 %v3385
    %3387 = vmatprep.subr.mxu0 0.0
    %v3388 = vand.u32 %v3365, 4294901760
    %3389 = vmatpush1.msra.mxu0 %v3388
    %3390 = vmatprep.subr.mxu0 0.0
    %v3391 = vand.u32 %v3366, 4294901760
    %3392 = vmatpush1.msra.mxu0 %v3391
    %3393 = vmatprep.subr.mxu0 0.0
    %v3394 = vand.u32 %v3367, 4294901760
    %3395 = vmatpush1.msra.mxu0 %v3394
    %3396 = vmatprep.subr.mxu0 0.0
    %v3397 = vand.u32 %v3368, 4294901760
    %3398 = vmatpush1.msra.mxu0 %v3397
    %3399 = vmatprep.subr.mxu0 0.0
    %v3400 = vand.u32 %v3369, 4294901760
    %3401 = vmatpush1.msra.mxu0 %v3400
    %3402 = vmatprep.subr.mxu0 0.0
    %v3403 = vand.u32 %v3370, 4294901760
    %3404 = vmatpush1.msra.mxu0 %v3403
    %3405 = vmatprep.subr.mxu0 0.0
    %v3406 = vand.u32 %v3371, 4294901760
    %3407 = vmatpush1.msra.mxu0 %v3406
    %3408 = vmatprep.subr.mxu0 0.0
    %v3409 = vand.u32 %v3372, 4294901760
    %3410 = vmatpush1.msra.mxu0 %v3409
    %3411 = vmatprep.subr.mxu0 0.0
    %v3412 = vand.u32 %v3373, 4294901760
    %3413 = vmatpush1.msra.mxu0 %v3412
    %3414 = vmatprep.subr.mxu0 0.0
    %v3415 = vand.u32 %v3374, 4294901760
    %3416 = vmatpush1.msra.mxu0 %v3415
    %3417 = vmatprep.subr.mxu0 0.0
    %v3418 = vand.u32 %v3375, 4294901760
    %3419 = vmatpush1.msra.mxu0 %v3418
    %3420 = vmatprep.subr.mxu0 0.0
    %v3421 = vand.u32 %v3376, 4294901760
    %3422 = vmatpush1.msra.mxu0 %v3421
    %3423 = vmatprep.subr.mxu0 0.0
    %v3424 = vand.u32 %v3377, 4294901760
    %3425 = vmatpush1.msra.mxu0 %v3424
    %3426 = vmatprep.subr.mxu0 0.0
    %v3427 = vand.u32 %v3378, 4294901760
    %3428 = vmatpush1.msra.mxu0 %v3427
    %3429 = vmatprep.subr.mxu0 0.0
    %v3430 = vand.u32 %v3379, 4294901760
    %3431 = vmatpush1.msra.mxu0 %v3430
    %3432 = vmatprep.subr.mxu0 0.0
    %3433 = vmatpush1.msra.mxu0 0.0
    %3434 = vmatprep.subr.mxu0 0.0
    %3435 = vmatpush1.msra.mxu0 0.0
    %3436 = vmatprep.subr.mxu0 0.0
    %3437 = vmatpush1.msra.mxu0 0.0
    %3438 = vmatprep.subr.mxu0 0.0
    %3439 = vmatpush1.msra.mxu0 0.0
    %3440 = vmatprep.subr.mxu0 0.0
    %3441 = vmatpush1.msra.mxu0 0.0
    %3442 = vmatprep.subr.mxu0 0.0
    %3443 = vmatpush1.msra.mxu0 0.0
    %3444 = vmatprep.subr.mxu0 0.0
    %3445 = vmatpush1.msra.mxu0 0.0
    %3446 = vmatprep.subr.mxu0 0.0
    %3447 = vmatpush1.msra.mxu0 0.0
    %3448 = vmatprep.subr.mxu0 0.0
    %3449 = vmatpush1.msra.mxu0 0.0
    %3450 = vmatprep.subr.mxu0 0.0
    %3451 = vmatpush1.msra.mxu0 0.0
    %3452 = vmatprep.subr.mxu0 0.0
    %3453 = vmatpush1.msra.mxu0 0.0
    %3454 = vmatprep.subr.mxu0 0.0
    %3455 = vmatpush1.msra.mxu0 0.0
    %3456 = vmatprep.subr.mxu0 0.0
    %3457 = vmatpush1.msra.mxu0 0.0
    %3458 = vmatprep.subr.mxu0 0.0
    %3459 = vmatpush1.msra.mxu0 0.0
    %3460 = vmatprep.subr.mxu0 0.0
    %3461 = vmatpush1.msra.mxu0 0.0
    %3462 = vmatprep.subr.mxu0 0.0
    %3463 = vmatpush1.msra.mxu0 0.0
    %3464 = vmatprep.mubr.f32.mxu0 0.0
    %v3465 = vand.u32 %v3362, 4294901760
    %v3466 = vsub.f32 %v3362, %v3465
    %v3467 = vand.u32 %v3466, 4294901760
    %v3468 = vsub.f32 %v3466, %v3467
    %v3469 = vand.u32 %v3468, 4294901760
    %3470 = vmatmul.mubr.f32.gmra.mrb[0].mxu0 %v3469
    %v3471 = vpop.f32.mrb[0].mxu0
    %v3472 = vadd.f32 %v3383, %v3471
    %v3473 = vpop.f32.mrb[0].mxu0
    %3474 = vmatprep.mubr.f32.mxu0 0.0
    %v3475 = vand.u32 %v3363, 4294901760
    %v3476 = vsub.f32 %v3363, %v3475
    %v3477 = vand.u32 %v3476, 4294901760
    %v3478 = vsub.f32 %v3476, %v3477
    %v3479 = vand.u32 %v3478, 4294901760
    %3480 = vmatmul.mubr.f32.gmra.mrb[0].mxu0 %v3479
    %v3481 = vpop.f32.mrb[0].mxu0
    %v3482 = vadd.f32 %v3383, %v3481
    %v3483 = vpop.f32.mrb[0].mxu0
    %3484 = vdwg.mxu0
    %3485 = vmatprep.subr.mxu0 0.0
    %v3486 = vand.u32 %v3364, 4294901760
    %v3487 = vsub.f32 %v3364, %v3486
    %v3488 = vand.u32 %v3487, 4294901760
    %v3489 = vsub.f32 %v3487, %v3488
    %v3490 = vand.u32 %v3489, 4294901760
    %3491 = vmatpush1.msra.mxu0 %v3490
    %3492 = vmatprep.subr.mxu0 0.0
    %v3493 = vand.u32 %v3365, 4294901760
    %v3494 = vsub.f32 %v3365, %v3493
    %v3495 = vand.u32 %v3494, 4294901760
    %v3496 = vsub.f32 %v3494, %v3495
    %v3497 = vand.u32 %v3496, 4294901760
    %3498 = vmatpush1.msra.mxu0 %v3497
    %3499 = vmatprep.subr.mxu0 0.0
    %v3500 = vand.u32 %v3366, 4294901760
    %v3501 = vsub.f32 %v3366, %v3500
    %v3502 = vand.u32 %v3501, 4294901760
    %v3503 = vsub.f32 %v3501, %v3502
    %v3504 = vand.u32 %v3503, 4294901760
    %3505 = vmatpush1.msra.mxu0 %v3504
    %3506 = vmatprep.subr.mxu0 0.0
    %v3507 = vand.u32 %v3367, 4294901760
    %v3508 = vsub.f32 %v3367, %v3507
    %v3509 = vand.u32 %v3508, 4294901760
    %v3510 = vsub.f32 %v3508, %v3509
    %v3511 = vand.u32 %v3510, 4294901760
    %3512 = vmatpush1.msra.mxu0 %v3511
    %3513 = vmatprep.subr.mxu0 0.0
    %v3514 = vand.u32 %v3368, 4294901760
    %v3515 = vsub.f32 %v3368, %v3514
    %v3516 = vand.u32 %v3515, 4294901760
    %v3517 = vsub.f32 %v3515, %v3516
    %v3518 = vand.u32 %v3517, 4294901760
    %3519 = vmatpush1.msra.mxu0 %v3518
    %3520 = vmatprep.subr.mxu0 0.0
    %v3521 = vand.u32 %v3369, 4294901760
    %v3522 = vsub.f32 %v3369, %v3521
    %v3523 = vand.u32 %v3522, 4294901760
    %v3524 = vsub.f32 %v3522, %v3523
    %v3525 = vand.u32 %v3524, 4294901760
    %3526 = vmatpush1.msra.mxu0 %v3525
    %3527 = vmatprep.subr.mxu0 0.0
    %v3528 = vand.u32 %v3370, 4294901760
    %v3529 = vsub.f32 %v3370, %v3528
    %v3530 = vand.u32 %v3529, 4294901760
    %v3531 = vsub.f32 %v3529, %v3530
    %v3532 = vand.u32 %v3531, 4294901760
    %3533 = vmatpush1.msra.mxu0 %v3532
    %3534 = vmatprep.subr.mxu0 0.0
    %v3535 = vand.u32 %v3371, 4294901760
    %v3536 = vsub.f32 %v3371, %v3535
    %v3537 = vand.u32 %v3536, 4294901760
    %v3538 = vsub.f32 %v3536, %v3537
    %v3539 = vand.u32 %v3538, 4294901760
    %3540 = vmatpush1.msra.mxu0 %v3539
    %3541 = vmatprep.subr.mxu0 0.0
    %v3542 = vand.u32 %v3372, 4294901760
    %v3543 = vsub.f32 %v3372, %v3542
    %v3544 = vand.u32 %v3543, 4294901760
    %v3545 = vsub.f32 %v3543, %v3544
    %v3546 = vand.u32 %v3545, 4294901760
    %3547 = vmatpush1.msra.mxu0 %v3546
    %3548 = vmatprep.subr.mxu0 0.0
    %v3549 = vand.u32 %v3373, 4294901760
    %v3550 = vsub.f32 %v3373, %v3549
    %v3551 = vand.u32 %v3550, 4294901760
    %v3552 = vsub.f32 %v3550, %v3551
    %v3553 = vand.u32 %v3552, 4294901760
    %3554 = vmatpush1.msra.mxu0 %v3553
    %3555 = vmatprep.subr.mxu0 0.0
    %v3556 = vand.u32 %v3374, 4294901760
    %v3557 = vsub.f32 %v3374, %v3556
    %v3558 = vand.u32 %v3557, 4294901760
    %v3559 = vsub.f32 %v3557, %v3558
    %v3560 = vand.u32 %v3559, 4294901760
    %3561 = vmatpush1.msra.mxu0 %v3560
    %3562 = vmatprep.subr.mxu0 0.0
    %v3563 = vand.u32 %v3375, 4294901760
    %v3564 = vsub.f32 %v3375, %v3563
    %v3565 = vand.u32 %v3564, 4294901760
    %v3566 = vsub.f32 %v3564, %v3565
    %v3567 = vand.u32 %v3566, 4294901760
    %3568 = vmatpush1.msra.mxu0 %v3567
    %3569 = vmatprep.subr.mxu0 0.0
    %v3570 = vand.u32 %v3376, 4294901760
    %v3571 = vsub.f32 %v3376, %v3570
    %v3572 = vand.u32 %v3571, 4294901760
    %v3573 = vsub.f32 %v3571, %v3572
    %v3574 = vand.u32 %v3573, 4294901760
    %3575 = vmatpush1.msra.mxu0 %v3574
    %3576 = vmatprep.subr.mxu0 0.0
    %v3577 = vand.u32 %v3377, 4294901760
    %v3578 = vsub.f32 %v3377, %v3577
    %v3579 = vand.u32 %v3578, 4294901760
    %v3580 = vsub.f32 %v3578, %v3579
    %v3581 = vand.u32 %v3580, 4294901760
    %3582 = vmatpush1.msra.mxu0 %v3581
    %3583 = vmatprep.subr.mxu0 0.0
    %v3584 = vand.u32 %v3378, 4294901760
    %v3585 = vsub.f32 %v3378, %v3584
    %v3586 = vand.u32 %v3585, 4294901760
    %v3587 = vsub.f32 %v3585, %v3586
    %v3588 = vand.u32 %v3587, 4294901760
    %3589 = vmatpush1.msra.mxu0 %v3588
    %3590 = vmatprep.subr.mxu0 0.0
    %v3591 = vand.u32 %v3379, 4294901760
    %v3592 = vsub.f32 %v3379, %v3591
    %v3593 = vand.u32 %v3592, 4294901760
    %v3594 = vsub.f32 %v3592, %v3593
    %v3595 = vand.u32 %v3594, 4294901760
    %3596 = vmatpush1.msra.mxu0 %v3595
    %3597 = vmatprep.subr.mxu0 0.0
    %3598 = vmatpush1.msra.mxu0 0.0
    %3599 = vmatprep.subr.mxu0 0.0
    %3600 = vmatpush1.msra.mxu0 0.0
    %3601 = vmatprep.subr.mxu0 0.0
    %3602 = vmatpush1.msra.mxu0 0.0
    %3603 = vmatprep.subr.mxu0 0.0
    %3604 = vmatpush1.msra.mxu0 0.0
    %3605 = vmatprep.subr.mxu0 0.0
    %3606 = vmatpush1.msra.mxu0 0.0
    %3607 = vmatprep.subr.mxu0 0.0
    %3608 = vmatpush1.msra.mxu0 0.0
    %3609 = vmatprep.subr.mxu0 0.0
    %3610 = vmatpush1.msra.mxu0 0.0
    %3611 = vmatprep.subr.mxu0 0.0
    %3612 = vmatpush1.msra.mxu0 0.0
    %3613 = vmatprep.subr.mxu0 0.0
    %3614 = vmatpush1.msra.mxu0 0.0
    %3615 = vmatprep.subr.mxu0 0.0
    %3616 = vmatpush1.msra.mxu0 0.0
    %3617 = vmatprep.subr.mxu0 0.0
    %3618 = vmatpush1.msra.mxu0 0.0
    %3619 = vmatprep.subr.mxu0 0.0
    %3620 = vmatpush1.msra.mxu0 0.0
    %3621 = vmatprep.subr.mxu0 0.0
    %3622 = vmatpush1.msra.mxu0 0.0
    %3623 = vmatprep.subr.mxu0 0.0
    %3624 = vmatpush1.msra.mxu0 0.0
    %3625 = vmatprep.subr.mxu0 0.0
    %3626 = vmatpush1.msra.mxu0 0.0
    %3627 = vmatprep.subr.mxu0 0.0
    %3628 = vmatpush1.msra.mxu0 0.0
    %3629 = vmatprep.mubr.f32.mxu0 0.0
    %v3630 = vand.u32 %v3362, 4294901760
    %3631 = vmatmul.mubr.f32.gmra.mrb[0].mxu0 %v3630
    %v3632 = vpop.f32.mrb[0].mxu0
    %v3633 = vadd.f32 %v3472, %v3632
    %v3634 = vpop.f32.mrb[0].mxu0
    %3635 = vmatprep.mubr.f32.mxu0 0.0
    %v3636 = vand.u32 %v3363, 4294901760
    %3637 = vmatmul.mubr.f32.gmra.mrb[0].mxu0 %v3636
    %v3638 = vpop.f32.mrb[0].mxu0
    %v3639 = vadd.f32 %v3482, %v3638
    %v3640 = vpop.f32.mrb[0].mxu0
    %3641 = vdwg.mxu0
    %3642 = vmatprep.subr.mxu0 0.0
    %v3643 = vand.u32 %v3364, 4294901760
    %v3644 = vsub.f32 %v3364, %v3643
    %3645 = vmatpush1.msra.mxu0 %v3644
    %3646 = vmatprep.subr.mxu0 0.0
    %v3647 = vand.u32 %v3365, 4294901760
    %v3648 = vsub.f32 %v3365, %v3647
    %3649 = vmatpush1.msra.mxu0 %v3648
    %3650 = vmatprep.subr.mxu0 0.0
    %v3651 = vand.u32 %v3366, 4294901760
    %v3652 = vsub.f32 %v3366, %v3651
    %3653 = vmatpush1.msra.mxu0 %v3652
    %3654 = vmatprep.subr.mxu0 0.0
    %v3655 = vand.u32 %v3367, 4294901760
    %v3656 = vsub.f32 %v3367, %v3655
    %3657 = vmatpush1.msra.mxu0 %v3656
    %3658 = vmatprep.subr.mxu0 0.0
    %v3659 = vand.u32 %v3368, 4294901760
    %v3660 = vsub.f32 %v3368, %v3659
    %3661 = vmatpush1.msra.mxu0 %v3660
    %3662 = vmatprep.subr.mxu0 0.0
    %v3663 = vand.u32 %v3369, 4294901760
    %v3664 = vsub.f32 %v3369, %v3663
    %3665 = vmatpush1.msra.mxu0 %v3664
    %3666 = vmatprep.subr.mxu0 0.0
    %v3667 = vand.u32 %v3370, 4294901760
    %v3668 = vsub.f32 %v3370, %v3667
    %3669 = vmatpush1.msra.mxu0 %v3668
    %3670 = vmatprep.subr.mxu0 0.0
    %v3671 = vand.u32 %v3371, 4294901760
    %v3672 = vsub.f32 %v3371, %v3671
    %3673 = vmatpush1.msra.mxu0 %v3672
    %3674 = vmatprep.subr.mxu0 0.0
    %v3675 = vand.u32 %v3372, 4294901760
    %v3676 = vsub.f32 %v3372, %v3675
    %3677 = vmatpush1.msra.mxu0 %v3676
    %3678 = vmatprep.subr.mxu0 0.0
    %v3679 = vand.u32 %v3373, 4294901760
    %v3680 = vsub.f32 %v3373, %v3679
    %3681 = vmatpush1.msra.mxu0 %v3680
    %3682 = vmatprep.subr.mxu0 0.0
    %v3683 = vand.u32 %v3374, 4294901760
    %v3684 = vsub.f32 %v3374, %v3683
    %3685 = vmatpush1.msra.mxu0 %v3684
    %3686 = vmatprep.subr.mxu0 0.0
    %v3687 = vand.u32 %v3375, 4294901760
    %v3688 = vsub.f32 %v3375, %v3687
    %3689 = vmatpush1.msra.mxu0 %v3688
    %3690 = vmatprep.subr.mxu0 0.0
    %v3691 = vand.u32 %v3376, 4294901760
    %v3692 = vsub.f32 %v3376, %v3691
    %3693 = vmatpush1.msra.mxu0 %v3692
    %3694 = vmatprep.subr.mxu0 0.0
    %v3695 = vand.u32 %v3377, 4294901760
    %v3696 = vsub.f32 %v3377, %v3695
    %3697 = vmatpush1.msra.mxu0 %v3696
    %3698 = vmatprep.subr.mxu0 0.0
    %v3699 = vand.u32 %v3378, 4294901760
    %v3700 = vsub.f32 %v3378, %v3699
    %3701 = vmatpush1.msra.mxu0 %v3700
    %3702 = vmatprep.subr.mxu0 0.0
    %v3703 = vand.u32 %v3379, 4294901760
    %v3704 = vsub.f32 %v3379, %v3703
    %3705 = vmatpush1.msra.mxu0 %v3704
    %3706 = vmatprep.subr.mxu0 0.0
    %3707 = vmatpush1.msra.mxu0 0.0
    %3708 = vmatprep.subr.mxu0 0.0
    %3709 = vmatpush1.msra.mxu0 0.0
    %3710 = vmatprep.subr.mxu0 0.0
    %3711 = vmatpush1.msra.mxu0 0.0
    %3712 = vmatprep.subr.mxu0 0.0
    %3713 = vmatpush1.msra.mxu0 0.0
    %3714 = vmatprep.subr.mxu0 0.0
    %3715 = vmatpush1.msra.mxu0 0.0
    %3716 = vmatprep.subr.mxu0 0.0
    %3717 = vmatpush1.msra.mxu0 0.0
    %3718 = vmatprep.subr.mxu0 0.0
    %3719 = vmatpush1.msra.mxu0 0.0
    %3720 = vmatprep.subr.mxu0 0.0
    %3721 = vmatpush1.msra.mxu0 0.0
    %3722 = vmatprep.subr.mxu0 0.0
    %3723 = vmatpush1.msra.mxu0 0.0
    %3724 = vmatprep.subr.mxu0 0.0
    %3725 = vmatpush1.msra.mxu0 0.0
    %3726 = vmatprep.subr.mxu0 0.0
    %3727 = vmatpush1.msra.mxu0 0.0
    %3728 = vmatprep.subr.mxu0 0.0
    %3729 = vmatpush1.msra.mxu0 0.0
    %3730 = vmatprep.subr.mxu0 0.0
    %3731 = vmatpush1.msra.mxu0 0.0
    %3732 = vmatprep.subr.mxu0 0.0
    %3733 = vmatpush1.msra.mxu0 0.0
    %3734 = vmatprep.subr.mxu0 0.0
    %3735 = vmatpush1.msra.mxu0 0.0
    %3736 = vmatprep.subr.mxu0 0.0
    %3737 = vmatpush1.msra.mxu0 0.0
    %3738 = vmatprep.mubr.f32.mxu0 0.0
    %v3739 = vand.u32 %v3362, 4294901760
    %v3740 = vsub.f32 %v3362, %v3739
    %3741 = vmatmul.mubr.f32.gmra.mrb[0].mxu0 %v3740
    %v3742 = vpop.f32.mrb[0].mxu0
    %v3743 = vadd.f32 %v3633, %v3742
    %v3744 = vpop.f32.mrb[0].mxu0
    %3745 = vmatprep.mubr.f32.mxu0 0.0
    %v3746 = vand.u32 %v3363, 4294901760
    %v3747 = vsub.f32 %v3363, %v3746
    %3748 = vmatmul.mubr.f32.gmra.mrb[0].mxu0 %v3747
    %v3749 = vpop.f32.mrb[0].mxu0
    %v3750 = vadd.f32 %v3639, %v3749
    %v3751 = vpop.f32.mrb[0].mxu0
    %3752 = vdwg.mxu0
    %3753 = vmatprep.subr.mxu0 0.0
    %v3754 = vand.u32 %v3364, 4294901760
    %3755 = vmatpush1.msra.mxu0 %v3754
    %3756 = vmatprep.subr.mxu0 0.0
    %v3757 = vand.u32 %v3365, 4294901760
    %3758 = vmatpush1.msra.mxu0 %v3757
    %3759 = vmatprep.subr.mxu0 0.0
    %v3760 = vand.u32 %v3366, 4294901760
    %3761 = vmatpush1.msra.mxu0 %v3760
    %3762 = vmatprep.subr.mxu0 0.0
    %v3763 = vand.u32 %v3367, 4294901760
    %3764 = vmatpush1.msra.mxu0 %v3763
    %3765 = vmatprep.subr.mxu0 0.0
    %v3766 = vand.u32 %v3368, 4294901760
    %3767 = vmatpush1.msra.mxu0 %v3766
    %3768 = vmatprep.subr.mxu0 0.0
    %v3769 = vand.u32 %v3369, 4294901760
    %3770 = vmatpush1.msra.mxu0 %v3769
    %3771 = vmatprep.subr.mxu0 0.0
    %v3772 = vand.u32 %v3370, 4294901760
    %3773 = vmatpush1.msra.mxu0 %v3772
    %3774 = vmatprep.subr.mxu0 0.0
    %v3775 = vand.u32 %v3371, 4294901760
    %3776 = vmatpush1.msra.mxu0 %v3775
    %3777 = vmatprep.subr.mxu0 0.0
    %v3778 = vand.u32 %v3372, 4294901760
    %3779 = vmatpush1.msra.mxu0 %v3778
    %3780 = vmatprep.subr.mxu0 0.0
    %v3781 = vand.u32 %v3373, 4294901760
    %3782 = vmatpush1.msra.mxu0 %v3781
    %3783 = vmatprep.subr.mxu0 0.0
    %v3784 = vand.u32 %v3374, 4294901760
    %3785 = vmatpush1.msra.mxu0 %v3784
    %3786 = vmatprep.subr.mxu0 0.0
    %v3787 = vand.u32 %v3375, 4294901760
    %3788 = vmatpush1.msra.mxu0 %v3787
    %3789 = vmatprep.subr.mxu0 0.0
    %v3790 = vand.u32 %v3376, 4294901760
    %3791 = vmatpush1.msra.mxu0 %v3790
    %3792 = vmatprep.subr.mxu0 0.0
    %v3793 = vand.u32 %v3377, 4294901760
    %3794 = vmatpush1.msra.mxu0 %v3793
    %3795 = vmatprep.subr.mxu0 0.0
    %v3796 = vand.u32 %v3378, 4294901760
    %3797 = vmatpush1.msra.mxu0 %v3796
    %3798 = vmatprep.subr.mxu0 0.0
    %v3799 = vand.u32 %v3379, 4294901760
    %3800 = vmatpush1.msra.mxu0 %v3799
    %3801 = vmatprep.subr.mxu0 0.0
    %3802 = vmatpush1.msra.mxu0 0.0
    %3803 = vmatprep.subr.mxu0 0.0
    %3804 = vmatpush1.msra.mxu0 0.0
    %3805 = vmatprep.subr.mxu0 0.0
    %3806 = vmatpush1.msra.mxu0 0.0
    %3807 = vmatprep.subr.mxu0 0.0
    %3808 = vmatpush1.msra.mxu0 0.0
    %3809 = vmatprep.subr.mxu0 0.0
    %3810 = vmatpush1.msra.mxu0 0.0
    %3811 = vmatprep.subr.mxu0 0.0
    %3812 = vmatpush1.msra.mxu0 0.0
    %3813 = vmatprep.subr.mxu0 0.0
    %3814 = vmatpush1.msra.mxu0 0.0
    %3815 = vmatprep.subr.mxu0 0.0
    %3816 = vmatpush1.msra.mxu0 0.0
    %3817 = vmatprep.subr.mxu0 0.0
    %3818 = vmatpush1.msra.mxu0 0.0
    %3819 = vmatprep.subr.mxu0 0.0
    %3820 = vmatpush1.msra.mxu0 0.0
    %3821 = vmatprep.subr.mxu0 0.0
    %3822 = vmatpush1.msra.mxu0 0.0
    %3823 = vmatprep.subr.mxu0 0.0
    %3824 = vmatpush1.msra.mxu0 0.0
    %3825 = vmatprep.subr.mxu0 0.0
    %3826 = vmatpush1.msra.mxu0 0.0
    %3827 = vmatprep.subr.mxu0 0.0
    %3828 = vmatpush1.msra.mxu0 0.0
    %3829 = vmatprep.subr.mxu0 0.0
    %3830 = vmatpush1.msra.mxu0 0.0
    %3831 = vmatprep.subr.mxu0 0.0
    %3832 = vmatpush1.msra.mxu0 0.0
    %3833 = vmatprep.mubr.f32.mxu0 0.0
    %v3834 = vand.u32 %v3362, 4294901760
    %v3835 = vsub.f32 %v3362, %v3834
    %v3836 = vand.u32 %v3835, 4294901760
    %3837 = vmatmul.mubr.f32.gmra.mrb[0].mxu0 %v3836
    %v3838 = vpop.f32.mrb[0].mxu0
    %v3839 = vadd.f32 %v3743, %v3838
    %v3840 = vpop.f32.mrb[0].mxu0
    %3841 = vmatprep.mubr.f32.mxu0 0.0
    %v3842 = vand.u32 %v3363, 4294901760
    %v3843 = vsub.f32 %v3363, %v3842
    %v3844 = vand.u32 %v3843, 4294901760
    %3845 = vmatmul.mubr.f32.gmra.mrb[0].mxu0 %v3844
    %v3846 = vpop.f32.mrb[0].mxu0
    %v3847 = vadd.f32 %v3750, %v3846
    %v3848 = vpop.f32.mrb[0].mxu0
    %3849 = vdwg.mxu0
    %3850 = vmatprep.subr.mxu0 0.0
    %v3851 = vand.u32 %v3364, 4294901760
    %v3852 = vsub.f32 %v3364, %v3851
    %v3853 = vand.u32 %v3852, 4294901760
    %3854 = vmatpush1.msra.mxu0 %v3853
    %3855 = vmatprep.subr.mxu0 0.0
    %v3856 = vand.u32 %v3365, 4294901760
    %v3857 = vsub.f32 %v3365, %v3856
    %v3858 = vand.u32 %v3857, 4294901760
    %3859 = vmatpush1.msra.mxu0 %v3858
    %3860 = vmatprep.subr.mxu0 0.0
    %v3861 = vand.u32 %v3366, 4294901760
    %v3862 = vsub.f32 %v3366, %v3861
    %v3863 = vand.u32 %v3862, 4294901760
    %3864 = vmatpush1.msra.mxu0 %v3863
    %3865 = vmatprep.subr.mxu0 0.0
    %v3866 = vand.u32 %v3367, 4294901760
    %v3867 = vsub.f32 %v3367, %v3866
    %v3868 = vand.u32 %v3867, 4294901760
    %3869 = vmatpush1.msra.mxu0 %v3868
    %3870 = vmatprep.subr.mxu0 0.0
    %v3871 = vand.u32 %v3368, 4294901760
    %v3872 = vsub.f32 %v3368, %v3871
    %v3873 = vand.u32 %v3872, 4294901760
    %3874 = vmatpush1.msra.mxu0 %v3873
    %3875 = vmatprep.subr.mxu0 0.0
    %v3876 = vand.u32 %v3369, 4294901760
    %v3877 = vsub.f32 %v3369, %v3876
    %v3878 = vand.u32 %v3877, 4294901760
    %3879 = vmatpush1.msra.mxu0 %v3878
    %3880 = vmatprep.subr.mxu0 0.0
    %v3881 = vand.u32 %v3370, 4294901760
    %v3882 = vsub.f32 %v3370, %v3881
    %v3883 = vand.u32 %v3882, 4294901760
    %3884 = vmatpush1.msra.mxu0 %v3883
    %3885 = vmatprep.subr.mxu0 0.0
    %v3886 = vand.u32 %v3371, 4294901760
    %v3887 = vsub.f32 %v3371, %v3886
    %v3888 = vand.u32 %v3887, 4294901760
    %3889 = vmatpush1.msra.mxu0 %v3888
    %3890 = vmatprep.subr.mxu0 0.0
    %v3891 = vand.u32 %v3372, 4294901760
    %v3892 = vsub.f32 %v3372, %v3891
    %v3893 = vand.u32 %v3892, 4294901760
    %3894 = vmatpush1.msra.mxu0 %v3893
    %3895 = vmatprep.subr.mxu0 0.0
    %v3896 = vand.u32 %v3373, 4294901760
    %v3897 = vsub.f32 %v3373, %v3896
    %v3898 = vand.u32 %v3897, 4294901760
    %3899 = vmatpush1.msra.mxu0 %v3898
    %3900 = vmatprep.subr.mxu0 0.0
    %v3901 = vand.u32 %v3374, 4294901760
    %v3902 = vsub.f32 %v3374, %v3901
    %v3903 = vand.u32 %v3902, 4294901760
    %3904 = vmatpush1.msra.mxu0 %v3903
    %3905 = vmatprep.subr.mxu0 0.0
    %v3906 = vand.u32 %v3375, 4294901760
    %v3907 = vsub.f32 %v3375, %v3906
    %v3908 = vand.u32 %v3907, 4294901760
    %3909 = vmatpush1.msra.mxu0 %v3908
    %3910 = vmatprep.subr.mxu0 0.0
    %v3911 = vand.u32 %v3376, 4294901760
    %v3912 = vsub.f32 %v3376, %v3911
    %v3913 = vand.u32 %v3912, 4294901760
    %3914 = vmatpush1.msra.mxu0 %v3913
    %3915 = vmatprep.subr.mxu0 0.0
    %v3916 = vand.u32 %v3377, 4294901760
    %v3917 = vsub.f32 %v3377, %v3916
    %v3918 = vand.u32 %v3917, 4294901760
    %3919 = vmatpush1.msra.mxu0 %v3918
    %3920 = vmatprep.subr.mxu0 0.0
    %v3921 = vand.u32 %v3378, 4294901760
    %v3922 = vsub.f32 %v3378, %v3921
    %v3923 = vand.u32 %v3922, 4294901760
    %3924 = vmatpush1.msra.mxu0 %v3923
    %3925 = vmatprep.subr.mxu0 0.0
    %v3926 = vand.u32 %v3379, 4294901760
    %v3927 = vsub.f32 %v3379, %v3926
    %v3928 = vand.u32 %v3927, 4294901760
    %3929 = vmatpush1.msra.mxu0 %v3928
    %3930 = vmatprep.subr.mxu0 0.0
    %3931 = vmatpush1.msra.mxu0 0.0
    %3932 = vmatprep.subr.mxu0 0.0
    %3933 = vmatpush1.msra.mxu0 0.0
    %3934 = vmatprep.subr.mxu0 0.0
    %3935 = vmatpush1.msra.mxu0 0.0
    %3936 = vmatprep.subr.mxu0 0.0
    %3937 = vmatpush1.msra.mxu0 0.0
    %3938 = vmatprep.subr.mxu0 0.0
    %3939 = vmatpush1.msra.mxu0 0.0
    %3940 = vmatprep.subr.mxu0 0.0
    %3941 = vmatpush1.msra.mxu0 0.0
    %3942 = vmatprep.subr.mxu0 0.0
    %3943 = vmatpush1.msra.mxu0 0.0
    %3944 = vmatprep.subr.mxu0 0.0
    %3945 = vmatpush1.msra.mxu0 0.0
    %3946 = vmatprep.subr.mxu0 0.0
    %3947 = vmatpush1.msra.mxu0 0.0
    %3948 = vmatprep.subr.mxu0 0.0
    %3949 = vmatpush1.msra.mxu0 0.0
    %3950 = vmatprep.subr.mxu0 0.0
    %3951 = vmatpush1.msra.mxu0 0.0
    %3952 = vmatprep.subr.mxu0 0.0
    %3953 = vmatpush1.msra.mxu0 0.0
    %3954 = vmatprep.subr.mxu0 0.0
    %3955 = vmatpush1.msra.mxu0 0.0
    %3956 = vmatprep.subr.mxu0 0.0
    %3957 = vmatpush1.msra.mxu0 0.0
    %3958 = vmatprep.subr.mxu0 0.0
    %3959 = vmatpush1.msra.mxu0 0.0
    %3960 = vmatprep.subr.mxu0 0.0
    %3961 = vmatpush1.msra.mxu0 0.0
    %3962 = vmatprep.mubr.f32.mxu0 0.0
    %v3963 = vand.u32 %v3362, 4294901760
    %3964 = vmatmul.mubr.f32.gmra.mrb[0].mxu0 %v3963
    %v3965 = vpop.f32.mrb[0].mxu0
    %v3966 = vadd.f32 %v3839, %v3965
    %v3967 = vpop.f32.mrb[0].mxu0
    %3968 = vmatprep.mubr.f32.mxu0 0.0
    %v3969 = vand.u32 %v3363, 4294901760
    %3970 = vmatmul.mubr.f32.gmra.mrb[0].mxu0 %v3969
    %v3971 = vpop.f32.mrb[0].mxu0
    %v3972 = vadd.f32 %v3847, %v3971
    %v3973 = vpop.f32.mrb[0].mxu0
    %3974 = vdwg.mxu0
    %3975 = vmatprep.subr.mxu0 0.0
    %v3976 = vand.u32 %v3364, 4294901760
    %3977 = vmatpush1.msra.mxu0 %v3976
    %3978 = vmatprep.subr.mxu0 0.0
    %v3979 = vand.u32 %v3365, 4294901760
    %3980 = vmatpush1.msra.mxu0 %v3979
    %3981 = vmatprep.subr.mxu0 0.0
    %v3982 = vand.u32 %v3366, 4294901760
    %3983 = vmatpush1.msra.mxu0 %v3982
    %3984 = vmatprep.subr.mxu0 0.0
    %v3985 = vand.u32 %v3367, 4294901760
    %3986 = vmatpush1.msra.mxu0 %v3985
    %3987 = vmatprep.subr.mxu0 0.0
    %v3988 = vand.u32 %v3368, 4294901760
    %3989 = vmatpush1.msra.mxu0 %v3988
    %3990 = vmatprep.subr.mxu0 0.0
    %v3991 = vand.u32 %v3369, 4294901760
    %3992 = vmatpush1.msra.mxu0 %v3991
    %3993 = vmatprep.subr.mxu0 0.0
    %v3994 = vand.u32 %v3370, 4294901760
    %3995 = vmatpush1.msra.mxu0 %v3994
    %3996 = vmatprep.subr.mxu0 0.0
    %v3997 = vand.u32 %v3371, 4294901760
    %3998 = vmatpush1.msra.mxu0 %v3997
    %3999 = vmatprep.subr.mxu0 0.0
    %v4000 = vand.u32 %v3372, 4294901760
    %4001 = vmatpush1.msra.mxu0 %v4000
    %4002 = vmatprep.subr.mxu0 0.0
    %v4003 = vand.u32 %v3373, 4294901760
    %4004 = vmatpush1.msra.mxu0 %v4003
    %4005 = vmatprep.subr.mxu0 0.0
    %v4006 = vand.u32 %v3374, 4294901760
    %4007 = vmatpush1.msra.mxu0 %v4006
    %4008 = vmatprep.subr.mxu0 0.0
    %v4009 = vand.u32 %v3375, 4294901760
    %4010 = vmatpush1.msra.mxu0 %v4009
    %4011 = vmatprep.subr.mxu0 0.0
    %v4012 = vand.u32 %v3376, 4294901760
    %4013 = vmatpush1.msra.mxu0 %v4012
    %4014 = vmatprep.subr.mxu0 0.0
    %v4015 = vand.u32 %v3377, 4294901760
    %4016 = vmatpush1.msra.mxu0 %v4015
    %4017 = vmatprep.subr.mxu0 0.0
    %v4018 = vand.u32 %v3378, 4294901760
    %4019 = vmatpush1.msra.mxu0 %v4018
    %4020 = vmatprep.subr.mxu0 0.0
    %v4021 = vand.u32 %v3379, 4294901760
    %4022 = vmatpush1.msra.mxu0 %v4021
    %4023 = vmatprep.subr.mxu0 0.0
    %4024 = vmatpush1.msra.mxu0 0.0
    %4025 = vmatprep.subr.mxu0 0.0
    %4026 = vmatpush1.msra.mxu0 0.0
    %4027 = vmatprep.subr.mxu0 0.0
    %4028 = vmatpush1.msra.mxu0 0.0
    %4029 = vmatprep.subr.mxu0 0.0
    %4030 = vmatpush1.msra.mxu0 0.0
    %4031 = vmatprep.subr.mxu0 0.0
    %4032 = vmatpush1.msra.mxu0 0.0
    %4033 = vmatprep.subr.mxu0 0.0
    %4034 = vmatpush1.msra.mxu0 0.0
    %4035 = vmatprep.subr.mxu0 0.0
    %4036 = vmatpush1.msra.mxu0 0.0
    %4037 = vmatprep.subr.mxu0 0.0
    %4038 = vmatpush1.msra.mxu0 0.0
    %4039 = vmatprep.subr.mxu0 0.0
    %4040 = vmatpush1.msra.mxu0 0.0
    %4041 = vmatprep.subr.mxu0 0.0
    %4042 = vmatpush1.msra.mxu0 0.0
    %4043 = vmatprep.subr.mxu0 0.0
    %4044 = vmatpush1.msra.mxu0 0.0
    %4045 = vmatprep.subr.mxu0 0.0
    %4046 = vmatpush1.msra.mxu0 0.0
    %4047 = vmatprep.subr.mxu0 0.0
    %4048 = vmatpush1.msra.mxu0 0.0
    %4049 = vmatprep.subr.mxu0 0.0
    %4050 = vmatpush1.msra.mxu0 0.0
    %4051 = vmatprep.subr.mxu0 0.0
    %4052 = vmatpush1.msra.mxu0 0.0
    %4053 = vmatprep.subr.mxu0 0.0
    %4054 = vmatpush1.msra.mxu0 0.0
    %4055 = vmatprep.mubr.f32.mxu0 0.0
    %v4056 = vand.u32 %v3362, 4294901760
    %4057 = vmatmul.mubr.f32.gmra.mrb[0].mxu0 %v4056
    %v4058 = vpop.f32.mrb[0].mxu0
    %v4059 = vadd.f32 %v3966, %v4058
    %v4060 = vpop.f32.mrb[0].mxu0
    %4061 = vmatprep.mubr.f32.mxu0 0.0
    %v4062 = vand.u32 %v3363, 4294901760
    %4063 = vmatmul.mubr.f32.gmra.mrb[0].mxu0 %v4062
    %v4064 = vpop.f32.mrb[0].mxu0
    %v4065 = vadd.f32 %v3972, %v4064
    %v4066 = vpop.f32.mrb[0].mxu0
    %4067 = vdwg.mxu0
    %4068 = vmax.xlane.f32.xlu0 %v4059
    %v4069 = vpop.xlane.xlu0 %4068
    %4070 = vmax.xlane.f32.xlu0 %v4065
    %v4071 = vpop.xlane.xlu0 %4070
    %v4072 = vsub.f32 %v4059, %v4069
    %v4073 = vsub.f32 %v4065, %v4071
    %v4074 = vmul.f32 %v4072, 1.442695
    %v4075 = vpow.pop %v4074
    %v4076 = vmul.f32 %v4073, 1.442695
    %v4077 = vpow.pop %v4076
    %4078 = vmatprep.subr.mxu0 0.0
    %4079 = vmatpush1.msra.mxu0 1.0
    %4080 = vmatprep.subr.mxu0 0.0
    %4081 = vmatpush1.msra.mxu0 1.0
    %4082 = vmatprep.subr.mxu0 0.0
    %4083 = vmatpush1.msra.mxu0 1.0
    %4084 = vmatprep.subr.mxu0 0.0
    %4085 = vmatpush1.msra.mxu0 1.0
    %4086 = vmatprep.subr.mxu0 0.0
    %4087 = vmatpush1.msra.mxu0 1.0
    %4088 = vmatprep.subr.mxu0 0.0
    %4089 = vmatpush1.msra.mxu0 1.0
    %4090 = vmatprep.subr.mxu0 0.0
    %4091 = vmatpush1.msra.mxu0 1.0
    %4092 = vmatprep.subr.mxu0 0.0
    %4093 = vmatpush1.msra.mxu0 1.0
    %4094 = vmatprep.subr.mxu0 0.0
    %4095 = vmatpush1.msra.mxu0 1.0
    %4096 = vmatprep.subr.mxu0 0.0
    %4097 = vmatpush1.msra.mxu0 1.0
    %4098 = vmatprep.subr.mxu0 0.0
    %4099 = vmatpush1.msra.mxu0 1.0
    %4100 = vmatprep.subr.mxu0 0.0
    %4101 = vmatpush1.msra.mxu0 1.0
    %4102 = vmatprep.subr.mxu0 0.0
    %4103 = vmatpush1.msra.mxu0 1.0
    %4104 = vmatprep.subr.mxu0 0.0
    %4105 = vmatpush1.msra.mxu0 1.0
    %4106 = vmatprep.subr.mxu0 0.0
    %4107 = vmatpush1.msra.mxu0 1.0
    %4108 = vmatprep.subr.mxu0 0.0
    %4109 = vmatpush1.msra.mxu0 1.0
    %4110 = vmatprep.subr.mxu0 0.0
    %4111 = vmatpush1.msra.mxu0 0.0
    %4112 = vmatprep.subr.mxu0 0.0
    %4113 = vmatpush1.msra.mxu0 0.0
    %4114 = vmatprep.subr.mxu0 0.0
    %4115 = vmatpush1.msra.mxu0 0.0
    %4116 = vmatprep.subr.mxu0 0.0
    %4117 = vmatpush1.msra.mxu0 0.0
    %4118 = vmatprep.subr.mxu0 0.0
    %4119 = vmatpush1.msra.mxu0 0.0
    %4120 = vmatprep.subr.mxu0 0.0
    %4121 = vmatpush1.msra.mxu0 0.0
    %4122 = vmatprep.subr.mxu0 0.0
    %4123 = vmatpush1.msra.mxu0 0.0
    %4124 = vmatprep.subr.mxu0 0.0
    %4125 = vmatpush1.msra.mxu0 0.0
    %4126 = vmatprep.subr.mxu0 0.0
    %4127 = vmatpush1.msra.mxu0 0.0
    %4128 = vmatprep.subr.mxu0 0.0
    %4129 = vmatpush1.msra.mxu0 0.0
    %4130 = vmatprep.subr.mxu0 0.0
    %4131 = vmatpush1.msra.mxu0 0.0
    %4132 = vmatprep.subr.mxu0 0.0
    %4133 = vmatpush1.msra.mxu0 0.0
    %4134 = vmatprep.subr.mxu0 0.0
    %4135 = vmatpush1.msra.mxu0 0.0
    %4136 = vmatprep.subr.mxu0 0.0
    %4137 = vmatpush1.msra.mxu0 0.0
    %4138 = vmatprep.subr.mxu0 0.0
    %4139 = vmatpush1.msra.mxu0 0.0
    %4140 = vmatprep.subr.mxu0 0.0
    %4141 = vmatpush1.msra.mxu0 0.0
    %4142 = vmatprep.mubr.f32.mxu0 0.0
    %v4143 = vand.u32 %v4075, 4294901760
    %v4144 = vsub.f32 %v4075, %v4143
    %v4145 = vand.u32 %v4144, 4294901760
    %v4146 = vsub.f32 %v4144, %v4145
    %v4147 = vand.u32 %v4146, 4294901760
    %4148 = vmatmul.mubr.f32.gmra.mrb[0].mxu0 %v4147
    %v4149 = vpop.f32.mrb[0].mxu0
    %v4150 = vadd.f32 0.0, %v4149
    %v4151 = vpop.f32.mrb[0].mxu0
    %4152 = vmatprep.mubr.f32.mxu0 0.0
    %v4153 = vand.u32 %v4077, 4294901760
    %v4154 = vsub.f32 %v4077, %v4153
    %v4155 = vand.u32 %v4154, 4294901760
    %v4156 = vsub.f32 %v4154, %v4155
    %v4157 = vand.u32 %v4156, 4294901760
    %4158 = vmatmul.mubr.f32.gmra.mrb[0].mxu0 %v4157
    %v4159 = vpop.f32.mrb[0].mxu0
    %v4160 = vadd.f32 0.0, %v4159
    %v4161 = vpop.f32.mrb[0].mxu0
    %4162 = vdwg.mxu0
    %4163 = vmatprep.subr.mxu0 0.0
    %4164 = vmatpush1.msra.mxu0 0.0
    %4165 = vmatprep.subr.mxu0 0.0
    %4166 = vmatpush1.msra.mxu0 0.0
    %4167 = vmatprep.subr.mxu0 0.0
    %4168 = vmatpush1.msra.mxu0 0.0
    %4169 = vmatprep.subr.mxu0 0.0
    %4170 = vmatpush1.msra.mxu0 0.0
    %4171 = vmatprep.subr.mxu0 0.0
    %4172 = vmatpush1.msra.mxu0 0.0
    %4173 = vmatprep.subr.mxu0 0.0
    %4174 = vmatpush1.msra.mxu0 0.0
    %4175 = vmatprep.subr.mxu0 0.0
    %4176 = vmatpush1.msra.mxu0 0.0
    %4177 = vmatprep.subr.mxu0 0.0
    %4178 = vmatpush1.msra.mxu0 0.0
    %4179 = vmatprep.subr.mxu0 0.0
    %4180 = vmatpush1.msra.mxu0 0.0
    %4181 = vmatprep.subr.mxu0 0.0
    %4182 = vmatpush1.msra.mxu0 0.0
    %4183 = vmatprep.subr.mxu0 0.0
    %4184 = vmatpush1.msra.mxu0 0.0
    %4185 = vmatprep.subr.mxu0 0.0
    %4186 = vmatpush1.msra.mxu0 0.0
    %4187 = vmatprep.subr.mxu0 0.0
    %4188 = vmatpush1.msra.mxu0 0.0
    %4189 = vmatprep.subr.mxu0 0.0
    %4190 = vmatpush1.msra.mxu0 0.0
    %4191 = vmatprep.subr.mxu0 0.0
    %4192 = vmatpush1.msra.mxu0 0.0
    %4193 = vmatprep.subr.mxu0 0.0
    %4194 = vmatpush1.msra.mxu0 0.0
    %4195 = vmatprep.subr.mxu0 0.0
    %4196 = vmatpush1.msra.mxu0 0.0
    %4197 = vmatprep.subr.mxu0 0.0
    %4198 = vmatpush1.msra.mxu0 0.0
    %4199 = vmatprep.subr.mxu0 0.0
    %4200 = vmatpush1.msra.mxu0 0.0
    %4201 = vmatprep.subr.mxu0 0.0
    %4202 = vmatpush1.msra.mxu0 0.0
    %4203 = vmatprep.subr.mxu0 0.0
    %4204 = vmatpush1.msra.mxu0 0.0
    %4205 = vmatprep.subr.mxu0 0.0
    %4206 = vmatpush1.msra.mxu0 0.0
    %4207 = vmatprep.subr.mxu0 0.0
    %4208 = vmatpush1.msra.mxu0 0.0
    %4209 = vmatprep.subr.mxu0 0.0
    %4210 = vmatpush1.msra.mxu0 0.0
    %4211 = vmatprep.subr.mxu0 0.0
    %4212 = vmatpush1.msra.mxu0 0.0
    %4213 = vmatprep.subr.mxu0 0.0
    %4214 = vmatpush1.msra.mxu0 0.0
    %4215 = vmatprep.subr.mxu0 0.0
    %4216 = vmatpush1.msra.mxu0 0.0
    %4217 = vmatprep.subr.mxu0 0.0
    %4218 = vmatpush1.msra.mxu0 0.0
    %4219 = vmatprep.subr.mxu0 0.0
    %4220 = vmatpush1.msra.mxu0 0.0
    %4221 = vmatprep.subr.mxu0 0.0
    %4222 = vmatpush1.msra.mxu0 0.0
    %4223 = vmatprep.subr.mxu0 0.0
    %4224 = vmatpush1.msra.mxu0 0.0
    %4225 = vmatprep.subr.mxu0 0.0
    %4226 = vmatpush1.msra.mxu0 0.0
    %4227 = vmatprep.mubr.f32.mxu0 0.0
    %v4228 = vand.u32 %v4075, 4294901760
    %4229 = vmatmul.mubr.f32.gmra.mrb[0].mxu0 %v4228
    %v4230 = vpop.f32.mrb[0].mxu0
    %v4231 = vadd.f32 %v4150, %v4230
    %v4232 = vpop.f32.mrb[0].mxu0
    %4233 = vmatprep.mubr.f32.mxu0 0.0
    %v4234 = vand.u32 %v4077, 4294901760
    %4235 = vmatmul.mubr.f32.gmra.mrb[0].mxu0 %v4234
    %v4236 = vpop.f32.mrb[0].mxu0
    %v4237 = vadd.f32 %v4160, %v4236
    %v4238 = vpop.f32.mrb[0].mxu0
    %4239 = vdwg.mxu0
    %4240 = vmatprep.subr.mxu0 0.0
    %4241 = vmatpush1.msra.mxu0 0.0
    %4242 = vmatprep.subr.mxu0 0.0
    %4243 = vmatpush1.msra.mxu0 0.0
    %4244 = vmatprep.subr.mxu0 0.0
    %4245 = vmatpush1.msra.mxu0 0.0
    %4246 = vmatprep.subr.mxu0 0.0
    %4247 = vmatpush1.msra.mxu0 0.0
    %4248 = vmatprep.subr.mxu0 0.0
    %4249 = vmatpush1.msra.mxu0 0.0
    %4250 = vmatprep.subr.mxu0 0.0
    %4251 = vmatpush1.msra.mxu0 0.0
    %4252 = vmatprep.subr.mxu0 0.0
    %4253 = vmatpush1.msra.mxu0 0.0
    %4254 = vmatprep.subr.mxu0 0.0
    %4255 = vmatpush1.msra.mxu0 0.0
    %4256 = vmatprep.subr.mxu0 0.0
    %4257 = vmatpush1.msra.mxu0 0.0
    %4258 = vmatprep.subr.mxu0 0.0
    %4259 = vmatpush1.msra.mxu0 0.0
    %4260 = vmatprep.subr.mxu0 0.0
    %4261 = vmatpush1.msra.mxu0 0.0
    %4262 = vmatprep.subr.mxu0 0.0
    %4263 = vmatpush1.msra.mxu0 0.0
    %4264 = vmatprep.subr.mxu0 0.0
    %4265 = vmatpush1.msra.mxu0 0.0
    %4266 = vmatprep.subr.mxu0 0.0
    %4267 = vmatpush1.msra.mxu0 0.0
    %4268 = vmatprep.subr.mxu0 0.0
    %4269 = vmatpush1.msra.mxu0 0.0
    %4270 = vmatprep.subr.mxu0 0.0
    %4271 = vmatpush1.msra.mxu0 0.0
    %4272 = vmatprep.subr.mxu0 0.0
    %4273 = vmatpush1.msra.mxu0 0.0
    %4274 = vmatprep.subr.mxu0 0.0
    %4275 = vmatpush1.msra.mxu0 0.0
    %4276 = vmatprep.subr.mxu0 0.0
    %4277 = vmatpush1.msra.mxu0 0.0
    %4278 = vmatprep.subr.mxu0 0.0
    %4279 = vmatpush1.msra.mxu0 0.0
    %4280 = vmatprep.subr.mxu0 0.0
    %4281 = vmatpush1.msra.mxu0 0.0
    %4282 = vmatprep.subr.mxu0 0.0
    %4283 = vmatpush1.msra.mxu0 0.0
    %4284 = vmatprep.subr.mxu0 0.0
    %4285 = vmatpush1.msra.mxu0 0.0
    %4286 = vmatprep.subr.mxu0 0.0
    %4287 = vmatpush1.msra.mxu0 0.0
    %4288 = vmatprep.subr.mxu0 0.0
    %4289 = vmatpush1.msra.mxu0 0.0
    %4290 = vmatprep.subr.mxu0 0.0
    %4291 = vmatpush1.msra.mxu0 0.0
    %4292 = vmatprep.subr.mxu0 0.0
    %4293 = vmatpush1.msra.mxu0 0.0
    %4294 = vmatprep.subr.mxu0 0.0
    %4295 = vmatpush1.msra.mxu0 0.0
    %4296 = vmatprep.subr.mxu0 0.0
    %4297 = vmatpush1.msra.mxu0 0.0
    %4298 = vmatprep.subr.mxu0 0.0
    %4299 = vmatpush1.msra.mxu0 0.0
    %4300 = vmatprep.subr.mxu0 0.0
    %4301 = vmatpush1.msra.mxu0 0.0
    %4302 = vmatprep.subr.mxu0 0.0
    %4303 = vmatpush1.msra.mxu0 0.0
    %4304 = vmatprep.mubr.f32.mxu0 0.0
    %v4305 = vand.u32 %v4075, 4294901760
    %v4306 = vsub.f32 %v4075, %v4305
    %4307 = vmatmul.mubr.f32.gmra.mrb[0].mxu0 %v4306
    %v4308 = vpop.f32.mrb[0].mxu0
    %v4309 = vadd.f32 %v4231, %v4308
    %v4310 = vpop.f32.mrb[0].mxu0
    %4311 = vmatprep.mubr.f32.mxu0 0.0
    %v4312 = vand.u32 %v4077, 4294901760
    %v4313 = vsub.f32 %v4077, %v4312
    %4314 = vmatmul.mubr.f32.gmra.mrb[0].mxu0 %v4313
    %v4315 = vpop.f32.mrb[0].mxu0
    %v4316 = vadd.f32 %v4237, %v4315
    %v4317 = vpop.f32.mrb[0].mxu0
    %4318 = vdwg.mxu0
    %4319 = vmatprep.subr.mxu0 0.0
    %4320 = vmatpush1.msra.mxu0 1.0
    %4321 = vmatprep.subr.mxu0 0.0
    %4322 = vmatpush1.msra.mxu0 1.0
    %4323 = vmatprep.subr.mxu0 0.0
    %4324 = vmatpush1.msra.mxu0 1.0
    %4325 = vmatprep.subr.mxu0 0.0
    %4326 = vmatpush1.msra.mxu0 1.0
    %4327 = vmatprep.subr.mxu0 0.0
    %4328 = vmatpush1.msra.mxu0 1.0
    %4329 = vmatprep.subr.mxu0 0.0
    %4330 = vmatpush1.msra.mxu0 1.0
    %4331 = vmatprep.subr.mxu0 0.0
    %4332 = vmatpush1.msra.mxu0 1.0
    %4333 = vmatprep.subr.mxu0 0.0
    %4334 = vmatpush1.msra.mxu0 1.0
    %4335 = vmatprep.subr.mxu0 0.0
    %4336 = vmatpush1.msra.mxu0 1.0
    %4337 = vmatprep.subr.mxu0 0.0
    %4338 = vmatpush1.msra.mxu0 1.0
    %4339 = vmatprep.subr.mxu0 0.0
    %4340 = vmatpush1.msra.mxu0 1.0
    %4341 = vmatprep.subr.mxu0 0.0
    %4342 = vmatpush1.msra.mxu0 1.0
    %4343 = vmatprep.subr.mxu0 0.0
    %4344 = vmatpush1.msra.mxu0 1.0
    %4345 = vmatprep.subr.mxu0 0.0
    %4346 = vmatpush1.msra.mxu0 1.0
    %4347 = vmatprep.subr.mxu0 0.0
    %4348 = vmatpush1.msra.mxu0 1.0
    %4349 = vmatprep.subr.mxu0 0.0
    %4350 = vmatpush1.msra.mxu0 1.0
    %4351 = vmatprep.subr.mxu0 0.0
    %4352 = vmatpush1.msra.mxu0 0.0
    %4353 = vmatprep.subr.mxu0 0.0
    %4354 = vmatpush1.msra.mxu0 0.0
    %4355 = vmatprep.subr.mxu0 0.0
    %4356 = vmatpush1.msra.mxu0 0.0
    %4357 = vmatprep.subr.mxu0 0.0
    %4358 = vmatpush1.msra.mxu0 0.0
    %4359 = vmatprep.subr.mxu0 0.0
    %4360 = vmatpush1.msra.mxu0 0.0
    %4361 = vmatprep.subr.mxu0 0.0
    %4362 = vmatpush1.msra.mxu0 0.0
    %4363 = vmatprep.subr.mxu0 0.0
    %4364 = vmatpush1.msra.mxu0 0.0
    %4365 = vmatprep.subr.mxu0 0.0
    %4366 = vmatpush1.msra.mxu0 0.0
    %4367 = vmatprep.subr.mxu0 0.0
    %4368 = vmatpush1.msra.mxu0 0.0
    %4369 = vmatprep.subr.mxu0 0.0
    %4370 = vmatpush1.msra.mxu0 0.0
    %4371 = vmatprep.subr.mxu0 0.0
    %4372 = vmatpush1.msra.mxu0 0.0
    %4373 = vmatprep.subr.mxu0 0.0
    %4374 = vmatpush1.msra.mxu0 0.0
    %4375 = vmatprep.subr.mxu0 0.0
    %4376 = vmatpush1.msra.mxu0 0.0
    %4377 = vmatprep.subr.mxu0 0.0
    %4378 = vmatpush1.msra.mxu0 0.0
    %4379 = vmatprep.subr.mxu0 0.0
    %4380 = vmatpush1.msra.mxu0 0.0
    %4381 = vmatprep.subr.mxu0 0.0
    %4382 = vmatpush1.msra.mxu0 0.0
    %4383 = vmatprep.mubr.f32.mxu0 0.0
    %v4384 = vand.u32 %v4075, 4294901760
    %v4385 = vsub.f32 %v4075, %v4384
    %v4386 = vand.u32 %v4385, 4294901760
    %4387 = vmatmul.mubr.f32.gmra.mrb[0].mxu0 %v4386
    %v4388 = vpop.f32.mrb[0].mxu0
    %v4389 = vadd.f32 %v4309, %v4388
    %v4390 = vpop.f32.mrb[0].mxu0
    %4391 = vmatprep.mubr.f32.mxu0 0.0
    %v4392 = vand.u32 %v4077, 4294901760
    %v4393 = vsub.f32 %v4077, %v4392
    %v4394 = vand.u32 %v4393, 4294901760
    %4395 = vmatmul.mubr.f32.gmra.mrb[0].mxu0 %v4394
    %v4396 = vpop.f32.mrb[0].mxu0
    %v4397 = vadd.f32 %v4316, %v4396
    %v4398 = vpop.f32.mrb[0].mxu0
    %4399 = vdwg.mxu0
    %4400 = vmatprep.subr.mxu0 0.0
    %4401 = vmatpush1.msra.mxu0 0.0
    %4402 = vmatprep.subr.mxu0 0.0
    %4403 = vmatpush1.msra.mxu0 0.0
    %4404 = vmatprep.subr.mxu0 0.0
    %4405 = vmatpush1.msra.mxu0 0.0
    %4406 = vmatprep.subr.mxu0 0.0
    %4407 = vmatpush1.msra.mxu0 0.0
    %4408 = vmatprep.subr.mxu0 0.0
    %4409 = vmatpush1.msra.mxu0 0.0
    %4410 = vmatprep.subr.mxu0 0.0
    %4411 = vmatpush1.msra.mxu0 0.0
    %4412 = vmatprep.subr.mxu0 0.0
    %4413 = vmatpush1.msra.mxu0 0.0
    %4414 = vmatprep.subr.mxu0 0.0
    %4415 = vmatpush1.msra.mxu0 0.0
    %4416 = vmatprep.subr.mxu0 0.0
    %4417 = vmatpush1.msra.mxu0 0.0
    %4418 = vmatprep.subr.mxu0 0.0
    %4419 = vmatpush1.msra.mxu0 0.0
    %4420 = vmatprep.subr.mxu0 0.0
    %4421 = vmatpush1.msra.mxu0 0.0
    %4422 = vmatprep.subr.mxu0 0.0
    %4423 = vmatpush1.msra.mxu0 0.0
    %4424 = vmatprep.subr.mxu0 0.0
    %4425 = vmatpush1.msra.mxu0 0.0
    %4426 = vmatprep.subr.mxu0 0.0
    %4427 = vmatpush1.msra.mxu0 0.0
    %4428 = vmatprep.subr.mxu0 0.0
    %4429 = vmatpush1.msra.mxu0 0.0
    %4430 = vmatprep.subr.mxu0 0.0
    %4431 = vmatpush1.msra.mxu0 0.0
    %4432 = vmatprep.subr.mxu0 0.0
    %4433 = vmatpush1.msra.mxu0 0.0
    %4434 = vmatprep.subr.mxu0 0.0
    %4435 = vmatpush1.msra.mxu0 0.0
    %4436 = vmatprep.subr.mxu0 0.0
    %4437 = vmatpush1.msra.mxu0 0.0
    %4438 = vmatprep.subr.mxu0 0.0
    %4439 = vmatpush1.msra.mxu0 0.0
    %4440 = vmatprep.subr.mxu0 0.0
    %4441 = vmatpush1.msra.mxu0 0.0
    %4442 = vmatprep.subr.mxu0 0.0
    %4443 = vmatpush1.msra.mxu0 0.0
    %4444 = vmatprep.subr.mxu0 0.0
    %4445 = vmatpush1.msra.mxu0 0.0
    %4446 = vmatprep.subr.mxu0 0.0
    %4447 = vmatpush1.msra.mxu0 0.0
    %4448 = vmatprep.subr.mxu0 0.0
    %4449 = vmatpush1.msra.mxu0 0.0
    %4450 = vmatprep.subr.mxu0 0.0
    %4451 = vmatpush1.msra.mxu0 0.0
    %4452 = vmatprep.subr.mxu0 0.0
    %4453 = vmatpush1.msra.mxu0 0.0
    %4454 = vmatprep.subr.mxu0 0.0
    %4455 = vmatpush1.msra.mxu0 0.0
    %4456 = vmatprep.subr.mxu0 0.0
    %4457 = vmatpush1.msra.mxu0 0.0
    %4458 = vmatprep.subr.mxu0 0.0
    %4459 = vmatpush1.msra.mxu0 0.0
    %4460 = vmatprep.subr.mxu0 0.0
    %4461 = vmatpush1.msra.mxu0 0.0
    %4462 = vmatprep.subr.mxu0 0.0
    %4463 = vmatpush1.msra.mxu0 0.0
    %4464 = vmatprep.mubr.f32.mxu0 0.0
    %v4465 = vand.u32 %v4075, 4294901760
    %4466 = vmatmul.mubr.f32.gmra.mrb[0].mxu0 %v4465
    %v4467 = vpop.f32.mrb[0].mxu0
    %v4468 = vadd.f32 %v4389, %v4467
    %v4469 = vpop.f32.mrb[0].mxu0
    %4470 = vmatprep.mubr.f32.mxu0 0.0
    %v4471 = vand.u32 %v4077, 4294901760
    %4472 = vmatmul.mubr.f32.gmra.mrb[0].mxu0 %v4471
    %v4473 = vpop.f32.mrb[0].mxu0
    %v4474 = vadd.f32 %v4397, %v4473
    %v4475 = vpop.f32.mrb[0].mxu0
    %4476 = vdwg.mxu0
    %4477 = vmatprep.subr.mxu0 0.0
    %4478 = vmatpush1.msra.mxu0 1.0
    %4479 = vmatprep.subr.mxu0 0.0
    %4480 = vmatpush1.msra.mxu0 1.0
    %4481 = vmatprep.subr.mxu0 0.0
    %4482 = vmatpush1.msra.mxu0 1.0
    %4483 = vmatprep.subr.mxu0 0.0
    %4484 = vmatpush1.msra.mxu0 1.0
    %4485 = vmatprep.subr.mxu0 0.0
    %4486 = vmatpush1.msra.mxu0 1.0
    %4487 = vmatprep.subr.mxu0 0.0
    %4488 = vmatpush1.msra.mxu0 1.0
    %4489 = vmatprep.subr.mxu0 0.0
    %4490 = vmatpush1.msra.mxu0 1.0
    %4491 = vmatprep.subr.mxu0 0.0
    %4492 = vmatpush1.msra.mxu0 1.0
    %4493 = vmatprep.subr.mxu0 0.0
    %4494 = vmatpush1.msra.mxu0 1.0
    %4495 = vmatprep.subr.mxu0 0.0
    %4496 = vmatpush1.msra.mxu0 1.0
    %4497 = vmatprep.subr.mxu0 0.0
    %4498 = vmatpush1.msra.mxu0 1.0
    %4499 = vmatprep.subr.mxu0 0.0
    %4500 = vmatpush1.msra.mxu0 1.0
    %4501 = vmatprep.subr.mxu0 0.0
    %4502 = vmatpush1.msra.mxu0 1.0
    %4503 = vmatprep.subr.mxu0 0.0
    %4504 = vmatpush1.msra.mxu0 1.0
    %4505 = vmatprep.subr.mxu0 0.0
    %4506 = vmatpush1.msra.mxu0 1.0
    %4507 = vmatprep.subr.mxu0 0.0
    %4508 = vmatpush1.msra.mxu0 1.0
    %4509 = vmatprep.subr.mxu0 0.0
    %4510 = vmatpush1.msra.mxu0 0.0
    %4511 = vmatprep.subr.mxu0 0.0
    %4512 = vmatpush1.msra.mxu0 0.0
    %4513 = vmatprep.subr.mxu0 0.0
    %4514 = vmatpush1.msra.mxu0 0.0
    %4515 = vmatprep.subr.mxu0 0.0
    %4516 = vmatpush1.msra.mxu0 0.0
    %4517 = vmatprep.subr.mxu0 0.0
    %4518 = vmatpush1.msra.mxu0 0.0
    %4519 = vmatprep.subr.mxu0 0.0
    %4520 = vmatpush1.msra.mxu0 0.0
    %4521 = vmatprep.subr.mxu0 0.0
    %4522 = vmatpush1.msra.mxu0 0.0
    %4523 = vmatprep.subr.mxu0 0.0
    %4524 = vmatpush1.msra.mxu0 0.0
    %4525 = vmatprep.subr.mxu0 0.0
    %4526 = vmatpush1.msra.mxu0 0.0
    %4527 = vmatprep.subr.mxu0 0.0
    %4528 = vmatpush1.msra.mxu0 0.0
    %4529 = vmatprep.subr.mxu0 0.0
    %4530 = vmatpush1.msra.mxu0 0.0
    %4531 = vmatprep.subr.mxu0 0.0
    %4532 = vmatpush1.msra.mxu0 0.0
    %4533 = vmatprep.subr.mxu0 0.0
    %4534 = vmatpush1.msra.mxu0 0.0
    %4535 = vmatprep.subr.mxu0 0.0
    %4536 = vmatpush1.msra.mxu0 0.0
    %4537 = vmatprep.subr.mxu0 0.0
    %4538 = vmatpush1.msra.mxu0 0.0
    %4539 = vmatprep.subr.mxu0 0.0
    %4540 = vmatpush1.msra.mxu0 0.0
    %4541 = vmatprep.mubr.f32.mxu0 0.0
    %v4542 = vand.u32 %v4075, 4294901760
    %4543 = vmatmul.mubr.f32.gmra.mrb[0].mxu0 %v4542
    %v4544 = vpop.f32.mrb[0].mxu0
    %v4545 = vadd.f32 %v4468, %v4544
    %v4546 = vpop.f32.mrb[0].mxu0
    %4547 = vmatprep.mubr.f32.mxu0 0.0
    %v4548 = vand.u32 %v4077, 4294901760
    %4549 = vmatmul.mubr.f32.gmra.mrb[0].mxu0 %v4548
    %v4550 = vpop.f32.mrb[0].mxu0
    %v4551 = vadd.f32 %v4474, %v4550
    %v4552 = vpop.f32.mrb[0].mxu0
    %4553 = vdwg.mxu0
    %v4554 = vrcp.pop %v4545
    %v4555 = vrcp.pop %v4551
    %v4556 = vmul.f32 %v4545, %v4554
    %v4557 = vmul.f32 %v4551, %v4555
    %v4558 = vsub.f32 2.0, %v4556
    %v4559 = vsub.f32 2.0, %v4557
    %v4560 = vmul.f32 %v4554, %v4558
    %v4561 = vmul.f32 %v4555, %v4559
    %4563 = vset.pattern.permute.xlu0 0
    %4564 = vperm.xlu0 %4563, %v4560
    %v4565 = vpop.permute.xlu0 %4564
    %4568 = vset.pattern.permute.xlu0 0
    %4569 = vperm.xlu0 %4568, %v4561
    %v4570 = vpop.permute.xlu0 %4569
    %v4572 = vmul.f32 %v4075, %v4565
    %v4573 = vmul.f32 %v4077, %v4570
    %4574 = vst [vmem:[%s5] sm:$0xff] %v4572
    %4575 = vst [vmem:[%s5 + $0x8] sm:$0xff] %v4573
    // Predicated region
    $region42: #{actor_forward.1} parent=1 // pred_check
      _
    $region43: #{actor_forward.1} parent=1 // pred_check_branch
      %4577 = sbr.rel (0) target = $region45
    $region44: #{actor_forward.1} parent=1 // pred_region
      _
    $region45: #{actor_forward.1} parent=1 // pred_fallthru
      _
    // Predicated region
    $region46: #{actor_forward.1} parent=1 // pred_check
      _
    $region47: #{actor_forward.1} parent=1 // pred_check_branch
      %4579 = sbr.rel (0) target = $region49
    $region48: #{actor_forward.1} parent=1 // pred_region
      _
    $region49: #{actor_forward.1} parent=1 // pred_fallthru
      _
    %4580 = vsyncpa [#allocation3], 1
    %4581 = vsyncpa [#allocation5], 1
    %4582 = vsyncpa [#allocation8], 1

</llo_original>
